<compile_context>
chip_gen: v7x
topology: tpu7x:2x2x1
jax: 0.10.0
libtpu: 0.0.40
codegen_flags: <defaults>
</compile_context>

<pallas_src>
import jax
import jax.numpy as jnp
from jax import lax
from jax.experimental import pallas as pl
from jax.experimental.pallas import tpu as pltpu

EPS = 1e-5
WINSIZE = 60        # module default winsize
NUM_CHANNELS = 7    # module default num_channels
CPAD = 128          # lane-dense channel block
ROW1 = 64           # per-sample rows before the pool (60 valid + 4 zero guards)
ROW2 = 32           # per-sample rows after the pool  (30 valid + 2 zero guards)
GUARD = 8           # zero guard rows at the top/bottom of the shift scratches


# ----------------------------- in-kernel helpers -----------------------------

def _bn_train(y, mask, n_valid, gamma, beta, relu):
    """Training-mode BatchNorm1d (batch stats over the n_valid unmasked rows,
    biased variance) + optional ReLU.  `mask` removes the zero-padding guard
    rows from the statistics and re-zeroes them in the result (preserving the
    guard-row-zero invariant the shifted-matmul convs rely on)."""
    ym = y * mask
    s = jnp.sum(ym, axis=0, keepdims=True)
    sq = jnp.sum(ym * ym, axis=0, keepdims=True)
    inv_n = 1.0 / n_valid
    mean = s * inv_n
    var = jnp.maximum(sq * inv_n - mean * mean, 0.0)      # clamp one-pass variance
    scale = gamma * lax.rsqrt(var + EPS)
    shift = beta - mean * scale
    out = y * scale + shift
    if relu:
        out = jnp.maximum(out, 0.0)
    return out * mask


def _conv3(res_scr, n_rows, cin, w_ref, b_ref):
    """kernel-3 'same' Conv1d as 3 accumulated tap-shifted matmuls.

    Input sits in res_scr rows [GUARD, GUARD+n_rows), lanes [0, cin).  The +-1
    row shifts read the zero guard rows (top/bottom and the 2 zero rows at the
    end of every 32-row per-sample block), so both the 'same' zero padding and
    the batch boundaries come for free."""
    f32 = jnp.float32
    left = res_scr[pl.ds(GUARD - 1, n_rows), 0:cin]
    mid = res_scr[pl.ds(GUARD, n_rows), 0:cin]
    right = res_scr[pl.ds(GUARD + 1, n_rows), 0:cin]
    out = jnp.dot(left, w_ref[0:cin, :], preferred_element_type=f32)
    out = out + jnp.dot(mid, w_ref[cin:2 * cin, :], preferred_element_type=f32)
    out = out + jnp.dot(right, w_ref[2 * cin:3 * cin, :], preferred_element_type=f32)
    return out + b_ref[...]


def _res_branch(res_scr, n_rows, cin, mask, n_valid,
                w1, b1, g1, be1, w2, b2, g2, be2):
    """Conv3 + BN + ReLU + Conv3 + BN (the _ResConv branch).  The caller stores
    the branch input into res_scr lanes [0, cin) beforehand."""
    t = _conv3(res_scr, n_rows, cin, w1, b1)
    t = _bn_train(t, mask, n_valid, g1[...], be1[...], relu=True)
    res_scr[pl.ds(GUARD, n_rows), 0:CPAD] = t            # conv1 input fully consumed
    t = _conv3(res_scr, n_rows, CPAD, w2, b2)
    t = _bn_train(t, mask, n_valid, g2[...], be2[...], relu=False)
    return t


# -------------------------------- fused kernel --------------------------------

def _fused_kernel(a_ref, pm_ref,
                  mc_w, mc_b, mc_g, mc_be,
                  r0_w1, r0_b1, r0_g1, r0_be1, r0_w2, r0_b2, r0_g2, r0_be2,
                  r1_w1, r1_b1, r1_g1, r1_be1, r1_w2, r1_b2, r1_g2, r1_be2,
                  fc1_w, fc1_b, fc2_w, fc2_b, fc3_w, fc3_b,
                  out_ref, pool_scr, res_scr):
    f32 = jnp.float32
    n1 = a_ref.shape[0]                   # B * ROW1
    B = n1 // ROW1
    n2 = B * ROW2
    n_bn1 = float(B * WINSIZE)            # valid positions for the pre-pool BN
    n_bn2 = float(B * 30)                 # valid positions for the post-pool BNs

    # hoisted full-width row-validity masks (rows 60..63 / 30..31 of each
    # per-sample block are zero-padding guards)
    rid1 = lax.broadcasted_iota(jnp.int32, (n1, CPAD), 0)
    mask1 = ((rid1 & (ROW1 - 1)) < WINSIZE).astype(f32)
    rid2 = lax.broadcasted_iota(jnp.int32, (n2, CPAD), 0)
    mask2 = ((rid2 & (ROW2 - 1)) < 30).astype(f32)

    # zero the guard regions of the shift scratches once
    pool_scr[0:GUARD, :] = jnp.zeros((GUARD, CPAD), f32)
    res_scr[...] = jnp.zeros(res_scr.shape, f32)

    # ---- stage 1: the three _MultiConv branches as ONE im2col matmul ---------
    y = jnp.dot(a_ref[...], mc_w[...], preferred_element_type=f32) + mc_b[...]
    y = _bn_train(y, mask1, n_bn1, mc_g[...], mc_be[...], relu=True)
    pool_scr[pl.ds(GUARD, n1), :] = y

    # ---- MaxPool1d(kernel=3, stride=2, padding=1) via strided offset loads ---
    # out[j] = max(y[2j-1], y[2j], y[2j+1]); y >= 0 post-ReLU, so the zero guard
    # rows stand in for the -inf edge padding.  All three are global loads.
    even = pool_scr[pl.ds(GUARD, n2, stride=2), :]          # rows 2j
    odd = pool_scr[pl.ds(GUARD + 1, n2, stride=2), :]       # rows 2j+1
    prev = pool_scr[pl.ds(GUARD - 1, n2, stride=2), :]      # rows 2j-1
    h0 = jnp.maximum(jnp.maximum(even, odd), prev) * mask2  # (B*32, 128); ch 0..20

    # ---- stage 2: residual blocks (lane-dense 128-channel blocks) ------------
    res_scr[pl.ds(GUARD, n2), 0:CPAD] = h0
    br0 = _res_branch(res_scr, n2, CPAD, mask2, n_bn2,
                      r0_w1, r0_b1, r0_g1, r0_be1, r0_w2, r0_b2, r0_g2, r0_be2)
    # second block's input is [h0 | br0] laid out as two aligned 128-lane stores
    res_scr[pl.ds(GUARD, n2), 0:CPAD] = h0
    res_scr[pl.ds(GUARD, n2), CPAD:2 * CPAD] = br0
    br1 = _res_branch(res_scr, n2, 2 * CPAD, mask2, n_bn2,
                      r1_w1, r1_b1, r1_g1, r1_be1, r1_w2, r1_b2, r1_g2, r1_be2)

    # ---- stage 3: head --------------------------------------------------------
    # Per-sample length mean as one tiny matmul (guard rows are zero, so the
    # uniform 1/30 pooling matrix is exact); fc1 applied blockwise over the
    # three 128-lane channel blocks -> no channel concat is ever materialized.
    pm = pm_ref[...]                                        # (B, B*32)
    z0 = jnp.maximum(jnp.dot(pm, h0, preferred_element_type=f32), 0.0)
    z1 = jnp.maximum(jnp.dot(pm, br0, preferred_element_type=f32), 0.0)
    z2 = jnp.maximum(jnp.dot(pm, br1, preferred_element_type=f32), 0.0)
    z = (jnp.dot(z0, fc1_w[0:CPAD, :], preferred_element_type=f32)
         + jnp.dot(z1, fc1_w[CPAD:2 * CPAD, :], preferred_element_type=f32)
         + jnp.dot(z2, fc1_w[2 * CPAD:3 * CPAD, :], preferred_element_type=f32)
         + fc1_b[...])
    z = jnp.maximum(z, 0.0)
    z = jnp.tanh(jnp.dot(z, fc2_w[...], preferred_element_type=f32) + fc2_b[...])
    out_ref[...] = jnp.dot(z, fc3_w[...], preferred_element_type=f32) + fc3_b[...]


# -------------------------------- wrapper -------------------------------------

_PACKED_ORDER = (
    "mc_w", "mc_b", "mc_g", "mc_be",
    "r0_w1", "r0_b1", "r0_g1", "r0_be1", "r0_w2", "r0_b2", "r0_g2", "r0_be2",
    "r1_w1", "r1_b1", "r1_g1", "r1_be1", "r1_w2", "r1_b2", "r1_g2", "r1_be2",
    "fc1_w", "fc1_b", "fc2_w", "fc2_b", "fc3_w", "fc3_b",
)


def _im2col_stage1(x):
    """Wrapper-side layout plumbing: lane-dense (B*64, 512) im2col slab for the
    merged K=16/32/64 conv (column = 8*tap + channel; rows 60..63 of every
    64-row per-sample block are zero guards)."""
    B, L, C = x.shape
    xp = jnp.pad(x, ((0, 0), (31, 32), (0, 8 - C)))                  # (B, L+63, 8)
    taps = jnp.arange(L)[:, None] + jnp.arange(64)[None, :]           # (L, 64)
    win = xp[:, taps, :].reshape(B, L, 512)                           # (B, L, 512)
    win = jnp.pad(win, ((0, 0), (0, ROW1 - L), (0, 0)))               # (B, 64, 512)
    return win.reshape(B * ROW1, 512)


def _cost_estimate(B, packed):
    rows1, rows2 = B * ROW1, B * ROW2
    flops = 2 * rows1 * 512 * CPAD                                    # merged multiconv
    flops += 2 * rows2 * 3 * CPAD * (CPAD + CPAD + 2 * CPAD + CPAD)   # 4 k=3 convs
    flops += 3 * 2 * B * rows2 * CPAD                                 # per-sample means
    flops += 2 * B * (3 * CPAD * CPAD + CPAD * 64 + 64)               # fc1 / fc2 / fc3
    transcendentals = 5 * CPAD + B * 64                               # BN rsqrt + tanh
    weight_bytes = 4 * sum(int(v.size) for v in packed.values())
    bytes_accessed = 4 * (rows1 * 512 + B * rows2) + weight_bytes + 4 * B
    return pl.CostEstimate(flops=int(flops), transcendentals=int(transcendentals),
                           bytes_accessed=int(bytes_accessed))


def mini_rrwavenet_forward(packed, x):
    """x: (B, winsize, num_channels) -- same input the PyTorch module receives."""
    B, L, C = x.shape
    assert L == WINSIZE and C == NUM_CHANNELS
    f32 = jnp.float32
    x = x.astype(f32)

    a = _im2col_stage1(x)                                             # (B*64, 512)
    pm = jnp.repeat(jnp.eye(B, dtype=f32), ROW2, axis=1) / 30.0        # (B, B*32)

    args = (a, pm) + tuple(packed[n] for n in _PACKED_ORDER)
    vmem = pl.BlockSpec(memory_space=pltpu.MemorySpace.VMEM)
    # Grid-less on purpose: training-mode BatchNorm statistics span the whole
    # batch, so a batch grid would change the module's semantics (see header).
    out = pl.pallas_call(
        _fused_kernel,
        out_shape=jax.ShapeDtypeStruct((B, 1), jnp.float32),
        in_specs=[vmem] * len(args),
        out_specs=vmem,
        scratch_shapes=[
            pltpu.VMEM((GUARD + B * ROW1, CPAD), jnp.float32),         # pool_scr
            pltpu.VMEM((2 * GUARD + B * ROW2, 2 * CPAD), jnp.float32), # res_scr
        ],
        cost_estimate=_cost_estimate(B, packed),
    )(*args)
    return jnp.squeeze(out)


# ------------------------------ params & packing ------------------------------

def init_params(key, num_channels=NUM_CHANNELS):
    """Raw parameters.  Conv weights stored (K, Cin, Cout) (PyTorch's
    (Cout, Cin, K) transposed); Linear weights (in, out); biases/BN (1, C)."""
    C = num_channels
    keys = iter(jax.random.split(key, 64))

    def nrm(shape, scale=0.1):
        return (scale * jax.random.normal(next(keys), shape)).astype(jnp.float32)

    params = {}
    for i, K in enumerate((16, 32, 64)):
        params[f"mt{i}"] = dict(w=nrm((K, C, C)), b=nrm((1, C)),
                                g=1.0 + nrm((1, C)), be=nrm((1, C)))
    cin = 3 * C
    for i, cout in enumerate((64, 128)):
        params[f"res{i}"] = dict(
            w1=nrm((3, cin, cout)), b1=nrm((1, cout)),
            g1=1.0 + nrm((1, cout)), be1=nrm((1, cout)),
            w2=nrm((3, cout, cout)), b2=nrm((1, cout)),
            g2=1.0 + nrm((1, cout)), be2=nrm((1, cout)))
        cin = cin + cout
    params["fc1_w"] = nrm((cin, 128)); params["fc1_b"] = nrm((1, 128))
    params["fc2_w"] = nrm((128, 64));  params["fc2_b"] = nrm((1, 64))
    params["fc3_w"] = nrm((64, 1));    params["fc3_b"] = nrm((1, 1))
    return params


def pack_params(p):
    """One-time packing into the fused kernel's lane-dense layout."""
    f32 = jnp.float32
    C = p["mt0"]["w"].shape[1]           # num_channels (7)
    C3 = 3 * C                           # 21 real channels after the branch concat

    # -- merged multiconv: three kernel sizes embedded in one K=64 filter ------
    wks, bs, gs, bes = [], [], [], []
    for i, K in enumerate((16, 32, 64)):
        q = p[f"mt{i}"]
        off = 31 - (K - 1) // 2          # align branch tap k with merged tap off+k
        wks.append(jnp.pad(q["w"], ((off, 64 - off - K), (0, 8 - C), (0, 0))))  # (64,8,C)
        bs.append(q["b"]); gs.append(q["g"]); bes.append(q["be"])
    wm = jnp.concatenate(wks, axis=2)                        # (64, 8, 3C)
    wm = jnp.pad(wm, ((0, 0), (0, 0), (0, 128 - C3)))        # (64, 8, 128)

    def lane_pad(v, n=128):
        return jnp.pad(v, ((0, 0), (0, n - v.shape[1])))     # pads (incl. gamma) with 0

    packed = dict(
        mc_w=wm.reshape(512, 128),
        mc_b=lane_pad(jnp.concatenate(bs, axis=1)),
        mc_g=lane_pad(jnp.concatenate(gs, axis=1)),
        mc_be=lane_pad(jnp.concatenate(bes, axis=1)),
    )

    # -- res block 0: Cin 21 -> lanes [0,21) of 128; Cout 64 -> 128 ------------
    r = p["res0"]
    packed.update(
        r0_w1=jnp.pad(r["w1"], ((0, 0), (0, 128 - C3), (0, 64))).reshape(384, 128),
        r0_b1=lane_pad(r["b1"]), r0_g1=lane_pad(r["g1"]), r0_be1=lane_pad(r["be1"]),
        r0_w2=jnp.pad(r["w2"], ((0, 0), (0, 64), (0, 64))).reshape(384, 128),
        r0_b2=lane_pad(r["b2"]), r0_g2=lane_pad(r["g2"]), r0_be2=lane_pad(r["be2"]),
    )

    # -- res block 1: Cin 85 -> lanes [0,21) + [128,192) of 256; Cout 128 ------
    r = p["res1"]
    w1a = jnp.pad(r["w1"][:, :C3, :], ((0, 0), (0, 128 - C3), (0, 0)))
    w1b = jnp.pad(r["w1"][:, C3:, :], ((0, 0), (0, 64), (0, 0)))
    packed.update(
        r1_w1=jnp.concatenate([w1a, w1b], axis=1).reshape(768, 128),
        r1_b1=r["b1"], r1_g1=r["g1"], r1_be1=r["be1"],
        r1_w2=r["w2"].reshape(384, 128),
        r1_b2=r["b2"], r1_g2=r["g2"], r1_be2=r["be2"],
    )

    # -- head: fc1 input 213 -> lanes [0,21) + [128,192) + [256,384) of 384 ----
    fa = jnp.pad(p["fc1_w"][:C3, :], ((0, 128 - C3), (0, 0)))
    fb = jnp.pad(p["fc1_w"][C3:C3 + 64, :], ((0, 64), (0, 0)))
    fc = p["fc1_w"][C3 + 64:, :]
    packed.update(
        fc1_w=jnp.concatenate([fa, fb, fc], axis=0),         # (384, 128)
        fc1_b=p["fc1_b"], fc2_w=p["fc2_w"], fc2_b=p["fc2_b"],
        fc3_w=p["fc3_w"], fc3_b=p["fc3_b"],
    )
    return {k: jnp.asarray(v, f32) for k, v in packed.items()}


if __name__ == "__main__":
    B = 2
    key = jax.random.PRNGKey(0)
    kx, kp = jax.random.split(key)
    x = jax.random.normal(kx, (B, WINSIZE, NUM_CHANNELS), dtype=jnp.float32)
    params = init_params(kp)
    packed = pack_params(params)            # one-time weight packing

    fwd = jax.jit(mini_rrwavenet_forward)
    out = jax.block_until_ready(fwd(packed, x))
    assert out.shape == (B,), out.shape
    assert bool(jnp.all(jnp.isfinite(out)))
    print("KERNEL_OK")
</pallas_src>

<mosaic_0001>
module attributes {stable_mosaic.version = 11 : i64} {
  func.func @_fused_kernel(%arg0: memref<128x512xf32, #tpu.memory_space<vmem>>, %arg1: memref<2x64xf32, #tpu.memory_space<vmem>>, %arg2: memref<512x128xf32, #tpu.memory_space<vmem>>, %arg3: memref<1x128xf32, #tpu.memory_space<vmem>>, %arg4: memref<1x128xf32, #tpu.memory_space<vmem>>, %arg5: memref<1x128xf32, #tpu.memory_space<vmem>>, %arg6: memref<384x128xf32, #tpu.memory_space<vmem>>, %arg7: memref<1x128xf32, #tpu.memory_space<vmem>>, %arg8: memref<1x128xf32, #tpu.memory_space<vmem>>, %arg9: memref<1x128xf32, #tpu.memory_space<vmem>>, %arg10: memref<384x128xf32, #tpu.memory_space<vmem>>, %arg11: memref<1x128xf32, #tpu.memory_space<vmem>>, %arg12: memref<1x128xf32, #tpu.memory_space<vmem>>, %arg13: memref<1x128xf32, #tpu.memory_space<vmem>>, %arg14: memref<768x128xf32, #tpu.memory_space<vmem>>, %arg15: memref<1x128xf32, #tpu.memory_space<vmem>>, %arg16: memref<1x128xf32, #tpu.memory_space<vmem>>, %arg17: memref<1x128xf32, #tpu.memory_space<vmem>>, %arg18: memref<384x128xf32, #tpu.memory_space<vmem>>, %arg19: memref<1x128xf32, #tpu.memory_space<vmem>>, %arg20: memref<1x128xf32, #tpu.memory_space<vmem>>, %arg21: memref<1x128xf32, #tpu.memory_space<vmem>>, %arg22: memref<384x128xf32, #tpu.memory_space<vmem>>, %arg23: memref<1x128xf32, #tpu.memory_space<vmem>>, %arg24: memref<128x64xf32, #tpu.memory_space<vmem>>, %arg25: memref<1x64xf32, #tpu.memory_space<vmem>>, %arg26: memref<64x1xf32, #tpu.memory_space<vmem>>, %arg27: memref<1x1xf32, #tpu.memory_space<vmem>>, %arg28: memref<2x1xf32, #tpu.memory_space<vmem>>, %arg29: memref<136x128xf32, #tpu.memory_space<vmem>>, %arg30: memref<80x256xf32, #tpu.memory_space<vmem>>) attributes {dimension_semantics = [], scalar_prefetch = 0 : i64, scratch_operands = 2 : i64, tpu.core_type = #tpu.core_type<tc>} {
    %0 = tpu.iota {dimensions = array<i32: 0>} : vector<128x128xi32>
    %c63_i32 = arith.constant 63 : i32
    %1 = vector.broadcast %c63_i32 : i32 to vector<128x128xi32>
    %2 = arith.andi %0, %1 : vector<128x128xi32>
    %c60_i32 = arith.constant 60 : i32
    %3 = vector.broadcast %c60_i32 : i32 to vector<128x128xi32>
    %4 = arith.cmpi slt, %2, %3 : vector<128x128xi32>
    %5 = arith.extui %4 : vector<128x128xi1> to vector<128x128xi32>
    %6 = arith.sitofp %5 : vector<128x128xi32> to vector<128x128xf32>
    %7 = tpu.iota {dimensions = array<i32: 0>} : vector<64x128xi32>
    %c31_i32 = arith.constant 31 : i32
    %8 = vector.broadcast %c31_i32 : i32 to vector<64x128xi32>
    %9 = arith.andi %7, %8 : vector<64x128xi32>
    %c30_i32 = arith.constant 30 : i32
    %10 = vector.broadcast %c30_i32 : i32 to vector<64x128xi32>
    %11 = arith.cmpi slt, %9, %10 : vector<64x128xi32>
    %12 = arith.extui %11 : vector<64x128xi1> to vector<64x128xi32>
    %13 = arith.sitofp %12 : vector<64x128xi32> to vector<64x128xf32>
    %cst = arith.constant 0.000000e+00 : f32
    %14 = vector.broadcast %cst : f32 to vector<8x128xf32>
    %c0 = arith.constant 0 : index
    %c0_0 = arith.constant 0 : index
    %15 = vector.load %arg29[%c0, %c0_0] : memref<136x128xf32, #tpu.memory_space<vmem>>, vector<8x128xf32>
    tpu.vector_store %arg29[%c0, %c0_0], %14 {strides = array<i32>} : memref<136x128xf32, #tpu.memory_space<vmem>>, vector<8x128xf32>,
    %cst_1 = arith.constant 0.000000e+00 : f32
    %16 = vector.broadcast %cst_1 : f32 to vector<80x256xf32>
    %c0_2 = arith.constant 0 : index
    %c0_3 = arith.constant 0 : index
    %17 = vector.load %arg30[%c0_2, %c0_3] : memref<80x256xf32, #tpu.memory_space<vmem>>, vector<80x256xf32>
    tpu.vector_store %arg30[%c0_2, %c0_3], %16 {strides = array<i32>} : memref<80x256xf32, #tpu.memory_space<vmem>>, vector<80x256xf32>,
    %c0_4 = arith.constant 0 : index
    %c0_5 = arith.constant 0 : index
    %18 = vector.load %arg0[%c0_4, %c0_5] : memref<128x512xf32, #tpu.memory_space<vmem>>, vector<128x512xf32>
    %c0_6 = arith.constant 0 : index
    %c0_7 = arith.constant 0 : index
    %19 = vector.load %arg2[%c0_6, %c0_7] : memref<512x128xf32, #tpu.memory_space<vmem>>, vector<512x128xf32>
    %cst_8 = arith.constant dense<0.000000e+00> : vector<128x128xf32>
    %20 = tpu.matmul %18, %19, %cst_8 {dimension_numbers = #tpu.dot_dimension_numbers<[1], [0], [0], [1], [0, 0, 1, 1], [], []>} : vector<128x512xf32>, vector<512x128xf32>, vector<128x128xf32> -> vector<128x128xf32>
    %c0_9 = arith.constant 0 : index
    %c0_10 = arith.constant 0 : index
    %21 = vector.load %arg3[%c0_9, %c0_10] : memref<1x128xf32, #tpu.memory_space<vmem>>, vector<1x128xf32>
    %22 = vector.broadcast %21 : vector<1x128xf32> to vector<128x128xf32>
    %23 = arith.addf %20, %22 : vector<128x128xf32>
    %c0_11 = arith.constant 0 : index
    %c0_12 = arith.constant 0 : index
    %24 = vector.load %arg4[%c0_11, %c0_12] : memref<1x128xf32, #tpu.memory_space<vmem>>, vector<1x128xf32>
    %c0_13 = arith.constant 0 : index
    %c0_14 = arith.constant 0 : index
    %25 = vector.load %arg5[%c0_13, %c0_14] : memref<1x128xf32, #tpu.memory_space<vmem>>, vector<1x128xf32>
    %26 = arith.mulf %23, %6 : vector<128x128xf32>
    %cst_15 = arith.constant dense<0.000000e+00> : vector<128xf32>
    %27 = vector.multi_reduction <add>, %26, %cst_15 [0] : vector<128x128xf32> to vector<128xf32>
    %28 = vector.shape_cast %27 : vector<128xf32> to vector<1x128xf32>
    %29 = arith.mulf %26, %26 : vector<128x128xf32>
    %cst_16 = arith.constant dense<0.000000e+00> : vector<128xf32>
    %30 = vector.multi_reduction <add>, %29, %cst_16 [0] : vector<128x128xf32> to vector<128xf32>
    %31 = vector.shape_cast %30 : vector<128xf32> to vector<1x128xf32>
    %cst_17 = arith.constant 0.00833333377 : f32
    %32 = vector.broadcast %cst_17 : f32 to vector<1x128xf32>
    %33 = arith.mulf %28, %32 : vector<1x128xf32>
    %cst_18 = arith.constant 0.00833333377 : f32
    %34 = vector.broadcast %cst_18 : f32 to vector<1x128xf32>
    %35 = arith.mulf %31, %34 : vector<1x128xf32>
    %36 = arith.mulf %33, %33 : vector<1x128xf32>
    %37 = arith.subf %35, %36 : vector<1x128xf32>
    %cst_19 = arith.constant 0.000000e+00 : f32
    %38 = vector.broadcast %cst_19 : f32 to vector<1x128xf32>
    %39 = arith.maximumf %37, %38 : vector<1x128xf32>
    %cst_20 = arith.constant 9.99999974E-6 : f32
    %40 = vector.broadcast %cst_20 : f32 to vector<1x128xf32>
    %41 = arith.addf %39, %40 : vector<1x128xf32>
    %42 = math.rsqrt %41 : vector<1x128xf32>
    %43 = arith.mulf %24, %42 : vector<1x128xf32>
    %44 = arith.mulf %33, %43 : vector<1x128xf32>
    %45 = arith.subf %25, %44 : vector<1x128xf32>
    %46 = vector.broadcast %43 : vector<1x128xf32> to vector<128x128xf32>
    %47 = arith.mulf %23, %46 : vector<128x128xf32>
    %48 = vector.broadcast %45 : vector<1x128xf32> to vector<128x128xf32>
    %49 = arith.addf %47, %48 : vector<128x128xf32>
    %cst_21 = arith.constant 0.000000e+00 : f32
    %50 = vector.broadcast %cst_21 : f32 to vector<128x128xf32>
    %51 = arith.maximumf %49, %50 : vector<128x128xf32>
    %52 = arith.mulf %51, %6 : vector<128x128xf32>
    %c8 = arith.constant 8 : index
    %c0_22 = arith.constant 0 : index
    %53 = vector.load %arg29[%c8, %c0_22] : memref<136x128xf32, #tpu.memory_space<vmem>>, vector<128x128xf32>
    tpu.vector_store %arg29[%c8, %c0_22], %52 {strides = array<i32>} : memref<136x128xf32, #tpu.memory_space<vmem>>, vector<128x128xf32>,
    %c8_23 = arith.constant 8 : index
    %c0_24 = arith.constant 0 : index
    %54 = tpu.strided_load %arg29[%c8_23, %c0_24] {strides = array<i32: 2, 1>} : memref<136x128xf32, #tpu.memory_space<vmem>>, vector<64x128xf32>
    %c9 = arith.constant 9 : index
    %c0_25 = arith.constant 0 : index
    %55 = tpu.strided_load %arg29[%c9, %c0_25] {strides = array<i32: 2, 1>} : memref<136x128xf32, #tpu.memory_space<vmem>>, vector<64x128xf32>
    %c7 = arith.constant 7 : index
    %c0_26 = arith.constant 0 : index
    %56 = tpu.strided_load %arg29[%c7, %c0_26] {strides = array<i32: 2, 1>} : memref<136x128xf32, #tpu.memory_space<vmem>>, vector<64x128xf32>
    %57 = arith.maximumf %54, %55 : vector<64x128xf32>
    %58 = arith.maximumf %57, %56 : vector<64x128xf32>
    %59 = arith.mulf %58, %13 : vector<64x128xf32>
    %c8_27 = arith.constant 8 : index
    %c0_28 = arith.constant 0 : index
    %60 = vector.load %arg30[%c8_27, %c0_28] : memref<80x256xf32, #tpu.memory_space<vmem>>, vector<64x128xf32>
    tpu.vector_store %arg30[%c8_27, %c0_28], %59 {strides = array<i32>} : memref<80x256xf32, #tpu.memory_space<vmem>>, vector<64x128xf32>,
    %c7_29 = arith.constant 7 : index
    %c0_30 = arith.constant 0 : index
    %61 = vector.load %arg30[%c7_29, %c0_30] : memref<80x256xf32, #tpu.memory_space<vmem>>, vector<64x128xf32>
    %c8_31 = arith.constant 8 : index
    %c0_32 = arith.constant 0 : index
    %62 = vector.load %arg30[%c8_31, %c0_32] : memref<80x256xf32, #tpu.memory_space<vmem>>, vector<64x128xf32>
    %c9_33 = arith.constant 9 : index
    %c0_34 = arith.constant 0 : index
    %63 = vector.load %arg30[%c9_33, %c0_34] : memref<80x256xf32, #tpu.memory_space<vmem>>, vector<64x128xf32>
    %c0_35 = arith.constant 0 : index
    %c0_36 = arith.constant 0 : index
    %64 = vector.load %arg6[%c0_35, %c0_36] : memref<384x128xf32, #tpu.memory_space<vmem>>, vector<128x128xf32>
    %cst_37 = arith.constant dense<0.000000e+00> : vector<64x128xf32>
    %65 = tpu.matmul %61, %64, %cst_37 {dimension_numbers = #tpu.dot_dimension_numbers<[1], [0], [0], [1], [0, 0, 1, 1], [], []>} : vector<64x128xf32>, vector<128x128xf32>, vector<64x128xf32> -> vector<64x128xf32>
    %c128 = arith.constant 128 : index
    %c0_38 = arith.constant 0 : index
    %66 = vector.load %arg6[%c128, %c0_38] : memref<384x128xf32, #tpu.memory_space<vmem>>, vector<128x128xf32>
    %cst_39 = arith.constant dense<0.000000e+00> : vector<64x128xf32>
    %67 = tpu.matmul %62, %66, %cst_39 {dimension_numbers = #tpu.dot_dimension_numbers<[1], [0], [0], [1], [0, 0, 1, 1], [], []>} : vector<64x128xf32>, vector<128x128xf32>, vector<64x128xf32> -> vector<64x128xf32>
    %68 = arith.addf %65, %67 : vector<64x128xf32>
    %c256 = arith.constant 256 : index
    %c0_40 = arith.constant 0 : index
    %69 = vector.load %arg6[%c256, %c0_40] : memref<384x128xf32, #tpu.memory_space<vmem>>, vector<128x128xf32>
    %cst_41 = arith.constant dense<0.000000e+00> : vector<64x128xf32>
    %70 = tpu.matmul %63, %69, %cst_41 {dimension_numbers = #tpu.dot_dimension_numbers<[1], [0], [0], [1], [0, 0, 1, 1], [], []>} : vector<64x128xf32>, vector<128x128xf32>, vector<64x128xf32> -> vector<64x128xf32>
    %71 = arith.addf %68, %70 : vector<64x128xf32>
    %c0_42 = arith.constant 0 : index
    %c0_43 = arith.constant 0 : index
    %72 = vector.load %arg7[%c0_42, %c0_43] : memref<1x128xf32, #tpu.memory_space<vmem>>, vector<1x128xf32>
    %73 = vector.broadcast %72 : vector<1x128xf32> to vector<64x128xf32>
    %74 = arith.addf %71, %73 : vector<64x128xf32>
    %c0_44 = arith.constant 0 : index
    %c0_45 = arith.constant 0 : index
    %75 = vector.load %arg8[%c0_44, %c0_45] : memref<1x128xf32, #tpu.memory_space<vmem>>, vector<1x128xf32>
    %c0_46 = arith.constant 0 : index
    %c0_47 = arith.constant 0 : index
    %76 = vector.load %arg9[%c0_46, %c0_47] : memref<1x128xf32, #tpu.memory_space<vmem>>, vector<1x128xf32>
    %77 = arith.mulf %74, %13 : vector<64x128xf32>
    %cst_48 = arith.constant dense<0.000000e+00> : vector<128xf32>
    %78 = vector.multi_reduction <add>, %77, %cst_48 [0] : vector<64x128xf32> to vector<128xf32>
    %79 = vector.shape_cast %78 : vector<128xf32> to vector<1x128xf32>
    %80 = arith.mulf %77, %77 : vector<64x128xf32>
    %cst_49 = arith.constant dense<0.000000e+00> : vector<128xf32>
    %81 = vector.multi_reduction <add>, %80, %cst_49 [0] : vector<64x128xf32> to vector<128xf32>
    %82 = vector.shape_cast %81 : vector<128xf32> to vector<1x128xf32>
    %cst_50 = arith.constant 0.0166666675 : f32
    %83 = vector.broadcast %cst_50 : f32 to vector<1x128xf32>
    %84 = arith.mulf %79, %83 : vector<1x128xf32>
    %cst_51 = arith.constant 0.0166666675 : f32
    %85 = vector.broadcast %cst_51 : f32 to vector<1x128xf32>
    %86 = arith.mulf %82, %85 : vector<1x128xf32>
    %87 = arith.mulf %84, %84 : vector<1x128xf32>
    %88 = arith.subf %86, %87 : vector<1x128xf32>
    %cst_52 = arith.constant 0.000000e+00 : f32
    %89 = vector.broadcast %cst_52 : f32 to vector<1x128xf32>
    %90 = arith.maximumf %88, %89 : vector<1x128xf32>
    %cst_53 = arith.constant 9.99999974E-6 : f32
    %91 = vector.broadcast %cst_53 : f32 to vector<1x128xf32>
    %92 = arith.addf %90, %91 : vector<1x128xf32>
    %93 = math.rsqrt %92 : vector<1x128xf32>
    %94 = arith.mulf %75, %93 : vector<1x128xf32>
    %95 = arith.mulf %84, %94 : vector<1x128xf32>
    %96 = arith.subf %76, %95 : vector<1x128xf32>
    %97 = vector.broadcast %94 : vector<1x128xf32> to vector<64x128xf32>
    %98 = arith.mulf %74, %97 : vector<64x128xf32>
    %99 = vector.broadcast %96 : vector<1x128xf32> to vector<64x128xf32>
    %100 = arith.addf %98, %99 : vector<64x128xf32>
    %cst_54 = arith.constant 0.000000e+00 : f32
    %101 = vector.broadcast %cst_54 : f32 to vector<64x128xf32>
    %102 = arith.maximumf %100, %101 : vector<64x128xf32>
    %103 = arith.mulf %102, %13 : vector<64x128xf32>
    %c8_55 = arith.constant 8 : index
    %c0_56 = arith.constant 0 : index
    %104 = vector.load %arg30[%c8_55, %c0_56] : memref<80x256xf32, #tpu.memory_space<vmem>>, vector<64x128xf32>
    tpu.vector_store %arg30[%c8_55, %c0_56], %103 {strides = array<i32>} : memref<80x256xf32, #tpu.memory_space<vmem>>, vector<64x128xf32>,
    %c7_57 = arith.constant 7 : index
    %c0_58 = arith.constant 0 : index
    %105 = vector.load %arg30[%c7_57, %c0_58] : memref<80x256xf32, #tpu.memory_space<vmem>>, vector<64x128xf32>
    %c8_59 = arith.constant 8 : index
    %c0_60 = arith.constant 0 : index
    %106 = vector.load %arg30[%c8_59, %c0_60] : memref<80x256xf32, #tpu.memory_space<vmem>>, vector<64x128xf32>
    %c9_61 = arith.constant 9 : index
    %c0_62 = arith.constant 0 : index
    %107 = vector.load %arg30[%c9_61, %c0_62] : memref<80x256xf32, #tpu.memory_space<vmem>>, vector<64x128xf32>
    %c0_63 = arith.constant 0 : index
    %c0_64 = arith.constant 0 : index
    %108 = vector.load %arg10[%c0_63, %c0_64] : memref<384x128xf32, #tpu.memory_space<vmem>>, vector<128x128xf32>
    %cst_65 = arith.constant dense<0.000000e+00> : vector<64x128xf32>
    %109 = tpu.matmul %105, %108, %cst_65 {dimension_numbers = #tpu.dot_dimension_numbers<[1], [0], [0], [1], [0, 0, 1, 1], [], []>} : vector<64x128xf32>, vector<128x128xf32>, vector<64x128xf32> -> vector<64x128xf32>
    %c128_66 = arith.constant 128 : index
    %c0_67 = arith.constant 0 : index
    %110 = vector.load %arg10[%c128_66, %c0_67] : memref<384x128xf32, #tpu.memory_space<vmem>>, vector<128x128xf32>
    %cst_68 = arith.constant dense<0.000000e+00> : vector<64x128xf32>
    %111 = tpu.matmul %106, %110, %cst_68 {dimension_numbers = #tpu.dot_dimension_numbers<[1], [0], [0], [1], [0, 0, 1, 1], [], []>} : vector<64x128xf32>, vector<128x128xf32>, vector<64x128xf32> -> vector<64x128xf32>
    %112 = arith.addf %109, %111 : vector<64x128xf32>
    %c256_69 = arith.constant 256 : index
    %c0_70 = arith.constant 0 : index
    %113 = vector.load %arg10[%c256_69, %c0_70] : memref<384x128xf32, #tpu.memory_space<vmem>>, vector<128x128xf32>
    %cst_71 = arith.constant dense<0.000000e+00> : vector<64x128xf32>
    %114 = tpu.matmul %107, %113, %cst_71 {dimension_numbers = #tpu.dot_dimension_numbers<[1], [0], [0], [1], [0, 0, 1, 1], [], []>} : vector<64x128xf32>, vector<128x128xf32>, vector<64x128xf32> -> vector<64x128xf32>
    %115 = arith.addf %112, %114 : vector<64x128xf32>
    %c0_72 = arith.constant 0 : index
    %c0_73 = arith.constant 0 : index
    %116 = vector.load %arg11[%c0_72, %c0_73] : memref<1x128xf32, #tpu.memory_space<vmem>>, vector<1x128xf32>
    %117 = vector.broadcast %116 : vector<1x128xf32> to vector<64x128xf32>
    %118 = arith.addf %115, %117 : vector<64x128xf32>
    %c0_74 = arith.constant 0 : index
    %c0_75 = arith.constant 0 : index
    %119 = vector.load %arg12[%c0_74, %c0_75] : memref<1x128xf32, #tpu.memory_space<vmem>>, vector<1x128xf32>
    %c0_76 = arith.constant 0 : index
    %c0_77 = arith.constant 0 : index
    %120 = vector.load %arg13[%c0_76, %c0_77] : memref<1x128xf32, #tpu.memory_space<vmem>>, vector<1x128xf32>
    %121 = arith.mulf %118, %13 : vector<64x128xf32>
    %cst_78 = arith.constant dense<0.000000e+00> : vector<128xf32>
    %122 = vector.multi_reduction <add>, %121, %cst_78 [0] : vector<64x128xf32> to vector<128xf32>
    %123 = vector.shape_cast %122 : vector<128xf32> to vector<1x128xf32>
    %124 = arith.mulf %121, %121 : vector<64x128xf32>
    %cst_79 = arith.constant dense<0.000000e+00> : vector<128xf32>
    %125 = vector.multi_reduction <add>, %124, %cst_79 [0] : vector<64x128xf32> to vector<128xf32>
    %126 = vector.shape_cast %125 : vector<128xf32> to vector<1x128xf32>
    %cst_80 = arith.constant 0.0166666675 : f32
    %127 = vector.broadcast %cst_80 : f32 to vector<1x128xf32>
    %128 = arith.mulf %123, %127 : vector<1x128xf32>
    %cst_81 = arith.constant 0.0166666675 : f32
    %129 = vector.broadcast %cst_81 : f32 to vector<1x128xf32>
    %130 = arith.mulf %126, %129 : vector<1x128xf32>
    %131 = arith.mulf %128, %128 : vector<1x128xf32>
    %132 = arith.subf %130, %131 : vector<1x128xf32>
    %cst_82 = arith.constant 0.000000e+00 : f32
    %133 = vector.broadcast %cst_82 : f32 to vector<1x128xf32>
    %134 = arith.maximumf %132, %133 : vector<1x128xf32>
    %cst_83 = arith.constant 9.99999974E-6 : f32
    %135 = vector.broadcast %cst_83 : f32 to vector<1x128xf32>
    %136 = arith.addf %134, %135 : vector<1x128xf32>
    %137 = math.rsqrt %136 : vector<1x128xf32>
    %138 = arith.mulf %119, %137 : vector<1x128xf32>
    %139 = arith.mulf %128, %138 : vector<1x128xf32>
    %140 = arith.subf %120, %139 : vector<1x128xf32>
    %141 = vector.broadcast %138 : vector<1x128xf32> to vector<64x128xf32>
    %142 = arith.mulf %118, %141 : vector<64x128xf32>
    %143 = vector.broadcast %140 : vector<1x128xf32> to vector<64x128xf32>
    %144 = arith.addf %142, %143 : vector<64x128xf32>
    %145 = arith.mulf %144, %13 : vector<64x128xf32>
    %c8_84 = arith.constant 8 : index
    %c0_85 = arith.constant 0 : index
    %146 = vector.load %arg30[%c8_84, %c0_85] : memref<80x256xf32, #tpu.memory_space<vmem>>, vector<64x128xf32>
    tpu.vector_store %arg30[%c8_84, %c0_85], %59 {strides = array<i32>} : memref<80x256xf32, #tpu.memory_space<vmem>>, vector<64x128xf32>,
    %c8_86 = arith.constant 8 : index
    %c128_87 = arith.constant 128 : index
    %147 = vector.load %arg30[%c8_86, %c128_87] : memref<80x256xf32, #tpu.memory_space<vmem>>, vector<64x128xf32>
    tpu.vector_store %arg30[%c8_86, %c128_87], %145 {strides = array<i32>} : memref<80x256xf32, #tpu.memory_space<vmem>>, vector<64x128xf32>,
    %c7_88 = arith.constant 7 : index
    %c0_89 = arith.constant 0 : index
    %148 = vector.load %arg30[%c7_88, %c0_89] : memref<80x256xf32, #tpu.memory_space<vmem>>, vector<64x256xf32>
    %c8_90 = arith.constant 8 : index
    %c0_91 = arith.constant 0 : index
    %149 = vector.load %arg30[%c8_90, %c0_91] : memref<80x256xf32, #tpu.memory_space<vmem>>, vector<64x256xf32>
    %c9_92 = arith.constant 9 : index
    %c0_93 = arith.constant 0 : index
    %150 = vector.load %arg30[%c9_92, %c0_93] : memref<80x256xf32, #tpu.memory_space<vmem>>, vector<64x256xf32>
    %c0_94 = arith.constant 0 : index
    %c0_95 = arith.constant 0 : index
    %151 = vector.load %arg14[%c0_94, %c0_95] : memref<768x128xf32, #tpu.memory_space<vmem>>, vector<256x128xf32>
    %cst_96 = arith.constant dense<0.000000e+00> : vector<64x128xf32>
    %152 = tpu.matmul %148, %151, %cst_96 {dimension_numbers = #tpu.dot_dimension_numbers<[1], [0], [0], [1], [0, 0, 1, 1], [], []>} : vector<64x256xf32>, vector<256x128xf32>, vector<64x128xf32> -> vector<64x128xf32>
    %c256_97 = arith.constant 256 : index
    %c0_98 = arith.constant 0 : index
    %153 = vector.load %arg14[%c256_97, %c0_98] : memref<768x128xf32, #tpu.memory_space<vmem>>, vector<256x128xf32>
    %cst_99 = arith.constant dense<0.000000e+00> : vector<64x128xf32>
    %154 = tpu.matmul %149, %153, %cst_99 {dimension_numbers = #tpu.dot_dimension_numbers<[1], [0], [0], [1], [0, 0, 1, 1], [], []>} : vector<64x256xf32>, vector<256x128xf32>, vector<64x128xf32> -> vector<64x128xf32>
    %155 = arith.addf %152, %154 : vector<64x128xf32>
    %c512 = arith.constant 512 : index
    %c0_100 = arith.constant 0 : index
    %156 = vector.load %arg14[%c512, %c0_100] : memref<768x128xf32, #tpu.memory_space<vmem>>, vector<256x128xf32>
    %cst_101 = arith.constant dense<0.000000e+00> : vector<64x128xf32>
    %157 = tpu.matmul %150, %156, %cst_101 {dimension_numbers = #tpu.dot_dimension_numbers<[1], [0], [0], [1], [0, 0, 1, 1], [], []>} : vector<64x256xf32>, vector<256x128xf32>, vector<64x128xf32> -> vector<64x128xf32>
    %158 = arith.addf %155, %157 : vector<64x128xf32>
    %c0_102 = arith.constant 0 : index
    %c0_103 = arith.constant 0 : index
    %159 = vector.load %arg15[%c0_102, %c0_103] : memref<1x128xf32, #tpu.memory_space<vmem>>, vector<1x128xf32>
    %160 = vector.broadcast %159 : vector<1x128xf32> to vector<64x128xf32>
    %161 = arith.addf %158, %160 : vector<64x128xf32>
    %c0_104 = arith.constant 0 : index
    %c0_105 = arith.constant 0 : index
    %162 = vector.load %arg16[%c0_104, %c0_105] : memref<1x128xf32, #tpu.memory_space<vmem>>, vector<1x128xf32>
    %c0_106 = arith.constant 0 : index
    %c0_107 = arith.constant 0 : index
    %163 = vector.load %arg17[%c0_106, %c0_107] : memref<1x128xf32, #tpu.memory_space<vmem>>, vector<1x128xf32>
    %164 = arith.mulf %161, %13 : vector<64x128xf32>
    %cst_108 = arith.constant dense<0.000000e+00> : vector<128xf32>
    %165 = vector.multi_reduction <add>, %164, %cst_108 [0] : vector<64x128xf32> to vector<128xf32>
    %166 = vector.shape_cast %165 : vector<128xf32> to vector<1x128xf32>
    %167 = arith.mulf %164, %164 : vector<64x128xf32>
    %cst_109 = arith.constant dense<0.000000e+00> : vector<128xf32>
    %168 = vector.multi_reduction <add>, %167, %cst_109 [0] : vector<64x128xf32> to vector<128xf32>
    %169 = vector.shape_cast %168 : vector<128xf32> to vector<1x128xf32>
    %cst_110 = arith.constant 0.0166666675 : f32
    %170 = vector.broadcast %cst_110 : f32 to vector<1x128xf32>
    %171 = arith.mulf %166, %170 : vector<1x128xf32>
    %cst_111 = arith.constant 0.0166666675 : f32
    %172 = vector.broadcast %cst_111 : f32 to vector<1x128xf32>
    %173 = arith.mulf %169, %172 : vector<1x128xf32>
    %174 = arith.mulf %171, %171 : vector<1x128xf32>
    %175 = arith.subf %173, %174 : vector<1x128xf32>
    %cst_112 = arith.constant 0.000000e+00 : f32
    %176 = vector.broadcast %cst_112 : f32 to vector<1x128xf32>
    %177 = arith.maximumf %175, %176 : vector<1x128xf32>
    %cst_113 = arith.constant 9.99999974E-6 : f32
    %178 = vector.broadcast %cst_113 : f32 to vector<1x128xf32>
    %179 = arith.addf %177, %178 : vector<1x128xf32>
    %180 = math.rsqrt %179 : vector<1x128xf32>
    %181 = arith.mulf %162, %180 : vector<1x128xf32>
    %182 = arith.mulf %171, %181 : vector<1x128xf32>
    %183 = arith.subf %163, %182 : vector<1x128xf32>
    %184 = vector.broadcast %181 : vector<1x128xf32> to vector<64x128xf32>
    %185 = arith.mulf %161, %184 : vector<64x128xf32>
    %186 = vector.broadcast %183 : vector<1x128xf32> to vector<64x128xf32>
    %187 = arith.addf %185, %186 : vector<64x128xf32>
    %cst_114 = arith.constant 0.000000e+00 : f32
    %188 = vector.broadcast %cst_114 : f32 to vector<64x128xf32>
    %189 = arith.maximumf %187, %188 : vector<64x128xf32>
    %190 = arith.mulf %189, %13 : vector<64x128xf32>
    %c8_115 = arith.constant 8 : index
    %c0_116 = arith.constant 0 : index
    %191 = vector.load %arg30[%c8_115, %c0_116] : memref<80x256xf32, #tpu.memory_space<vmem>>, vector<64x128xf32>
    tpu.vector_store %arg30[%c8_115, %c0_116], %190 {strides = array<i32>} : memref<80x256xf32, #tpu.memory_space<vmem>>, vector<64x128xf32>,
    %c7_117 = arith.constant 7 : index
    %c0_118 = arith.constant 0 : index
    %192 = vector.load %arg30[%c7_117, %c0_118] : memref<80x256xf32, #tpu.memory_space<vmem>>, vector<64x128xf32>
    %c8_119 = arith.constant 8 : index
    %c0_120 = arith.constant 0 : index
    %193 = vector.load %arg30[%c8_119, %c0_120] : memref<80x256xf32, #tpu.memory_space<vmem>>, vector<64x128xf32>
    %c9_121 = arith.constant 9 : index
    %c0_122 = arith.constant 0 : index
    %194 = vector.load %arg30[%c9_121, %c0_122] : memref<80x256xf32, #tpu.memory_space<vmem>>, vector<64x128xf32>
    %c0_123 = arith.constant 0 : index
    %c0_124 = arith.constant 0 : index
    %195 = vector.load %arg18[%c0_123, %c0_124] : memref<384x128xf32, #tpu.memory_space<vmem>>, vector<128x128xf32>
    %cst_125 = arith.constant dense<0.000000e+00> : vector<64x128xf32>
    %196 = tpu.matmul %192, %195, %cst_125 {dimension_numbers = #tpu.dot_dimension_numbers<[1], [0], [0], [1], [0, 0, 1, 1], [], []>} : vector<64x128xf32>, vector<128x128xf32>, vector<64x128xf32> -> vector<64x128xf32>
    %c128_126 = arith.constant 128 : index
    %c0_127 = arith.constant 0 : index
    %197 = vector.load %arg18[%c128_126, %c0_127] : memref<384x128xf32, #tpu.memory_space<vmem>>, vector<128x128xf32>
    %cst_128 = arith.constant dense<0.000000e+00> : vector<64x128xf32>
    %198 = tpu.matmul %193, %197, %cst_128 {dimension_numbers = #tpu.dot_dimension_numbers<[1], [0], [0], [1], [0, 0, 1, 1], [], []>} : vector<64x128xf32>, vector<128x128xf32>, vector<64x128xf32> -> vector<64x128xf32>
    %199 = arith.addf %196, %198 : vector<64x128xf32>
    %c256_129 = arith.constant 256 : index
    %c0_130 = arith.constant 0 : index
    %200 = vector.load %arg18[%c256_129, %c0_130] : memref<384x128xf32, #tpu.memory_space<vmem>>, vector<128x128xf32>
    %cst_131 = arith.constant dense<0.000000e+00> : vector<64x128xf32>
    %201 = tpu.matmul %194, %200, %cst_131 {dimension_numbers = #tpu.dot_dimension_numbers<[1], [0], [0], [1], [0, 0, 1, 1], [], []>} : vector<64x128xf32>, vector<128x128xf32>, vector<64x128xf32> -> vector<64x128xf32>
    %202 = arith.addf %199, %201 : vector<64x128xf32>
    %c0_132 = arith.constant 0 : index
    %c0_133 = arith.constant 0 : index
    %203 = vector.load %arg19[%c0_132, %c0_133] : memref<1x128xf32, #tpu.memory_space<vmem>>, vector<1x128xf32>
    %204 = vector.broadcast %203 : vector<1x128xf32> to vector<64x128xf32>
    %205 = arith.addf %202, %204 : vector<64x128xf32>
    %c0_134 = arith.constant 0 : index
    %c0_135 = arith.constant 0 : index
    %206 = vector.load %arg20[%c0_134, %c0_135] : memref<1x128xf32, #tpu.memory_space<vmem>>, vector<1x128xf32>
    %c0_136 = arith.constant 0 : index
    %c0_137 = arith.constant 0 : index
    %207 = vector.load %arg21[%c0_136, %c0_137] : memref<1x128xf32, #tpu.memory_space<vmem>>, vector<1x128xf32>
    %208 = arith.mulf %205, %13 : vector<64x128xf32>
    %cst_138 = arith.constant dense<0.000000e+00> : vector<128xf32>
    %209 = vector.multi_reduction <add>, %208, %cst_138 [0] : vector<64x128xf32> to vector<128xf32>
    %210 = vector.shape_cast %209 : vector<128xf32> to vector<1x128xf32>
    %211 = arith.mulf %208, %208 : vector<64x128xf32>
    %cst_139 = arith.constant dense<0.000000e+00> : vector<128xf32>
    %212 = vector.multi_reduction <add>, %211, %cst_139 [0] : vector<64x128xf32> to vector<128xf32>
    %213 = vector.shape_cast %212 : vector<128xf32> to vector<1x128xf32>
    %cst_140 = arith.constant 0.0166666675 : f32
    %214 = vector.broadcast %cst_140 : f32 to vector<1x128xf32>
    %215 = arith.mulf %210, %214 : vector<1x128xf32>
    %cst_141 = arith.constant 0.0166666675 : f32
    %216 = vector.broadcast %cst_141 : f32 to vector<1x128xf32>
    %217 = arith.mulf %213, %216 : vector<1x128xf32>
    %218 = arith.mulf %215, %215 : vector<1x128xf32>
    %219 = arith.subf %217, %218 : vector<1x128xf32>
    %cst_142 = arith.constant 0.000000e+00 : f32
    %220 = vector.broadcast %cst_142 : f32 to vector<1x128xf32>
    %221 = arith.maximumf %219, %220 : vector<1x128xf32>
    %cst_143 = arith.constant 9.99999974E-6 : f32
    %222 = vector.broadcast %cst_143 : f32 to vector<1x128xf32>
    %223 = arith.addf %221, %222 : vector<1x128xf32>
    %224 = math.rsqrt %223 : vector<1x128xf32>
    %225 = arith.mulf %206, %224 : vector<1x128xf32>
    %226 = arith.mulf %215, %225 : vector<1x128xf32>
    %227 = arith.subf %207, %226 : vector<1x128xf32>
    %228 = vector.broadcast %225 : vector<1x128xf32> to vector<64x128xf32>
    %229 = arith.mulf %205, %228 : vector<64x128xf32>
    %230 = vector.broadcast %227 : vector<1x128xf32> to vector<64x128xf32>
    %231 = arith.addf %229, %230 : vector<64x128xf32>
    %232 = arith.mulf %231, %13 : vector<64x128xf32>
    %c0_144 = arith.constant 0 : index
    %c0_145 = arith.constant 0 : index
    %233 = vector.load %arg1[%c0_144, %c0_145] : memref<2x64xf32, #tpu.memory_space<vmem>>, vector<2x64xf32>
    %cst_146 = arith.constant dense<0.000000e+00> : vector<2x128xf32>
    %234 = tpu.matmul %233, %59, %cst_146 {dimension_numbers = #tpu.dot_dimension_numbers<[1], [0], [0], [1], [0, 0, 1, 1], [], []>} : vector<2x64xf32>, vector<64x128xf32>, vector<2x128xf32> -> vector<2x128xf32>
    %cst_147 = arith.constant 0.000000e+00 : f32
    %235 = vector.broadcast %cst_147 : f32 to vector<2x128xf32>
    %236 = arith.maximumf %234, %235 : vector<2x128xf32>
    %cst_148 = arith.constant dense<0.000000e+00> : vector<2x128xf32>
    %237 = tpu.matmul %233, %145, %cst_148 {dimension_numbers = #tpu.dot_dimension_numbers<[1], [0], [0], [1], [0, 0, 1, 1], [], []>} : vector<2x64xf32>, vector<64x128xf32>, vector<2x128xf32> -> vector<2x128xf32>
    %cst_149 = arith.constant 0.000000e+00 : f32
    %238 = vector.broadcast %cst_149 : f32 to vector<2x128xf32>
    %239 = arith.maximumf %237, %238 : vector<2x128xf32>
    %cst_150 = arith.constant dense<0.000000e+00> : vector<2x128xf32>
    %240 = tpu.matmul %233, %232, %cst_150 {dimension_numbers = #tpu.dot_dimension_numbers<[1], [0], [0], [1], [0, 0, 1, 1], [], []>} : vector<2x64xf32>, vector<64x128xf32>, vector<2x128xf32> -> vector<2x128xf32>
    %cst_151 = arith.constant 0.000000e+00 : f32
    %241 = vector.broadcast %cst_151 : f32 to vector<2x128xf32>
    %242 = arith.maximumf %240, %241 : vector<2x128xf32>
    %c0_152 = arith.constant 0 : index
    %c0_153 = arith.constant 0 : index
    %243 = vector.load %arg22[%c0_152, %c0_153] : memref<384x128xf32, #tpu.memory_space<vmem>>, vector<128x128xf32>
    %cst_154 = arith.constant dense<0.000000e+00> : vector<2x128xf32>
    %244 = tpu.matmul %236, %243, %cst_154 {dimension_numbers = #tpu.dot_dimension_numbers<[1], [0], [0], [1], [0, 0, 1, 1], [], []>} : vector<2x128xf32>, vector<128x128xf32>, vector<2x128xf32> -> vector<2x128xf32>
    %c128_155 = arith.constant 128 : index
    %c0_156 = arith.constant 0 : index
    %245 = vector.load %arg22[%c128_155, %c0_156] : memref<384x128xf32, #tpu.memory_space<vmem>>, vector<128x128xf32>
    %cst_157 = arith.constant dense<0.000000e+00> : vector<2x128xf32>
    %246 = tpu.matmul %239, %245, %cst_157 {dimension_numbers = #tpu.dot_dimension_numbers<[1], [0], [0], [1], [0, 0, 1, 1], [], []>} : vector<2x128xf32>, vector<128x128xf32>, vector<2x128xf32> -> vector<2x128xf32>
    %247 = arith.addf %244, %246 : vector<2x128xf32>
    %c256_158 = arith.constant 256 : index
    %c0_159 = arith.constant 0 : index
    %248 = vector.load %arg22[%c256_158, %c0_159] : memref<384x128xf32, #tpu.memory_space<vmem>>, vector<128x128xf32>
    %cst_160 = arith.constant dense<0.000000e+00> : vector<2x128xf32>
    %249 = tpu.matmul %242, %248, %cst_160 {dimension_numbers = #tpu.dot_dimension_numbers<[1], [0], [0], [1], [0, 0, 1, 1], [], []>} : vector<2x128xf32>, vector<128x128xf32>, vector<2x128xf32> -> vector<2x128xf32>
    %250 = arith.addf %247, %249 : vector<2x128xf32>
    %c0_161 = arith.constant 0 : index
    %c0_162 = arith.constant 0 : index
    %251 = vector.load %arg23[%c0_161, %c0_162] : memref<1x128xf32, #tpu.memory_space<vmem>>, vector<1x128xf32>
    %252 = vector.broadcast %251 : vector<1x128xf32> to vector<2x128xf32>
    %253 = arith.addf %250, %252 : vector<2x128xf32>
    %cst_163 = arith.constant 0.000000e+00 : f32
    %254 = vector.broadcast %cst_163 : f32 to vector<2x128xf32>
    %255 = arith.maximumf %253, %254 : vector<2x128xf32>
    %c0_164 = arith.constant 0 : index
    %c0_165 = arith.constant 0 : index
    %256 = vector.load %arg24[%c0_164, %c0_165] : memref<128x64xf32, #tpu.memory_space<vmem>>, vector<128x64xf32>
    %cst_166 = arith.constant dense<0.000000e+00> : vector<2x64xf32>
    %257 = tpu.matmul %255, %256, %cst_166 {dimension_numbers = #tpu.dot_dimension_numbers<[1], [0], [0], [1], [0, 0, 1, 1], [], []>} : vector<2x128xf32>, vector<128x64xf32>, vector<2x64xf32> -> vector<2x64xf32>
    %c0_167 = arith.constant 0 : index
    %c0_168 = arith.constant 0 : index
    %258 = vector.load %arg25[%c0_167, %c0_168] : memref<1x64xf32, #tpu.memory_space<vmem>>, vector<1x64xf32>
    %259 = vector.broadcast %258 : vector<1x64xf32> to vector<2x64xf32>
    %260 = arith.addf %257, %259 : vector<2x64xf32>
    %261 = math.tanh %260 : vector<2x64xf32>
    %c0_169 = arith.constant 0 : index
    %c0_170 = arith.constant 0 : index
    %262 = vector.load %arg26[%c0_169, %c0_170] : memref<64x1xf32, #tpu.memory_space<vmem>>, vector<64x1xf32>
    %cst_171 = arith.constant dense<0.000000e+00> : vector<2x1xf32>
    %263 = tpu.matmul %261, %262, %cst_171 {dimension_numbers = #tpu.dot_dimension_numbers<[1], [0], [0], [1], [0, 0, 1, 1], [], []>} : vector<2x64xf32>, vector<64x1xf32>, vector<2x1xf32> -> vector<2x1xf32>
    %c0_172 = arith.constant 0 : index
    %c0_173 = arith.constant 0 : index
    %264 = vector.load %arg27[%c0_172, %c0_173] : memref<1x1xf32, #tpu.memory_space<vmem>>, vector<1x1xf32>
    %265 = vector.broadcast %264 : vector<1x1xf32> to vector<2x1xf32>
    %266 = arith.addf %263, %265 : vector<2x1xf32>
    %c0_174 = arith.constant 0 : index
    %c0_175 = arith.constant 0 : index
    %267 = vector.load %arg28[%c0_174, %c0_175] : memref<2x1xf32, #tpu.memory_space<vmem>>, vector<2x1xf32>
    tpu.vector_store %arg28[%c0_174, %c0_175], %266 {strides = array<i32>} : memref<2x1xf32, #tpu.memory_space<vmem>>, vector<2x1xf32>,
    return
  }
}

</mosaic_0001>

<llo_original>
// kernel: mini_rrwavenet_forward.1
$region0: #{mini_rrwavenet_forward.1}
  #allocation0 [shape = 'u32[]', space=smem, size = 0x4, offset = 0x4, fixed_abs, tag = 'smem constant byte address 0x4 - core index']
  #allocation1 [shape = 'u32[144,128]{1,0:T(1,128)}', space=vmem, size = 0x12000, scoped, tag = 'internal scratch']
  #allocation2 [shape = 'f32[136,128]{1,0:T(8,128)}', space=vmem, size = 0x11000, scoped, tag = 'scratch operand']
  #allocation3 [shape = 'f32[80,256]{1,0:T(8,128)}', space=vmem, size = 0x14000, scoped, tag = 'scratch operand']
  #allocation4 [shape = 'f32[1,1]{1,0:T(1,128)S(1)}', space=vmem, size = 0x200, scoped, tag = 'scoped memory for mini_rrwavenet_forward.1']
  %s0 = inlined_call_operand.vmem [shape: f32[128,512], index: 0, kind: input, shape index: {}]
  %s1 = inlined_call_operand.vmem [shape: f32[2,64], index: 1, kind: input, shape index: {}]
  %s2 = inlined_call_operand.vmem [shape: f32[512,128], index: 2, kind: input, shape index: {}]
  %s3 = inlined_call_operand.vmem [shape: f32[1,128], index: 3, kind: input, shape index: {}]
  %s4 = inlined_call_operand.vmem [shape: f32[1,128], index: 4, kind: input, shape index: {}]
  %s5 = inlined_call_operand.vmem [shape: f32[1,128], index: 5, kind: input, shape index: {}]
  %s6 = inlined_call_operand.vmem [shape: f32[384,128], index: 6, kind: input, shape index: {}]
  %s7 = inlined_call_operand.vmem [shape: f32[1,128], index: 7, kind: input, shape index: {}]
  %s8 = inlined_call_operand.vmem [shape: f32[1,128], index: 8, kind: input, shape index: {}]
  %s9 = inlined_call_operand.vmem [shape: f32[1,128], index: 9, kind: input, shape index: {}]
  %s10 = inlined_call_operand.vmem [shape: f32[384,128], index: 10, kind: input, shape index: {}]
  %s11 = inlined_call_operand.vmem [shape: f32[1,128], index: 11, kind: input, shape index: {}]
  %s12 = inlined_call_operand.vmem [shape: f32[1,128], index: 12, kind: input, shape index: {}]
  %s13 = inlined_call_operand.vmem [shape: f32[1,128], index: 13, kind: input, shape index: {}]
  %s14 = inlined_call_operand.vmem [shape: f32[768,128], index: 14, kind: input, shape index: {}]
  %s15 = inlined_call_operand.vmem [shape: f32[1,128], index: 15, kind: input, shape index: {}]
  %s16 = inlined_call_operand.vmem [shape: f32[1,128], index: 16, kind: input, shape index: {}]
  %s17 = inlined_call_operand.vmem [shape: f32[1,128], index: 17, kind: input, shape index: {}]
  %s18 = inlined_call_operand.vmem [shape: f32[384,128], index: 18, kind: input, shape index: {}]
  %s19 = inlined_call_operand.vmem [shape: f32[1,128], index: 19, kind: input, shape index: {}]
  %s20 = inlined_call_operand.vmem [shape: f32[1,128], index: 20, kind: input, shape index: {}]
  %s21 = inlined_call_operand.vmem [shape: f32[1,128], index: 21, kind: input, shape index: {}]
  %s22 = inlined_call_operand.vmem [shape: f32[384,128], index: 22, kind: input, shape index: {}]
  %s23 = inlined_call_operand.vmem [shape: f32[1,128], index: 23, kind: input, shape index: {}]
  %s24 = inlined_call_operand.vmem [shape: f32[128,64], index: 24, kind: input, shape index: {}]
  %s25 = inlined_call_operand.vmem [shape: f32[1,64], index: 25, kind: input, shape index: {}]
  %s26 = inlined_call_operand.vmem [shape: f32[64,1], index: 26, kind: input, shape index: {}]
  %s27 = inlined_call_operand.<no memory space> [shape: f32[1,1], index: 27, kind: input, shape index: {}]
  %s28 = inlined_call_operand.vmem [shape: f32[2,1], index: 28, kind: output, shape index: {}]
  %s29 = sld [smem:[#allocation0]]
  $region122: #{mini_rrwavenet_forward.1} parent=0
    _
  %s31 = ssub.s32 1, %s29
  %s32 = scalar_select 0, %s31, %s29
  %v33 = vstv %s27
  %34 = vst [vmem:[#allocation4] sm:$0x1] %v33
  // Predicated region
  $region2: #{mini_rrwavenet_forward.1} parent=0 // pred_check
    _
  $region3: #{mini_rrwavenet_forward.1} parent=0 // pred_check_branch
    %36 = sbr.rel (0) target = $region5
  $region4: #{mini_rrwavenet_forward.1} parent=0 // pred_region
    _
  $region5: #{mini_rrwavenet_forward.1} parent=0 // pred_fallthru
    _
  // Predicated region
  $region6: #{mini_rrwavenet_forward.1} parent=0 // pred_check
    _
  $region7: #{mini_rrwavenet_forward.1} parent=0 // pred_check_branch
    %38 = sbr.rel (0) target = $region9
  $region8: #{mini_rrwavenet_forward.1} parent=0 // pred_region
    _
  $region9: #{mini_rrwavenet_forward.1} parent=0 // pred_fallthru
    _
  // Predicated region
  $region10: #{mini_rrwavenet_forward.1} parent=0 // pred_check
    _
  $region11: #{mini_rrwavenet_forward.1} parent=0 // pred_check_branch
    %40 = sbr.rel (0) target = $region13
  $region12: #{mini_rrwavenet_forward.1} parent=0 // pred_region
    _
  $region13: #{mini_rrwavenet_forward.1} parent=0 // pred_fallthru
    _
  // Predicated region
  $region14: #{mini_rrwavenet_forward.1} parent=0 // pred_check
    _
  $region15: #{mini_rrwavenet_forward.1} parent=0 // pred_check_branch
    %42 = sbr.rel (0) target = $region17
  $region16: #{mini_rrwavenet_forward.1} parent=0 // pred_region
    _
  $region17: #{mini_rrwavenet_forward.1} parent=0 // pred_fallthru
    _
  // Predicated region
  $region18: #{mini_rrwavenet_forward.1} parent=0 // pred_check
    _
  $region19: #{mini_rrwavenet_forward.1} parent=0 // pred_check_branch
    %44 = sbr.rel (0) target = $region21
  $region20: #{mini_rrwavenet_forward.1} parent=0 // pred_region
    _
  $region21: #{mini_rrwavenet_forward.1} parent=0 // pred_fallthru
    _
  // Predicated region
  $region22: #{mini_rrwavenet_forward.1} parent=0 // pred_check
    _
  $region23: #{mini_rrwavenet_forward.1} parent=0 // pred_check_branch
    %46 = sbr.rel (0) target = $region25
  $region24: #{mini_rrwavenet_forward.1} parent=0 // pred_region
    _
  $region25: #{mini_rrwavenet_forward.1} parent=0 // pred_fallthru
    _
  // Predicated region
  $region26: #{mini_rrwavenet_forward.1} parent=0 // pred_check
    _
  $region27: #{mini_rrwavenet_forward.1} parent=0 // pred_check_branch
    %48 = sbr.rel (0) target = $region29
  $region28: #{mini_rrwavenet_forward.1} parent=0 // pred_region
    _
  $region29: #{mini_rrwavenet_forward.1} parent=0 // pred_fallthru
    _
  // Predicated region
  $region30: #{mini_rrwavenet_forward.1} parent=0 // pred_check
    _
  $region31: #{mini_rrwavenet_forward.1} parent=0 // pred_check_branch
    %50 = sbr.rel (0) target = $region33
  $region32: #{mini_rrwavenet_forward.1} parent=0 // pred_region
    _
  $region33: #{mini_rrwavenet_forward.1} parent=0 // pred_fallthru
    _
  // Predicated region
  $region34: #{mini_rrwavenet_forward.1} parent=0 // pred_check
    _
  $region35: #{mini_rrwavenet_forward.1} parent=0 // pred_check_branch
    %52 = sbr.rel (0) target = $region37
  $region36: #{mini_rrwavenet_forward.1} parent=0 // pred_region
    _
  $region37: #{mini_rrwavenet_forward.1} parent=0 // pred_fallthru
    _
  // Predicated region
  $region38: #{mini_rrwavenet_forward.1} parent=0 // pred_check
    _
  $region39: #{mini_rrwavenet_forward.1} parent=0 // pred_check_branch
    %54 = sbr.rel (0) target = $region41
  $region40: #{mini_rrwavenet_forward.1} parent=0 // pred_region
    _
  $region41: #{mini_rrwavenet_forward.1} parent=0 // pred_fallthru
    _
  // Predicated region
  $region42: #{mini_rrwavenet_forward.1} parent=0 // pred_check
    _
  $region43: #{mini_rrwavenet_forward.1} parent=0 // pred_check_branch
    %56 = sbr.rel (0) target = $region45
  $region44: #{mini_rrwavenet_forward.1} parent=0 // pred_region
    _
  $region45: #{mini_rrwavenet_forward.1} parent=0 // pred_fallthru
    _
  // Predicated region
  $region46: #{mini_rrwavenet_forward.1} parent=0 // pred_check
    _
  $region47: #{mini_rrwavenet_forward.1} parent=0 // pred_check_branch
    %58 = sbr.rel (0) target = $region49
  $region48: #{mini_rrwavenet_forward.1} parent=0 // pred_region
    _
  $region49: #{mini_rrwavenet_forward.1} parent=0 // pred_fallthru
    _
  // Predicated region
  $region50: #{mini_rrwavenet_forward.1} parent=0 // pred_check
    _
  $region51: #{mini_rrwavenet_forward.1} parent=0 // pred_check_branch
    %60 = sbr.rel (0) target = $region53
  $region52: #{mini_rrwavenet_forward.1} parent=0 // pred_region
    _
  $region53: #{mini_rrwavenet_forward.1} parent=0 // pred_fallthru
    _
  // Predicated region
  $region54: #{mini_rrwavenet_forward.1} parent=0 // pred_check
    _
  $region55: #{mini_rrwavenet_forward.1} parent=0 // pred_check_branch
    %62 = sbr.rel (0) target = $region57
  $region56: #{mini_rrwavenet_forward.1} parent=0 // pred_region
    _
  $region57: #{mini_rrwavenet_forward.1} parent=0 // pred_fallthru
    _
  // Predicated region
  $region58: #{mini_rrwavenet_forward.1} parent=0 // pred_check
    _
  $region59: #{mini_rrwavenet_forward.1} parent=0 // pred_check_branch
    %64 = sbr.rel (0) target = $region61
  $region60: #{mini_rrwavenet_forward.1} parent=0 // pred_region
    _
  $region61: #{mini_rrwavenet_forward.1} parent=0 // pred_fallthru
    _
  // Predicated region
  $region62: #{mini_rrwavenet_forward.1} parent=0 // pred_check
    _
  $region63: #{mini_rrwavenet_forward.1} parent=0 // pred_check_branch
    %66 = sbr.rel (0) target = $region65
  $region64: #{mini_rrwavenet_forward.1} parent=0 // pred_region
    _
  $region65: #{mini_rrwavenet_forward.1} parent=0 // pred_fallthru
    _
  // Predicated region
  $region66: #{mini_rrwavenet_forward.1} parent=0 // pred_check
    _
  $region67: #{mini_rrwavenet_forward.1} parent=0 // pred_check_branch
    %68 = sbr.rel (0) target = $region69
  $region68: #{mini_rrwavenet_forward.1} parent=0 // pred_region
    _
  $region69: #{mini_rrwavenet_forward.1} parent=0 // pred_fallthru
    _
  // Predicated region
  $region70: #{mini_rrwavenet_forward.1} parent=0 // pred_check
    _
  $region71: #{mini_rrwavenet_forward.1} parent=0 // pred_check_branch
    %70 = sbr.rel (0) target = $region73
  $region72: #{mini_rrwavenet_forward.1} parent=0 // pred_region
    _
  $region73: #{mini_rrwavenet_forward.1} parent=0 // pred_fallthru
    _
  // Predicated region
  $region74: #{mini_rrwavenet_forward.1} parent=0 // pred_check
    _
  $region75: #{mini_rrwavenet_forward.1} parent=0 // pred_check_branch
    %72 = sbr.rel (0) target = $region77
  $region76: #{mini_rrwavenet_forward.1} parent=0 // pred_region
    _
  $region77: #{mini_rrwavenet_forward.1} parent=0 // pred_fallthru
    _
  // Predicated region
  $region78: #{mini_rrwavenet_forward.1} parent=0 // pred_check
    _
  $region79: #{mini_rrwavenet_forward.1} parent=0 // pred_check_branch
    %74 = sbr.rel (0) target = $region81
  $region80: #{mini_rrwavenet_forward.1} parent=0 // pred_region
    _
  $region81: #{mini_rrwavenet_forward.1} parent=0 // pred_fallthru
    _
  // Predicated region
  $region82: #{mini_rrwavenet_forward.1} parent=0 // pred_check
    _
  $region83: #{mini_rrwavenet_forward.1} parent=0 // pred_check_branch
    %76 = sbr.rel (0) target = $region85
  $region84: #{mini_rrwavenet_forward.1} parent=0 // pred_region
    _
  $region85: #{mini_rrwavenet_forward.1} parent=0 // pred_fallthru
    _
  // Predicated region
  $region86: #{mini_rrwavenet_forward.1} parent=0 // pred_check
    _
  $region87: #{mini_rrwavenet_forward.1} parent=0 // pred_check_branch
    %78 = sbr.rel (0) target = $region89
  $region88: #{mini_rrwavenet_forward.1} parent=0 // pred_region
    _
  $region89: #{mini_rrwavenet_forward.1} parent=0 // pred_fallthru
    _
  // Predicated region
  $region90: #{mini_rrwavenet_forward.1} parent=0 // pred_check
    _
  $region91: #{mini_rrwavenet_forward.1} parent=0 // pred_check_branch
    %80 = sbr.rel (0) target = $region93
  $region92: #{mini_rrwavenet_forward.1} parent=0 // pred_region
    _
  $region93: #{mini_rrwavenet_forward.1} parent=0 // pred_fallthru
    _
  // Predicated region
  $region94: #{mini_rrwavenet_forward.1} parent=0 // pred_check
    _
  $region95: #{mini_rrwavenet_forward.1} parent=0 // pred_check_branch
    %82 = sbr.rel (0) target = $region97
  $region96: #{mini_rrwavenet_forward.1} parent=0 // pred_region
    _
  $region97: #{mini_rrwavenet_forward.1} parent=0 // pred_fallthru
    _
  // Predicated region
  $region98: #{mini_rrwavenet_forward.1} parent=0 // pred_check
    _
  $region99: #{mini_rrwavenet_forward.1} parent=0 // pred_check_branch
    %84 = sbr.rel (0) target = $region101
  $region100: #{mini_rrwavenet_forward.1} parent=0 // pred_region
    _
  $region101: #{mini_rrwavenet_forward.1} parent=0 // pred_fallthru
    _
  // Predicated region
  $region102: #{mini_rrwavenet_forward.1} parent=0 // pred_check
    _
  $region103: #{mini_rrwavenet_forward.1} parent=0 // pred_check_branch
    %86 = sbr.rel (0) target = $region105
  $region104: #{mini_rrwavenet_forward.1} parent=0 // pred_region
    _
  $region105: #{mini_rrwavenet_forward.1} parent=0 // pred_fallthru
    _
  // Predicated region
  $region106: #{mini_rrwavenet_forward.1} parent=0 // pred_check
    _
  $region107: #{mini_rrwavenet_forward.1} parent=0 // pred_check_branch
    %88 = sbr.rel (0) target = $region109
  $region108: #{mini_rrwavenet_forward.1} parent=0 // pred_region
    _
  $region109: #{mini_rrwavenet_forward.1} parent=0 // pred_fallthru
    _
  // Predicated region
  $region110: #{mini_rrwavenet_forward.1} parent=0 // pred_check
    _
  $region111: #{mini_rrwavenet_forward.1} parent=0 // pred_check_branch
    %90 = sbr.rel (0) target = $region113
  $region112: #{mini_rrwavenet_forward.1} parent=0 // pred_region
    _
  $region113: #{mini_rrwavenet_forward.1} parent=0 // pred_fallthru
    _
  %v91 = vlaneseq
  %v92 = vshrl.u32 %v91, 7
  %v93 = vadd.s32 %v92, 8
  %v94 = vadd.s32 %v92, 16
  %v95 = vadd.s32 %v92, 24
  %v96 = vadd.s32 %v92, 32
  %v97 = vadd.s32 %v92, 40
  %v98 = vadd.s32 %v92, 48
  %v99 = vadd.s32 %v92, 56
  %v100 = vadd.s32 %v92, 64
  %v101 = vadd.s32 %v92, 72
  %v102 = vadd.s32 %v92, 80
  %v103 = vadd.s32 %v92, 88
  %v104 = vadd.s32 %v92, 96
  %v105 = vadd.s32 %v92, 104
  %v106 = vadd.s32 %v92, 112
  %v107 = vadd.s32 %v92, 120
  %v108 = vand.u32 %v92, 63
  %v109 = vand.u32 %v93, 63
  %v110 = vand.u32 %v94, 63
  %v111 = vand.u32 %v95, 63
  %v112 = vand.u32 %v96, 63
  %v113 = vand.u32 %v97, 63
  %v114 = vand.u32 %v98, 63
  %v115 = vand.u32 %v99, 63
  %v116 = vand.u32 %v100, 63
  %v117 = vand.u32 %v101, 63
  %v118 = vand.u32 %v102, 63
  %v119 = vand.u32 %v103, 63
  %v120 = vand.u32 %v104, 63
  %v121 = vand.u32 %v105, 63
  %v122 = vand.u32 %v106, 63
  %v123 = vand.u32 %v107, 63
  %vm124 = vcmp.lt.s32.totalorder %v108, 60
  %vm125 = vcmp.lt.s32.totalorder %v109, 60
  %vm126 = vcmp.lt.s32.totalorder %v110, 60
  %vm127 = vcmp.lt.s32.totalorder %v111, 60
  %vm128 = vcmp.lt.s32.totalorder %v112, 60
  %vm129 = vcmp.lt.s32.totalorder %v113, 60
  %vm130 = vcmp.lt.s32.totalorder %v114, 60
  %vm131 = vcmp.lt.s32.totalorder %v115, 60
  %vm132 = vcmp.lt.s32.totalorder %v116, 60
  %vm133 = vcmp.lt.s32.totalorder %v117, 60
  %vm134 = vcmp.lt.s32.totalorder %v118, 60
  %vm135 = vcmp.lt.s32.totalorder %v119, 60
  %vm136 = vcmp.lt.s32.totalorder %v120, 60
  %vm137 = vcmp.lt.s32.totalorder %v121, 60
  %vm138 = vcmp.lt.s32.totalorder %v122, 60
  %vm139 = vcmp.lt.s32.totalorder %v123, 60
  %v140 = vsel %vm124, 1, 0
  %v141 = vsel %vm125, 1, 0
  %v142 = vsel %vm126, 1, 0
  %v143 = vsel %vm127, 1, 0
  %v144 = vsel %vm128, 1, 0
  %v145 = vsel %vm129, 1, 0
  %v146 = vsel %vm130, 1, 0
  %v147 = vsel %vm131, 1, 0
  %v148 = vsel %vm132, 1, 0
  %v149 = vsel %vm133, 1, 0
  %v150 = vsel %vm134, 1, 0
  %v151 = vsel %vm135, 1, 0
  %v152 = vsel %vm136, 1, 0
  %v153 = vsel %vm137, 1, 0
  %v154 = vsel %vm138, 1, 0
  %v155 = vsel %vm139, 1, 0
  %v156 = vcvt.s32.f32 %v140
  %v157 = vcvt.s32.f32 %v141
  %v158 = vcvt.s32.f32 %v142
  %v159 = vcvt.s32.f32 %v143
  %v160 = vcvt.s32.f32 %v144
  %v161 = vcvt.s32.f32 %v145
  %v162 = vcvt.s32.f32 %v146
  %v163 = vcvt.s32.f32 %v147
  %v164 = vcvt.s32.f32 %v148
  %v165 = vcvt.s32.f32 %v149
  %v166 = vcvt.s32.f32 %v150
  %v167 = vcvt.s32.f32 %v151
  %v168 = vcvt.s32.f32 %v152
  %v169 = vcvt.s32.f32 %v153
  %v170 = vcvt.s32.f32 %v154
  %v171 = vcvt.s32.f32 %v155
  %v172 = vand.u32 %v92, 31
  %v173 = vand.u32 %v93, 31
  %v174 = vand.u32 %v94, 31
  %v175 = vand.u32 %v95, 31
  %v176 = vand.u32 %v96, 31
  %v177 = vand.u32 %v97, 31
  %v178 = vand.u32 %v98, 31
  %v179 = vand.u32 %v99, 31
  %vm180 = vcmp.lt.s32.totalorder %v172, 30
  %vm181 = vcmp.lt.s32.totalorder %v173, 30
  %vm182 = vcmp.lt.s32.totalorder %v174, 30
  %vm183 = vcmp.lt.s32.totalorder %v175, 30
  %vm184 = vcmp.lt.s32.totalorder %v176, 30
  %vm185 = vcmp.lt.s32.totalorder %v177, 30
  %vm186 = vcmp.lt.s32.totalorder %v178, 30
  %vm187 = vcmp.lt.s32.totalorder %v179, 30
  %v188 = vsel %vm180, 1, 0
  %v189 = vsel %vm181, 1, 0
  %v190 = vsel %vm182, 1, 0
  %v191 = vsel %vm183, 1, 0
  %v192 = vsel %vm184, 1, 0
  %v193 = vsel %vm185, 1, 0
  %v194 = vsel %vm186, 1, 0
  %v195 = vsel %vm187, 1, 0
  %v196 = vcvt.s32.f32 %v188
  %v197 = vcvt.s32.f32 %v189
  %v198 = vcvt.s32.f32 %v190
  %v199 = vcvt.s32.f32 %v191
  %v200 = vcvt.s32.f32 %v192
  %v201 = vcvt.s32.f32 %v193
  %v202 = vcvt.s32.f32 %v194
  %v203 = vcvt.s32.f32 %v195
  %204 = vst [vmem:[#allocation2] sm:$0xff] 0.0
  %205 = vst [vmem:[#allocation3] sm:$0xff] 0.0
  %206 = vst [vmem:[#allocation3 + $0x8] sm:$0xff] 0.0
  %207 = vst [vmem:[#allocation3 + $0x10] sm:$0xff] 0.0
  %208 = vst [vmem:[#allocation3 + $0x18] sm:$0xff] 0.0
  %209 = vst [vmem:[#allocation3 + $0x20] sm:$0xff] 0.0
  %210 = vst [vmem:[#allocation3 + $0x28] sm:$0xff] 0.0
  %211 = vst [vmem:[#allocation3 + $0x30] sm:$0xff] 0.0
  %212 = vst [vmem:[#allocation3 + $0x38] sm:$0xff] 0.0
  %213 = vst [vmem:[#allocation3 + $0x40] sm:$0xff] 0.0
  %214 = vst [vmem:[#allocation3 + $0x48] sm:$0xff] 0.0
  %215 = vst [vmem:[#allocation3 + $0x50] sm:$0xff] 0.0
  %216 = vst [vmem:[#allocation3 + $0x58] sm:$0xff] 0.0
  %217 = vst [vmem:[#allocation3 + $0x60] sm:$0xff] 0.0
  %218 = vst [vmem:[#allocation3 + $0x68] sm:$0xff] 0.0
  %219 = vst [vmem:[#allocation3 + $0x70] sm:$0xff] 0.0
  %220 = vst [vmem:[#allocation3 + $0x78] sm:$0xff] 0.0
  %221 = vst [vmem:[#allocation3 + $0x80] sm:$0xff] 0.0
  %222 = vst [vmem:[#allocation3 + $0x88] sm:$0xff] 0.0
  %223 = vst [vmem:[#allocation3 + $0x90] sm:$0xff] 0.0
  %224 = vst [vmem:[#allocation3 + $0x98] sm:$0xff] 0.0
  %v225 = vld [vmem:[%s0] sm:$0xff]
  %v226 = vld [vmem:[%s0 + $0x8] sm:$0xff]
  %v227 = vld [vmem:[%s0 + $0x10] sm:$0xff]
  %v228 = vld [vmem:[%s0 + $0x18] sm:$0xff]
  %v229 = vld [vmem:[%s0 + $0x20] sm:$0xff]
  %v230 = vld [vmem:[%s0 + $0x28] sm:$0xff]
  %v231 = vld [vmem:[%s0 + $0x30] sm:$0xff]
  %v232 = vld [vmem:[%s0 + $0x38] sm:$0xff]
  %v233 = vld [vmem:[%s0 + $0x40] sm:$0xff]
  %v234 = vld [vmem:[%s0 + $0x48] sm:$0xff]
  %v235 = vld [vmem:[%s0 + $0x50] sm:$0xff]
  %v236 = vld [vmem:[%s0 + $0x58] sm:$0xff]
  %v237 = vld [vmem:[%s0 + $0x60] sm:$0xff]
  %v238 = vld [vmem:[%s0 + $0x68] sm:$0xff]
  %v239 = vld [vmem:[%s0 + $0x70] sm:$0xff]
  %v240 = vld [vmem:[%s0 + $0x78] sm:$0xff]
  %v241 = vld [vmem:[%s0 + $0x80] sm:$0xff]
  %v242 = vld [vmem:[%s0 + $0x88] sm:$0xff]
  %v243 = vld [vmem:[%s0 + $0x90] sm:$0xff]
  %v244 = vld [vmem:[%s0 + $0x98] sm:$0xff]
  %v245 = vld [vmem:[%s0 + $0xa0] sm:$0xff]
  %v246 = vld [vmem:[%s0 + $0xa8] sm:$0xff]
  %v247 = vld [vmem:[%s0 + $0xb0] sm:$0xff]
  %v248 = vld [vmem:[%s0 + $0xb8] sm:$0xff]
  %v249 = vld [vmem:[%s0 + $0xc0] sm:$0xff]
  %v250 = vld [vmem:[%s0 + $0xc8] sm:$0xff]
  %v251 = vld [vmem:[%s0 + $0xd0] sm:$0xff]
  %v252 = vld [vmem:[%s0 + $0xd8] sm:$0xff]
  %v253 = vld [vmem:[%s0 + $0xe0] sm:$0xff]
  %v254 = vld [vmem:[%s0 + $0xe8] sm:$0xff]
  %v255 = vld [vmem:[%s0 + $0xf0] sm:$0xff]
  %v256 = vld [vmem:[%s0 + $0xf8] sm:$0xff]
  %v257 = vld [vmem:[%s0 + $0x100] sm:$0xff]
  %v258 = vld [vmem:[%s0 + $0x108] sm:$0xff]
  %v259 = vld [vmem:[%s0 + $0x110] sm:$0xff]
  %v260 = vld [vmem:[%s0 + $0x118] sm:$0xff]
  %v261 = vld [vmem:[%s0 + $0x120] sm:$0xff]
  %v262 = vld [vmem:[%s0 + $0x128] sm:$0xff]
  %v263 = vld [vmem:[%s0 + $0x130] sm:$0xff]
  %v264 = vld [vmem:[%s0 + $0x138] sm:$0xff]
  %v265 = vld [vmem:[%s0 + $0x140] sm:$0xff]
  %v266 = vld [vmem:[%s0 + $0x148] sm:$0xff]
  %v267 = vld [vmem:[%s0 + $0x150] sm:$0xff]
  %v268 = vld [vmem:[%s0 + $0x158] sm:$0xff]
  %v269 = vld [vmem:[%s0 + $0x160] sm:$0xff]
  %v270 = vld [vmem:[%s0 + $0x168] sm:$0xff]
  %v271 = vld [vmem:[%s0 + $0x170] sm:$0xff]
  %v272 = vld [vmem:[%s0 + $0x178] sm:$0xff]
  %v273 = vld [vmem:[%s0 + $0x180] sm:$0xff]
  %v274 = vld [vmem:[%s0 + $0x188] sm:$0xff]
  %v275 = vld [vmem:[%s0 + $0x190] sm:$0xff]
  %v276 = vld [vmem:[%s0 + $0x198] sm:$0xff]
  %v277 = vld [vmem:[%s0 + $0x1a0] sm:$0xff]
  %v278 = vld [vmem:[%s0 + $0x1a8] sm:$0xff]
  %v279 = vld [vmem:[%s0 + $0x1b0] sm:$0xff]
  %v280 = vld [vmem:[%s0 + $0x1b8] sm:$0xff]
  %v281 = vld [vmem:[%s0 + $0x1c0] sm:$0xff]
  %v282 = vld [vmem:[%s0 + $0x1c8] sm:$0xff]
  %v283 = vld [vmem:[%s0 + $0x1d0] sm:$0xff]
  %v284 = vld [vmem:[%s0 + $0x1d8] sm:$0xff]
  %v285 = vld [vmem:[%s0 + $0x1e0] sm:$0xff]
  %v286 = vld [vmem:[%s0 + $0x1e8] sm:$0xff]
  %v287 = vld [vmem:[%s0 + $0x1f0] sm:$0xff]
  %v288 = vld [vmem:[%s0 + $0x1f8] sm:$0xff]
  %v289 = vld [vmem:[%s2] sm:$0xff]
  %v290 = vld [vmem:[%s2 + $0x8] sm:$0xff]
  %v291 = vld [vmem:[%s2 + $0x10] sm:$0xff]
  %v292 = vld [vmem:[%s2 + $0x18] sm:$0xff]
  %v293 = vld [vmem:[%s2 + $0x20] sm:$0xff]
  %v294 = vld [vmem:[%s2 + $0x28] sm:$0xff]
  %v295 = vld [vmem:[%s2 + $0x30] sm:$0xff]
  %v296 = vld [vmem:[%s2 + $0x38] sm:$0xff]
  %v297 = vld [vmem:[%s2 + $0x40] sm:$0xff]
  %v298 = vld [vmem:[%s2 + $0x48] sm:$0xff]
  %v299 = vld [vmem:[%s2 + $0x50] sm:$0xff]
  %v300 = vld [vmem:[%s2 + $0x58] sm:$0xff]
  %v301 = vld [vmem:[%s2 + $0x60] sm:$0xff]
  %v302 = vld [vmem:[%s2 + $0x68] sm:$0xff]
  %v303 = vld [vmem:[%s2 + $0x70] sm:$0xff]
  %v304 = vld [vmem:[%s2 + $0x78] sm:$0xff]
  %v305 = vld [vmem:[%s2 + $0x80] sm:$0xff]
  %v306 = vld [vmem:[%s2 + $0x88] sm:$0xff]
  %v307 = vld [vmem:[%s2 + $0x90] sm:$0xff]
  %v308 = vld [vmem:[%s2 + $0x98] sm:$0xff]
  %v309 = vld [vmem:[%s2 + $0xa0] sm:$0xff]
  %v310 = vld [vmem:[%s2 + $0xa8] sm:$0xff]
  %v311 = vld [vmem:[%s2 + $0xb0] sm:$0xff]
  %v312 = vld [vmem:[%s2 + $0xb8] sm:$0xff]
  %v313 = vld [vmem:[%s2 + $0xc0] sm:$0xff]
  %v314 = vld [vmem:[%s2 + $0xc8] sm:$0xff]
  %v315 = vld [vmem:[%s2 + $0xd0] sm:$0xff]
  %v316 = vld [vmem:[%s2 + $0xd8] sm:$0xff]
  %v317 = vld [vmem:[%s2 + $0xe0] sm:$0xff]
  %v318 = vld [vmem:[%s2 + $0xe8] sm:$0xff]
  %v319 = vld [vmem:[%s2 + $0xf0] sm:$0xff]
  %v320 = vld [vmem:[%s2 + $0xf8] sm:$0xff]
  %v321 = vld [vmem:[%s2 + $0x100] sm:$0xff]
  %v322 = vld [vmem:[%s2 + $0x108] sm:$0xff]
  %v323 = vld [vmem:[%s2 + $0x110] sm:$0xff]
  %v324 = vld [vmem:[%s2 + $0x118] sm:$0xff]
  %v325 = vld [vmem:[%s2 + $0x120] sm:$0xff]
  %v326 = vld [vmem:[%s2 + $0x128] sm:$0xff]
  %v327 = vld [vmem:[%s2 + $0x130] sm:$0xff]
  %v328 = vld [vmem:[%s2 + $0x138] sm:$0xff]
  %v329 = vld [vmem:[%s2 + $0x140] sm:$0xff]
  %v330 = vld [vmem:[%s2 + $0x148] sm:$0xff]
  %v331 = vld [vmem:[%s2 + $0x150] sm:$0xff]
  %v332 = vld [vmem:[%s2 + $0x158] sm:$0xff]
  %v333 = vld [vmem:[%s2 + $0x160] sm:$0xff]
  %v334 = vld [vmem:[%s2 + $0x168] sm:$0xff]
  %v335 = vld [vmem:[%s2 + $0x170] sm:$0xff]
  %v336 = vld [vmem:[%s2 + $0x178] sm:$0xff]
  %v337 = vld [vmem:[%s2 + $0x180] sm:$0xff]
  %v338 = vld [vmem:[%s2 + $0x188] sm:$0xff]
  %v339 = vld [vmem:[%s2 + $0x190] sm:$0xff]
  %v340 = vld [vmem:[%s2 + $0x198] sm:$0xff]
  %v341 = vld [vmem:[%s2 + $0x1a0] sm:$0xff]
  %v342 = vld [vmem:[%s2 + $0x1a8] sm:$0xff]
  %v343 = vld [vmem:[%s2 + $0x1b0] sm:$0xff]
  %v344 = vld [vmem:[%s2 + $0x1b8] sm:$0xff]
  %v345 = vld [vmem:[%s2 + $0x1c0] sm:$0xff]
  %v346 = vld [vmem:[%s2 + $0x1c8] sm:$0xff]
  %v347 = vld [vmem:[%s2 + $0x1d0] sm:$0xff]
  %v348 = vld [vmem:[%s2 + $0x1d8] sm:$0xff]
  %v349 = vld [vmem:[%s2 + $0x1e0] sm:$0xff]
  %v350 = vld [vmem:[%s2 + $0x1e8] sm:$0xff]
  %v351 = vld [vmem:[%s2 + $0x1f0] sm:$0xff]
  %v352 = vld [vmem:[%s2 + $0x1f8] sm:$0xff]
  %v353 = vld [vmem:[%s3] sm:$0x1]
  %v355 = vlaneseq
  %v356 = vshrl.u32 %v355, 7
  %v357 = vsub.s32 0, %v356
  %v358 = vrot.slane %v353, %v357
  %360 = vmatprep.subr.mxu0 0.0
  %361 = vmatpush1.msra.mxu0 %v289
  %362 = vmatprep.subr.mxu0 0.0
  %363 = vmatpush1.msra.mxu0 %v290
  %364 = vmatprep.subr.mxu0 0.0
  %365 = vmatpush1.msra.mxu0 %v291
  %366 = vmatprep.subr.mxu0 0.0
  %367 = vmatpush1.msra.mxu0 %v292
  %368 = vmatprep.subr.mxu0 0.0
  %369 = vmatpush1.msra.mxu0 %v293
  %370 = vmatprep.subr.mxu0 0.0
  %371 = vmatpush1.msra.mxu0 %v294
  %372 = vmatprep.subr.mxu0 0.0
  %373 = vmatpush1.msra.mxu0 %v295
  %374 = vmatprep.subr.mxu0 0.0
  %375 = vmatpush1.msra.mxu0 %v296
  %376 = vmatprep.subr.mxu0 0.0
  %377 = vmatpush1.msra.mxu0 %v297
  %378 = vmatprep.subr.mxu0 0.0
  %379 = vmatpush1.msra.mxu0 %v298
  %380 = vmatprep.subr.mxu0 0.0
  %381 = vmatpush1.msra.mxu0 %v299
  %382 = vmatprep.subr.mxu0 0.0
  %383 = vmatpush1.msra.mxu0 %v300
  %384 = vmatprep.subr.mxu0 0.0
  %385 = vmatpush1.msra.mxu0 %v301
  %386 = vmatprep.subr.mxu0 0.0
  %387 = vmatpush1.msra.mxu0 %v302
  %388 = vmatprep.subr.mxu0 0.0
  %389 = vmatpush1.msra.mxu0 %v303
  %390 = vmatprep.subr.mxu0 0.0
  %391 = vmatpush1.msra.mxu0 %v304
  %392 = vmatprep.subr.mxu0 0.0
  %393 = vmatpush1.msra.mxu0 %v305
  %394 = vmatprep.subr.mxu0 0.0
  %395 = vmatpush1.msra.mxu0 %v306
  %396 = vmatprep.subr.mxu0 0.0
  %397 = vmatpush1.msra.mxu0 %v307
  %398 = vmatprep.subr.mxu0 0.0
  %399 = vmatpush1.msra.mxu0 %v308
  %400 = vmatprep.subr.mxu0 0.0
  %401 = vmatpush1.msra.mxu0 %v309
  %402 = vmatprep.subr.mxu0 0.0
  %403 = vmatpush1.msra.mxu0 %v310
  %404 = vmatprep.subr.mxu0 0.0
  %405 = vmatpush1.msra.mxu0 %v311
  %406 = vmatprep.subr.mxu0 0.0
  %407 = vmatpush1.msra.mxu0 %v312
  %408 = vmatprep.subr.mxu0 0.0
  %409 = vmatpush1.msra.mxu0 %v313
  %410 = vmatprep.subr.mxu0 0.0
  %411 = vmatpush1.msra.mxu0 %v314
  %412 = vmatprep.subr.mxu0 0.0
  %413 = vmatpush1.msra.mxu0 %v315
  %414 = vmatprep.subr.mxu0 0.0
  %415 = vmatpush1.msra.mxu0 %v316
  %416 = vmatprep.subr.mxu0 0.0
  %417 = vmatpush1.msra.mxu0 %v317
  %418 = vmatprep.subr.mxu0 0.0
  %419 = vmatpush1.msra.mxu0 %v318
  %420 = vmatprep.subr.mxu0 0.0
  %421 = vmatpush1.msra.mxu0 %v319
  %422 = vmatprep.subr.mxu0 0.0
  %423 = vmatpush1.msra.mxu0 %v320
  %424 = vmatprep.mubr.f32.mxu0 %v226
  %425 = vmatmul.mubr.f32.gmra.mrb[0].mxu0 %v225
  %v426 = vpop.f32.mrb[0].mxu0
  %v427 = vadd.f32 %v358, %v426
  %v428 = vpop.f32.mrb[0].mxu0
  %429 = vmatprep.mubr.f32.mxu0 %v230
  %430 = vmatmul.mubr.f32.gmra.mrb[0].mxu0 %v229
  %v431 = vpop.f32.mrb[0].mxu0
  %v432 = vadd.f32 %v358, %v431
  %v433 = vpop.f32.mrb[0].mxu0
  %434 = vmatprep.mubr.f32.mxu0 %v234
  %435 = vmatmul.mubr.f32.gmra.mrb[0].mxu0 %v233
  %v436 = vpop.f32.mrb[0].mxu0
  %v437 = vadd.f32 %v358, %v436
  %v438 = vpop.f32.mrb[0].mxu0
  %439 = vmatprep.mubr.f32.mxu0 %v238
  %440 = vmatmul.mubr.f32.gmra.mrb[0].mxu0 %v237
  %v441 = vpop.f32.mrb[0].mxu0
  %v442 = vadd.f32 %v358, %v441
  %v443 = vpop.f32.mrb[0].mxu0
  %444 = vmatprep.mubr.f32.mxu0 %v242
  %445 = vmatmul.mubr.f32.gmra.mrb[0].mxu0 %v241
  %v446 = vpop.f32.mrb[0].mxu0
  %v447 = vadd.f32 %v358, %v446
  %v448 = vpop.f32.mrb[0].mxu0
  %449 = vmatprep.mubr.f32.mxu0 %v246
  %450 = vmatmul.mubr.f32.gmra.mrb[0].mxu0 %v245
  %v451 = vpop.f32.mrb[0].mxu0
  %v452 = vadd.f32 %v358, %v451
  %v453 = vpop.f32.mrb[0].mxu0
  %454 = vmatprep.mubr.f32.mxu0 %v250
  %455 = vmatmul.mubr.f32.gmra.mrb[0].mxu0 %v249
  %v456 = vpop.f32.mrb[0].mxu0
  %v457 = vadd.f32 %v358, %v456
  %v458 = vpop.f32.mrb[0].mxu0
  %459 = vmatprep.mubr.f32.mxu0 %v254
  %460 = vmatmul.mubr.f32.gmra.mrb[0].mxu0 %v253
  %v461 = vpop.f32.mrb[0].mxu0
  %v462 = vadd.f32 %v358, %v461
  %v463 = vpop.f32.mrb[0].mxu0
  %464 = vmatprep.mubr.f32.mxu0 %v258
  %465 = vmatmul.mubr.f32.gmra.mrb[0].mxu0 %v257
  %v466 = vpop.f32.mrb[0].mxu0
  %v467 = vadd.f32 %v358, %v466
  %v468 = vpop.f32.mrb[0].mxu0
  %469 = vmatprep.mubr.f32.mxu0 %v262
  %470 = vmatmul.mubr.f32.gmra.mrb[0].mxu0 %v261
  %v471 = vpop.f32.mrb[0].mxu0
  %v472 = vadd.f32 %v358, %v471
  %v473 = vpop.f32.mrb[0].mxu0
  %474 = vmatprep.mubr.f32.mxu0 %v266
  %475 = vmatmul.mubr.f32.gmra.mrb[0].mxu0 %v265
  %v476 = vpop.f32.mrb[0].mxu0
  %v477 = vadd.f32 %v358, %v476
  %v478 = vpop.f32.mrb[0].mxu0
  %479 = vmatprep.mubr.f32.mxu0 %v270
  %480 = vmatmul.mubr.f32.gmra.mrb[0].mxu0 %v269
  %v481 = vpop.f32.mrb[0].mxu0
  %v482 = vadd.f32 %v358, %v481
  %v483 = vpop.f32.mrb[0].mxu0
  %484 = vmatprep.mubr.f32.mxu0 %v274
  %485 = vmatmul.mubr.f32.gmra.mrb[0].mxu0 %v273
  %v486 = vpop.f32.mrb[0].mxu0
  %v487 = vadd.f32 %v358, %v486
  %v488 = vpop.f32.mrb[0].mxu0
  %489 = vmatprep.mubr.f32.mxu0 %v278
  %490 = vmatmul.mubr.f32.gmra.mrb[0].mxu0 %v277
  %v491 = vpop.f32.mrb[0].mxu0
  %v492 = vadd.f32 %v358, %v491
  %v493 = vpop.f32.mrb[0].mxu0
  %494 = vmatprep.mubr.f32.mxu0 %v282
  %495 = vmatmul.mubr.f32.gmra.mrb[0].mxu0 %v281
  %v496 = vpop.f32.mrb[0].mxu0
  %v497 = vadd.f32 %v358, %v496
  %v498 = vpop.f32.mrb[0].mxu0
  %499 = vmatprep.mubr.f32.mxu0 %v286
  %500 = vmatmul.mubr.f32.gmra.mrb[0].mxu0 %v285
  %v501 = vpop.f32.mrb[0].mxu0
  %v502 = vadd.f32 %v358, %v501
  %v503 = vpop.f32.mrb[0].mxu0
  %504 = vdwg.mxu0
  %505 = vmatprep.subr.mxu0 0.0
  %506 = vmatpush1.msra.mxu0 %v321
  %507 = vmatprep.subr.mxu0 0.0
  %508 = vmatpush1.msra.mxu0 %v322
  %509 = vmatprep.subr.mxu0 0.0
  %510 = vmatpush1.msra.mxu0 %v323
  %511 = vmatprep.subr.mxu0 0.0
  %512 = vmatpush1.msra.mxu0 %v324
  %513 = vmatprep.subr.mxu0 0.0
  %514 = vmatpush1.msra.mxu0 %v325
  %515 = vmatprep.subr.mxu0 0.0
  %516 = vmatpush1.msra.mxu0 %v326
  %517 = vmatprep.subr.mxu0 0.0
  %518 = vmatpush1.msra.mxu0 %v327
  %519 = vmatprep.subr.mxu0 0.0
  %520 = vmatpush1.msra.mxu0 %v328
  %521 = vmatprep.subr.mxu0 0.0
  %522 = vmatpush1.msra.mxu0 %v329
  %523 = vmatprep.subr.mxu0 0.0
  %524 = vmatpush1.msra.mxu0 %v330
  %525 = vmatprep.subr.mxu0 0.0
  %526 = vmatpush1.msra.mxu0 %v331
  %527 = vmatprep.subr.mxu0 0.0
  %528 = vmatpush1.msra.mxu0 %v332
  %529 = vmatprep.subr.mxu0 0.0
  %530 = vmatpush1.msra.mxu0 %v333
  %531 = vmatprep.subr.mxu0 0.0
  %532 = vmatpush1.msra.mxu0 %v334
  %533 = vmatprep.subr.mxu0 0.0
  %534 = vmatpush1.msra.mxu0 %v335
  %535 = vmatprep.subr.mxu0 0.0
  %536 = vmatpush1.msra.mxu0 %v336
  %537 = vmatprep.subr.mxu0 0.0
  %538 = vmatpush1.msra.mxu0 %v337
  %539 = vmatprep.subr.mxu0 0.0
  %540 = vmatpush1.msra.mxu0 %v338
  %541 = vmatprep.subr.mxu0 0.0
  %542 = vmatpush1.msra.mxu0 %v339
  %543 = vmatprep.subr.mxu0 0.0
  %544 = vmatpush1.msra.mxu0 %v340
  %545 = vmatprep.subr.mxu0 0.0
  %546 = vmatpush1.msra.mxu0 %v341
  %547 = vmatprep.subr.mxu0 0.0
  %548 = vmatpush1.msra.mxu0 %v342
  %549 = vmatprep.subr.mxu0 0.0
  %550 = vmatpush1.msra.mxu0 %v343
  %551 = vmatprep.subr.mxu0 0.0
  %552 = vmatpush1.msra.mxu0 %v344
  %553 = vmatprep.subr.mxu0 0.0
  %554 = vmatpush1.msra.mxu0 %v345
  %555 = vmatprep.subr.mxu0 0.0
  %556 = vmatpush1.msra.mxu0 %v346
  %557 = vmatprep.subr.mxu0 0.0
  %558 = vmatpush1.msra.mxu0 %v347
  %559 = vmatprep.subr.mxu0 0.0
  %560 = vmatpush1.msra.mxu0 %v348
  %561 = vmatprep.subr.mxu0 0.0
  %562 = vmatpush1.msra.mxu0 %v349
  %563 = vmatprep.subr.mxu0 0.0
  %564 = vmatpush1.msra.mxu0 %v350
  %565 = vmatprep.subr.mxu0 0.0
  %566 = vmatpush1.msra.mxu0 %v351
  %567 = vmatprep.subr.mxu0 0.0
  %568 = vmatpush1.msra.mxu0 %v352
  %569 = vmatprep.mubr.f32.mxu0 %v228
  %570 = vmatmul.mubr.f32.gmra.mrb[0].mxu0 %v227
  %v571 = vpop.f32.mrb[0].mxu0
  %v572 = vadd.f32 %v427, %v571
  %v573 = vpop.f32.mrb[0].mxu0
  %574 = vmatprep.mubr.f32.mxu0 %v232
  %575 = vmatmul.mubr.f32.gmra.mrb[0].mxu0 %v231
  %v576 = vpop.f32.mrb[0].mxu0
  %v577 = vadd.f32 %v432, %v576
  %v578 = vpop.f32.mrb[0].mxu0
  %579 = vmatprep.mubr.f32.mxu0 %v236
  %580 = vmatmul.mubr.f32.gmra.mrb[0].mxu0 %v235
  %v581 = vpop.f32.mrb[0].mxu0
  %v582 = vadd.f32 %v437, %v581
  %v583 = vpop.f32.mrb[0].mxu0
  %584 = vmatprep.mubr.f32.mxu0 %v240
  %585 = vmatmul.mubr.f32.gmra.mrb[0].mxu0 %v239
  %v586 = vpop.f32.mrb[0].mxu0
  %v587 = vadd.f32 %v442, %v586
  %v588 = vpop.f32.mrb[0].mxu0
  %589 = vmatprep.mubr.f32.mxu0 %v244
  %590 = vmatmul.mubr.f32.gmra.mrb[0].mxu0 %v243
  %v591 = vpop.f32.mrb[0].mxu0
  %v592 = vadd.f32 %v447, %v591
  %v593 = vpop.f32.mrb[0].mxu0
  %594 = vmatprep.mubr.f32.mxu0 %v248
  %595 = vmatmul.mubr.f32.gmra.mrb[0].mxu0 %v247
  %v596 = vpop.f32.mrb[0].mxu0
  %v597 = vadd.f32 %v452, %v596
  %v598 = vpop.f32.mrb[0].mxu0
  %599 = vmatprep.mubr.f32.mxu0 %v252
  %600 = vmatmul.mubr.f32.gmra.mrb[0].mxu0 %v251
  %v601 = vpop.f32.mrb[0].mxu0
  %v602 = vadd.f32 %v457, %v601
  %v603 = vpop.f32.mrb[0].mxu0
  %604 = vmatprep.mubr.f32.mxu0 %v256
  %605 = vmatmul.mubr.f32.gmra.mrb[0].mxu0 %v255
  %v606 = vpop.f32.mrb[0].mxu0
  %v607 = vadd.f32 %v462, %v606
  %v608 = vpop.f32.mrb[0].mxu0
  %609 = vmatprep.mubr.f32.mxu0 %v260
  %610 = vmatmul.mubr.f32.gmra.mrb[0].mxu0 %v259
  %v611 = vpop.f32.mrb[0].mxu0
  %v612 = vadd.f32 %v467, %v611
  %v613 = vpop.f32.mrb[0].mxu0
  %614 = vmatprep.mubr.f32.mxu0 %v264
  %615 = vmatmul.mubr.f32.gmra.mrb[0].mxu0 %v263
  %v616 = vpop.f32.mrb[0].mxu0
  %v617 = vadd.f32 %v472, %v616
  %v618 = vpop.f32.mrb[0].mxu0
  %619 = vmatprep.mubr.f32.mxu0 %v268
  %620 = vmatmul.mubr.f32.gmra.mrb[0].mxu0 %v267
  %v621 = vpop.f32.mrb[0].mxu0
  %v622 = vadd.f32 %v477, %v621
  %v623 = vpop.f32.mrb[0].mxu0
  %624 = vmatprep.mubr.f32.mxu0 %v272
  %625 = vmatmul.mubr.f32.gmra.mrb[0].mxu0 %v271
  %v626 = vpop.f32.mrb[0].mxu0
  %v627 = vadd.f32 %v482, %v626
  %v628 = vpop.f32.mrb[0].mxu0
  %629 = vmatprep.mubr.f32.mxu0 %v276
  %630 = vmatmul.mubr.f32.gmra.mrb[0].mxu0 %v275
  %v631 = vpop.f32.mrb[0].mxu0
  %v632 = vadd.f32 %v487, %v631
  %v633 = vpop.f32.mrb[0].mxu0
  %634 = vmatprep.mubr.f32.mxu0 %v280
  %635 = vmatmul.mubr.f32.gmra.mrb[0].mxu0 %v279
  %v636 = vpop.f32.mrb[0].mxu0
  %v637 = vadd.f32 %v492, %v636
  %v638 = vpop.f32.mrb[0].mxu0
  %639 = vmatprep.mubr.f32.mxu0 %v284
  %640 = vmatmul.mubr.f32.gmra.mrb[0].mxu0 %v283
  %v641 = vpop.f32.mrb[0].mxu0
  %v642 = vadd.f32 %v497, %v641
  %v643 = vpop.f32.mrb[0].mxu0
  %644 = vmatprep.mubr.f32.mxu0 %v288
  %645 = vmatmul.mubr.f32.gmra.mrb[0].mxu0 %v287
  %v646 = vpop.f32.mrb[0].mxu0
  %v647 = vadd.f32 %v502, %v646
  %v648 = vpop.f32.mrb[0].mxu0
  %649 = vdwg.mxu0
  %v650 = vld [vmem:[%s4] sm:$0x1]
  %v651 = vld [vmem:[%s5] sm:$0x1]
  %v652 = vmul.f32 %v572, %v156
  %v653 = vmul.f32 %v577, %v157
  %v654 = vmul.f32 %v582, %v158
  %v655 = vmul.f32 %v587, %v159
  %v656 = vmul.f32 %v592, %v160
  %v657 = vmul.f32 %v597, %v161
  %v658 = vmul.f32 %v602, %v162
  %v659 = vmul.f32 %v607, %v163
  %v660 = vmul.f32 %v612, %v164
  %v661 = vmul.f32 %v617, %v165
  %v662 = vmul.f32 %v622, %v166
  %v663 = vmul.f32 %v627, %v167
  %v664 = vmul.f32 %v632, %v168
  %v665 = vmul.f32 %v637, %v169
  %v666 = vmul.f32 %v642, %v170
  %v667 = vmul.f32 %v647, %v171
  %v668 = vadd.f32 %v652, %v653
  %v669 = vadd.f32 %v668, %v654
  %v670 = vadd.f32 %v669, %v655
  %v671 = vadd.f32 %v670, %v656
  %v672 = vadd.f32 %v671, %v657
  %v673 = vadd.f32 %v672, %v658
  %v674 = vadd.f32 %v673, %v659
  %v675 = vadd.f32 %v674, %v660
  %v676 = vadd.f32 %v675, %v661
  %v677 = vadd.f32 %v676, %v662
  %v678 = vadd.f32 %v677, %v663
  %v679 = vadd.f32 %v678, %v664
  %v680 = vadd.f32 %v679, %v665
  %v681 = vadd.f32 %v680, %v666
  %v682 = vadd.f32 %v681, %v667
  %v683 = vrot.slane %v682, 4
  %v684 = vadd.f32 %v682, %v683
  %v685 = vrot.slane %v684, 2
  %v686 = vadd.f32 %v684, %v685
  %v687 = vrot.slane %v686, 1
  %v688 = vadd.f32 %v686, %v687
  %v689 = vmul.f32 %v652, %v652
  %v690 = vmul.f32 %v653, %v653
  %v691 = vmul.f32 %v654, %v654
  %v692 = vmul.f32 %v655, %v655
  %v693 = vmul.f32 %v656, %v656
  %v694 = vmul.f32 %v657, %v657
  %v695 = vmul.f32 %v658, %v658
  %v696 = vmul.f32 %v659, %v659
  %v697 = vmul.f32 %v660, %v660
  %v698 = vmul.f32 %v661, %v661
  %v699 = vmul.f32 %v662, %v662
  %v700 = vmul.f32 %v663, %v663
  %v701 = vmul.f32 %v664, %v664
  %v702 = vmul.f32 %v665, %v665
  %v703 = vmul.f32 %v666, %v666
  %v704 = vmul.f32 %v667, %v667
  %v705 = vadd.f32 %v689, %v690
  %v706 = vadd.f32 %v705, %v691
  %v707 = vadd.f32 %v706, %v692
  %v708 = vadd.f32 %v707, %v693
  %v709 = vadd.f32 %v708, %v694
  %v710 = vadd.f32 %v709, %v695
  %v711 = vadd.f32 %v710, %v696
  %v712 = vadd.f32 %v711, %v697
  %v713 = vadd.f32 %v712, %v698
  %v714 = vadd.f32 %v713, %v699
  %v715 = vadd.f32 %v714, %v700
  %v716 = vadd.f32 %v715, %v701
  %v717 = vadd.f32 %v716, %v702
  %v718 = vadd.f32 %v717, %v703
  %v719 = vadd.f32 %v718, %v704
  %v720 = vrot.slane %v719, 4
  %v721 = vadd.f32 %v719, %v720
  %v722 = vrot.slane %v721, 2
  %v723 = vadd.f32 %v721, %v722
  %v724 = vrot.slane %v723, 1
  %v725 = vadd.f32 %v723, %v724
  %v726 = vmul.f32 %v688, 0.008333334
  %v727 = vmul.f32 %v725, 0.008333334
  %v728 = vmul.f32 %v726, %v726
  %v729 = vsub.f32 %v727, %v728
  %v730 = vmax.f32 %v729, 0.0
  %v731 = vadd.f32 %v730, 1e-05
  %v732 = vrsqrt.pop %v731
  %v733 = vmul.f32 %v650, %v732
  %v734 = vmul.f32 %v726, %v733
  %v735 = vsub.f32 %v651, %v734
  %v737 = vlaneseq
  %v738 = vshrl.u32 %v737, 7
  %v739 = vsub.s32 0, %v738
  %v740 = vrot.slane %v733, %v739
  %v742 = vmul.f32 %v572, %v740
  %v743 = vmul.f32 %v577, %v740
  %v744 = vmul.f32 %v582, %v740
  %v745 = vmul.f32 %v587, %v740
  %v746 = vmul.f32 %v592, %v740
  %v747 = vmul.f32 %v597, %v740
  %v748 = vmul.f32 %v602, %v740
  %v749 = vmul.f32 %v607, %v740
  %v750 = vmul.f32 %v612, %v740
  %v751 = vmul.f32 %v617, %v740
  %v752 = vmul.f32 %v622, %v740
  %v753 = vmul.f32 %v627, %v740
  %v754 = vmul.f32 %v632, %v740
  %v755 = vmul.f32 %v637, %v740
  %v756 = vmul.f32 %v642, %v740
  %v757 = vmul.f32 %v647, %v740
  %v759 = vlaneseq
  %v760 = vshrl.u32 %v759, 7
  %v761 = vsub.s32 0, %v760
  %v762 = vrot.slane %v735, %v761
  %v764 = vadd.f32 %v742, %v762
  %v765 = vadd.f32 %v743, %v762
  %v766 = vadd.f32 %v744, %v762
  %v767 = vadd.f32 %v745, %v762
  %v768 = vadd.f32 %v746, %v762
  %v769 = vadd.f32 %v747, %v762
  %v770 = vadd.f32 %v748, %v762
  %v771 = vadd.f32 %v749, %v762
  %v772 = vadd.f32 %v750, %v762
  %v773 = vadd.f32 %v751, %v762
  %v774 = vadd.f32 %v752, %v762
  %v775 = vadd.f32 %v753, %v762
  %v776 = vadd.f32 %v754, %v762
  %v777 = vadd.f32 %v755, %v762
  %v778 = vadd.f32 %v756, %v762
  %v779 = vadd.f32 %v757, %v762
  %v780 = vmax.f32 %v764, 0.0
  %v781 = vmax.f32 %v765, 0.0
  %v782 = vmax.f32 %v766, 0.0
  %v783 = vmax.f32 %v767, 0.0
  %v784 = vmax.f32 %v768, 0.0
  %v785 = vmax.f32 %v769, 0.0
  %v786 = vmax.f32 %v770, 0.0
  %v787 = vmax.f32 %v771, 0.0
  %v788 = vmax.f32 %v772, 0.0
  %v789 = vmax.f32 %v773, 0.0
  %v790 = vmax.f32 %v774, 0.0
  %v791 = vmax.f32 %v775, 0.0
  %v792 = vmax.f32 %v776, 0.0
  %v793 = vmax.f32 %v777, 0.0
  %v794 = vmax.f32 %v778, 0.0
  %v795 = vmax.f32 %v779, 0.0
  %v796 = vmul.f32 %v780, %v156
  %v797 = vmul.f32 %v781, %v157
  %v798 = vmul.f32 %v782, %v158
  %v799 = vmul.f32 %v783, %v159
  %v800 = vmul.f32 %v784, %v160
  %v801 = vmul.f32 %v785, %v161
  %v802 = vmul.f32 %v786, %v162
  %v803 = vmul.f32 %v787, %v163
  %v804 = vmul.f32 %v788, %v164
  %v805 = vmul.f32 %v789, %v165
  %v806 = vmul.f32 %v790, %v166
  %v807 = vmul.f32 %v791, %v167
  %v808 = vmul.f32 %v792, %v168
  %v809 = vmul.f32 %v793, %v169
  %v810 = vmul.f32 %v794, %v170
  %v811 = vmul.f32 %v795, %v171
  %812 = vst [vmem:[#allocation2 + $0x8] sm:$0xff] %v796
  %813 = vst [vmem:[#allocation2 + $0x10] sm:$0xff] %v797
  %814 = vst [vmem:[#allocation2 + $0x18] sm:$0xff] %v798
  %815 = vst [vmem:[#allocation2 + $0x20] sm:$0xff] %v799
  %816 = vst [vmem:[#allocation2 + $0x28] sm:$0xff] %v800
  %817 = vst [vmem:[#allocation2 + $0x30] sm:$0xff] %v801
  %818 = vst [vmem:[#allocation2 + $0x38] sm:$0xff] %v802
  %819 = vst [vmem:[#allocation2 + $0x40] sm:$0xff] %v803
  %820 = vst [vmem:[#allocation2 + $0x48] sm:$0xff] %v804
  %821 = vst [vmem:[#allocation2 + $0x50] sm:$0xff] %v805
  %822 = vst [vmem:[#allocation2 + $0x58] sm:$0xff] %v806
  %823 = vst [vmem:[#allocation2 + $0x60] sm:$0xff] %v807
  %824 = vst [vmem:[#allocation2 + $0x68] sm:$0xff] %v808
  %825 = vst [vmem:[#allocation2 + $0x70] sm:$0xff] %v809
  %826 = vst [vmem:[#allocation2 + $0x78] sm:$0xff] %v810
  %827 = vst [vmem:[#allocation2 + $0x80] sm:$0xff] %v811
  %s828 = scalar_lea.vmem [#allocation2], 8
  %v829 = vld [vmem:[%s828] ss:$2 sm:$0xff]
  %s830 = scalar_lea.vmem [#allocation2], 24
  %v831 = vld [vmem:[%s830] ss:$2 sm:$0xff]
  %s832 = scalar_lea.vmem [#allocation2], 40
  %v833 = vld [vmem:[%s832] ss:$2 sm:$0xff]
  %s834 = scalar_lea.vmem [#allocation2], 56
  %v835 = vld [vmem:[%s834] ss:$2 sm:$0xff]
  %s836 = scalar_lea.vmem [#allocation2], 72
  %v837 = vld [vmem:[%s836] ss:$2 sm:$0xff]
  %s838 = scalar_lea.vmem [#allocation2], 88
  %v839 = vld [vmem:[%s838] ss:$2 sm:$0xff]
  %s840 = scalar_lea.vmem [#allocation2], 104
  %v841 = vld [vmem:[%s840] ss:$2 sm:$0xff]
  %s842 = scalar_lea.vmem [#allocation2], 120
  %v843 = vld [vmem:[%s842] ss:$2 sm:$0xff]
  %s844 = scalar_lea.vmem [#allocation2], 9
  %v845 = vld [vmem:[%s844] ss:$2 sm:$0xff]
  %s846 = scalar_lea.vmem [#allocation2], 25
  %v847 = vld [vmem:[%s846] ss:$2 sm:$0xff]
  %s848 = scalar_lea.vmem [#allocation2], 41
  %v849 = vld [vmem:[%s848] ss:$2 sm:$0xff]
  %s850 = scalar_lea.vmem [#allocation2], 57
  %v851 = vld [vmem:[%s850] ss:$2 sm:$0xff]
  %s852 = scalar_lea.vmem [#allocation2], 73
  %v853 = vld [vmem:[%s852] ss:$2 sm:$0xff]
  %s854 = scalar_lea.vmem [#allocation2], 89
  %v855 = vld [vmem:[%s854] ss:$2 sm:$0xff]
  %s856 = scalar_lea.vmem [#allocation2], 105
  %v857 = vld [vmem:[%s856] ss:$2 sm:$0xff]
  %s858 = scalar_lea.vmem [#allocation2], 121
  %v859 = vld [vmem:[%s858] ss:$2 sm:$0xff]
  %s860 = scalar_lea.vmem [#allocation2], 7
  %v861 = vld [vmem:[%s860] ss:$2 sm:$0xff]
  %s862 = scalar_lea.vmem [#allocation2], 23
  %v863 = vld [vmem:[%s862] ss:$2 sm:$0xff]
  %s864 = scalar_lea.vmem [#allocation2], 39
  %v865 = vld [vmem:[%s864] ss:$2 sm:$0xff]
  %s866 = scalar_lea.vmem [#allocation2], 55
  %v867 = vld [vmem:[%s866] ss:$2 sm:$0xff]
  %s868 = scalar_lea.vmem [#allocation2], 71
  %v869 = vld [vmem:[%s868] ss:$2 sm:$0xff]
  %s870 = scalar_lea.vmem [#allocation2], 87
  %v871 = vld [vmem:[%s870] ss:$2 sm:$0xff]
  %s872 = scalar_lea.vmem [#allocation2], 103
  %v873 = vld [vmem:[%s872] ss:$2 sm:$0xff]
  %s874 = scalar_lea.vmem [#allocation2], 119
  %v875 = vld [vmem:[%s874] ss:$2 sm:$0xff]
  %v876 = vmax.f32 %v829, %v845
  %v877 = vmax.f32 %v831, %v847
  %v878 = vmax.f32 %v833, %v849
  %v879 = vmax.f32 %v835, %v851
  %v880 = vmax.f32 %v837, %v853
  %v881 = vmax.f32 %v839, %v855
  %v882 = vmax.f32 %v841, %v857
  %v883 = vmax.f32 %v843, %v859
  %v884 = vmax.f32 %v876, %v861
  %v885 = vmax.f32 %v877, %v863
  %v886 = vmax.f32 %v878, %v865
  %v887 = vmax.f32 %v879, %v867
  %v888 = vmax.f32 %v880, %v869
  %v889 = vmax.f32 %v881, %v871
  %v890 = vmax.f32 %v882, %v873
  %v891 = vmax.f32 %v883, %v875
  %v892 = vmul.f32 %v884, %v196
  %v893 = vmul.f32 %v885, %v197
  %v894 = vmul.f32 %v886, %v198
  %v895 = vmul.f32 %v887, %v199
  %v896 = vmul.f32 %v888, %v200
  %v897 = vmul.f32 %v889, %v201
  %v898 = vmul.f32 %v890, %v202
  %v899 = vmul.f32 %v891, %v203
  %900 = vst [vmem:[#allocation3 + $0x10] sm:$0xff] %v892
  %901 = vst [vmem:[#allocation3 + $0x20] sm:$0xff] %v893
  %902 = vst [vmem:[#allocation3 + $0x30] sm:$0xff] %v894
  %903 = vst [vmem:[#allocation3 + $0x40] sm:$0xff] %v895
  %904 = vst [vmem:[#allocation3 + $0x50] sm:$0xff] %v896
  %905 = vst [vmem:[#allocation3 + $0x60] sm:$0xff] %v897
  %906 = vst [vmem:[#allocation3 + $0x70] sm:$0xff] %v898
  %907 = vst [vmem:[#allocation3 + $0x80] sm:$0xff] %v899
  %v908 = vld [vmem:[#allocation3] sm:$0x80]
  %v909 = vld [vmem:[#allocation3 + $0x10] sm:$0xff]
  %v910 = vld [vmem:[#allocation3 + $0x20] sm:$0xff]
  %v911 = vld [vmem:[#allocation3 + $0x30] sm:$0xff]
  %v912 = vld [vmem:[#allocation3 + $0x40] sm:$0xff]
  %v913 = vld [vmem:[#allocation3 + $0x50] sm:$0xff]
  %v914 = vld [vmem:[#allocation3 + $0x60] sm:$0xff]
  %v915 = vld [vmem:[#allocation3 + $0x70] sm:$0xff]
  %v916 = vld [vmem:[#allocation3 + $0x80] sm:$0x7f]
  %v917 = vld [vmem:[#allocation3 + $0x80] sm:$0xff]
  %v918 = vld [vmem:[#allocation3 + $0x10] sm:$0xfe]
  %v919 = vld [vmem:[#allocation3 + $0x90] sm:$0x1]
  %v920 = vld [vmem:[%s6] sm:$0xff]
  %v921 = vld [vmem:[%s6 + $0x8] sm:$0xff]
  %v922 = vld [vmem:[%s6 + $0x10] sm:$0xff]
  %v923 = vld [vmem:[%s6 + $0x18] sm:$0xff]
  %v924 = vld [vmem:[%s6 + $0x20] sm:$0xff]
  %v925 = vld [vmem:[%s6 + $0x28] sm:$0xff]
  %v926 = vld [vmem:[%s6 + $0x30] sm:$0xff]
  %v927 = vld [vmem:[%s6 + $0x38] sm:$0xff]
  %v928 = vld [vmem:[%s6 + $0x40] sm:$0xff]
  %v929 = vld [vmem:[%s6 + $0x48] sm:$0xff]
  %v930 = vld [vmem:[%s6 + $0x50] sm:$0xff]
  %v931 = vld [vmem:[%s6 + $0x58] sm:$0xff]
  %v932 = vld [vmem:[%s6 + $0x60] sm:$0xff]
  %v933 = vld [vmem:[%s6 + $0x68] sm:$0xff]
  %v934 = vld [vmem:[%s6 + $0x70] sm:$0xff]
  %v935 = vld [vmem:[%s6 + $0x78] sm:$0xff]
  %v936 = vld [vmem:[%s6 + $0x80] sm:$0xff]
  %v937 = vld [vmem:[%s6 + $0x88] sm:$0xff]
  %v938 = vld [vmem:[%s6 + $0x90] sm:$0xff]
  %v939 = vld [vmem:[%s6 + $0x98] sm:$0xff]
  %v940 = vld [vmem:[%s6 + $0xa0] sm:$0xff]
  %v941 = vld [vmem:[%s6 + $0xa8] sm:$0xff]
  %v942 = vld [vmem:[%s6 + $0xb0] sm:$0xff]
  %v943 = vld [vmem:[%s6 + $0xb8] sm:$0xff]
  %v944 = vld [vmem:[%s6 + $0xc0] sm:$0xff]
  %v945 = vld [vmem:[%s6 + $0xc8] sm:$0xff]
  %v946 = vld [vmem:[%s6 + $0xd0] sm:$0xff]
  %v947 = vld [vmem:[%s6 + $0xd8] sm:$0xff]
  %v948 = vld [vmem:[%s6 + $0xe0] sm:$0xff]
  %v949 = vld [vmem:[%s6 + $0xe8] sm:$0xff]
  %v950 = vld [vmem:[%s6 + $0xf0] sm:$0xff]
  %v951 = vld [vmem:[%s6 + $0xf8] sm:$0xff]
  %952 = vmatprep.subr.mxu0 0.0
  %953 = vmatpush1.msra.mxu0 %v936
  %954 = vmatprep.subr.mxu0 0.0
  %955 = vmatpush1.msra.mxu0 %v937
  %956 = vmatprep.subr.mxu0 0.0
  %957 = vmatpush1.msra.mxu0 %v938
  %958 = vmatprep.subr.mxu0 0.0
  %959 = vmatpush1.msra.mxu0 %v939
  %960 = vmatprep.subr.mxu0 0.0
  %961 = vmatpush1.msra.mxu0 %v940
  %962 = vmatprep.subr.mxu0 0.0
  %963 = vmatpush1.msra.mxu0 %v941
  %964 = vmatprep.subr.mxu0 0.0
  %965 = vmatpush1.msra.mxu0 %v942
  %966 = vmatprep.subr.mxu0 0.0
  %967 = vmatpush1.msra.mxu0 %v943
  %968 = vmatprep.subr.mxu0 0.0
  %969 = vmatpush1.msra.mxu0 %v944
  %970 = vmatprep.subr.mxu0 0.0
  %971 = vmatpush1.msra.mxu0 %v945
  %972 = vmatprep.subr.mxu0 0.0
  %973 = vmatpush1.msra.mxu0 %v946
  %974 = vmatprep.subr.mxu0 0.0
  %975 = vmatpush1.msra.mxu0 %v947
  %976 = vmatprep.subr.mxu0 0.0
  %977 = vmatpush1.msra.mxu0 %v948
  %978 = vmatprep.subr.mxu0 0.0
  %979 = vmatpush1.msra.mxu0 %v949
  %980 = vmatprep.subr.mxu0 0.0
  %981 = vmatpush1.msra.mxu0 %v950
  %982 = vmatprep.subr.mxu0 0.0
  %983 = vmatpush1.msra.mxu0 %v951
  %984 = vmatprep.subr.mxu0 0.0
  %985 = vmatpush1.msra.mxu0 0.0
  %986 = vmatprep.subr.mxu0 0.0
  %987 = vmatpush1.msra.mxu0 0.0
  %988 = vmatprep.subr.mxu0 0.0
  %989 = vmatpush1.msra.mxu0 0.0
  %990 = vmatprep.subr.mxu0 0.0
  %991 = vmatpush1.msra.mxu0 0.0
  %992 = vmatprep.subr.mxu0 0.0
  %993 = vmatpush1.msra.mxu0 0.0
  %994 = vmatprep.subr.mxu0 0.0
  %995 = vmatpush1.msra.mxu0 0.0
  %996 = vmatprep.subr.mxu0 0.0
  %997 = vmatpush1.msra.mxu0 0.0
  %998 = vmatprep.subr.mxu0 0.0
  %999 = vmatpush1.msra.mxu0 0.0
  %1000 = vmatprep.subr.mxu0 0.0
  %1001 = vmatpush1.msra.mxu0 0.0
  %1002 = vmatprep.subr.mxu0 0.0
  %1003 = vmatpush1.msra.mxu0 0.0
  %1004 = vmatprep.subr.mxu0 0.0
  %1005 = vmatpush1.msra.mxu0 0.0
  %1006 = vmatprep.subr.mxu0 0.0
  %1007 = vmatpush1.msra.mxu0 0.0
  %1008 = vmatprep.subr.mxu0 0.0
  %1009 = vmatpush1.msra.mxu0 0.0
  %1010 = vmatprep.subr.mxu0 0.0
  %1011 = vmatpush1.msra.mxu0 0.0
  %1012 = vmatprep.subr.mxu0 0.0
  %1013 = vmatpush1.msra.mxu0 0.0
  %1014 = vmatprep.subr.mxu0 0.0
  %1015 = vmatpush1.msra.mxu0 0.0
  %1016 = vmatprep.mubr.f32.mxu0 0.0
  %1017 = vmatmul.mubr.f32.gmra.mrb[0].mxu0 %v909
  %v1018 = vpop.f32.mrb[0].mxu0
  %v1019 = vadd.f32 0.0, %v1018
  %v1020 = vpop.f32.mrb[0].mxu0
  %1021 = vmatprep.mubr.f32.mxu0 0.0
  %1022 = vmatmul.mubr.f32.gmra.mrb[0].mxu0 %v910
  %v1023 = vpop.f32.mrb[0].mxu0
  %v1024 = vadd.f32 0.0, %v1023
  %v1025 = vpop.f32.mrb[0].mxu0
  %1026 = vmatprep.mubr.f32.mxu0 0.0
  %1027 = vmatmul.mubr.f32.gmra.mrb[0].mxu0 %v911
  %v1028 = vpop.f32.mrb[0].mxu0
  %v1029 = vadd.f32 0.0, %v1028
  %v1030 = vpop.f32.mrb[0].mxu0
  %1031 = vmatprep.mubr.f32.mxu0 0.0
  %1032 = vmatmul.mubr.f32.gmra.mrb[0].mxu0 %v912
  %v1033 = vpop.f32.mrb[0].mxu0
  %v1034 = vadd.f32 0.0, %v1033
  %v1035 = vpop.f32.mrb[0].mxu0
  %1036 = vmatprep.mubr.f32.mxu0 0.0
  %1037 = vmatmul.mubr.f32.gmra.mrb[0].mxu0 %v913
  %v1038 = vpop.f32.mrb[0].mxu0
  %v1039 = vadd.f32 0.0, %v1038
  %v1040 = vpop.f32.mrb[0].mxu0
  %1041 = vmatprep.mubr.f32.mxu0 0.0
  %1042 = vmatmul.mubr.f32.gmra.mrb[0].mxu0 %v914
  %v1043 = vpop.f32.mrb[0].mxu0
  %v1044 = vadd.f32 0.0, %v1043
  %v1045 = vpop.f32.mrb[0].mxu0
  %1046 = vmatprep.mubr.f32.mxu0 0.0
  %1047 = vmatmul.mubr.f32.gmra.mrb[0].mxu0 %v915
  %v1048 = vpop.f32.mrb[0].mxu0
  %v1049 = vadd.f32 0.0, %v1048
  %v1050 = vpop.f32.mrb[0].mxu0
  %1051 = vmatprep.mubr.f32.mxu0 0.0
  %1052 = vmatmul.mubr.f32.gmra.mrb[0].mxu0 %v917
  %v1053 = vpop.f32.mrb[0].mxu0
  %v1054 = vadd.f32 0.0, %v1053
  %v1055 = vpop.f32.mrb[0].mxu0
  %1056 = vdwg.mxu0
  %vm1066 = vcmask 1040384
  %v1067 = vrot.slane %v908, 7
  %v1068 = vrot.slane %v909, 7
  %v1069 = vsel %vm1066, %v1067, %v1068
  %v1070 = vrot.slane %v910, 7
  %v1071 = vsel %vm1066, %v1068, %v1070
  %v1072 = vrot.slane %v911, 7
  %v1073 = vsel %vm1066, %v1070, %v1072
  %v1074 = vrot.slane %v912, 7
  %v1075 = vsel %vm1066, %v1072, %v1074
  %v1076 = vrot.slane %v913, 7
  %v1077 = vsel %vm1066, %v1074, %v1076
  %v1078 = vrot.slane %v914, 7
  %v1079 = vsel %vm1066, %v1076, %v1078
  %v1080 = vrot.slane %v915, 7
  %v1081 = vsel %vm1066, %v1078, %v1080
  %v1082 = vrot.slane %v916, 7
  %v1083 = vsel %vm1066, %v1080, %v1082
  %1092 = vmatprep.subr.mxu0 0.0
  %1093 = vmatpush1.msra.mxu0 %v920
  %1094 = vmatprep.subr.mxu0 0.0
  %1095 = vmatpush1.msra.mxu0 %v921
  %1096 = vmatprep.subr.mxu0 0.0
  %1097 = vmatpush1.msra.mxu0 %v922
  %1098 = vmatprep.subr.mxu0 0.0
  %1099 = vmatpush1.msra.mxu0 %v923
  %1100 = vmatprep.subr.mxu0 0.0
  %1101 = vmatpush1.msra.mxu0 %v924
  %1102 = vmatprep.subr.mxu0 0.0
  %1103 = vmatpush1.msra.mxu0 %v925
  %1104 = vmatprep.subr.mxu0 0.0
  %1105 = vmatpush1.msra.mxu0 %v926
  %1106 = vmatprep.subr.mxu0 0.0
  %1107 = vmatpush1.msra.mxu0 %v927
  %1108 = vmatprep.subr.mxu0 0.0
  %1109 = vmatpush1.msra.mxu0 %v928
  %1110 = vmatprep.subr.mxu0 0.0
  %1111 = vmatpush1.msra.mxu0 %v929
  %1112 = vmatprep.subr.mxu0 0.0
  %1113 = vmatpush1.msra.mxu0 %v930
  %1114 = vmatprep.subr.mxu0 0.0
  %1115 = vmatpush1.msra.mxu0 %v931
  %1116 = vmatprep.subr.mxu0 0.0
  %1117 = vmatpush1.msra.mxu0 %v932
  %1118 = vmatprep.subr.mxu0 0.0
  %1119 = vmatpush1.msra.mxu0 %v933
  %1120 = vmatprep.subr.mxu0 0.0
  %1121 = vmatpush1.msra.mxu0 %v934
  %1122 = vmatprep.subr.mxu0 0.0
  %1123 = vmatpush1.msra.mxu0 %v935
  %1124 = vmatprep.subr.mxu0 0.0
  %1125 = vmatpush1.msra.mxu0 0.0
  %1126 = vmatprep.subr.mxu0 0.0
  %1127 = vmatpush1.msra.mxu0 0.0
  %1128 = vmatprep.subr.mxu0 0.0
  %1129 = vmatpush1.msra.mxu0 0.0
  %1130 = vmatprep.subr.mxu0 0.0
  %1131 = vmatpush1.msra.mxu0 0.0
  %1132 = vmatprep.subr.mxu0 0.0
  %1133 = vmatpush1.msra.mxu0 0.0
  %1134 = vmatprep.subr.mxu0 0.0
  %1135 = vmatpush1.msra.mxu0 0.0
  %1136 = vmatprep.subr.mxu0 0.0
  %1137 = vmatpush1.msra.mxu0 0.0
  %1138 = vmatprep.subr.mxu0 0.0
  %1139 = vmatpush1.msra.mxu0 0.0
  %1140 = vmatprep.subr.mxu0 0.0
  %1141 = vmatpush1.msra.mxu0 0.0
  %1142 = vmatprep.subr.mxu0 0.0
  %1143 = vmatpush1.msra.mxu0 0.0
  %1144 = vmatprep.subr.mxu0 0.0
  %1145 = vmatpush1.msra.mxu0 0.0
  %1146 = vmatprep.subr.mxu0 0.0
  %1147 = vmatpush1.msra.mxu0 0.0
  %1148 = vmatprep.subr.mxu0 0.0
  %1149 = vmatpush1.msra.mxu0 0.0
  %1150 = vmatprep.subr.mxu0 0.0
  %1151 = vmatpush1.msra.mxu0 0.0
  %1152 = vmatprep.subr.mxu0 0.0
  %1153 = vmatpush1.msra.mxu0 0.0
  %1154 = vmatprep.subr.mxu0 0.0
  %1155 = vmatpush1.msra.mxu0 0.0
  %1156 = vmatprep.mubr.f32.mxu0 0.0
  %1157 = vmatmul.mubr.f32.gmra.mrb[0].mxu0 %v1069
  %v1158 = vpop.f32.mrb[0].mxu0
  %v1159 = vadd.f32 %v1019, %v1158
  %v1160 = vpop.f32.mrb[0].mxu0
  %1161 = vmatprep.mubr.f32.mxu0 0.0
  %1162 = vmatmul.mubr.f32.gmra.mrb[0].mxu0 %v1071
  %v1163 = vpop.f32.mrb[0].mxu0
  %v1164 = vadd.f32 %v1024, %v1163
  %v1165 = vpop.f32.mrb[0].mxu0
  %1166 = vmatprep.mubr.f32.mxu0 0.0
  %1167 = vmatmul.mubr.f32.gmra.mrb[0].mxu0 %v1073
  %v1168 = vpop.f32.mrb[0].mxu0
  %v1169 = vadd.f32 %v1029, %v1168
  %v1170 = vpop.f32.mrb[0].mxu0
  %1171 = vmatprep.mubr.f32.mxu0 0.0
  %1172 = vmatmul.mubr.f32.gmra.mrb[0].mxu0 %v1075
  %v1173 = vpop.f32.mrb[0].mxu0
  %v1174 = vadd.f32 %v1034, %v1173
  %v1175 = vpop.f32.mrb[0].mxu0
  %1176 = vmatprep.mubr.f32.mxu0 0.0
  %1177 = vmatmul.mubr.f32.gmra.mrb[0].mxu0 %v1077
  %v1178 = vpop.f32.mrb[0].mxu0
  %v1179 = vadd.f32 %v1039, %v1178
  %v1180 = vpop.f32.mrb[0].mxu0
  %1181 = vmatprep.mubr.f32.mxu0 0.0
  %1182 = vmatmul.mubr.f32.gmra.mrb[0].mxu0 %v1079
  %v1183 = vpop.f32.mrb[0].mxu0
  %v1184 = vadd.f32 %v1044, %v1183
  %v1185 = vpop.f32.mrb[0].mxu0
  %1186 = vmatprep.mubr.f32.mxu0 0.0
  %1187 = vmatmul.mubr.f32.gmra.mrb[0].mxu0 %v1081
  %v1188 = vpop.f32.mrb[0].mxu0
  %v1189 = vadd.f32 %v1049, %v1188
  %v1190 = vpop.f32.mrb[0].mxu0
  %1191 = vmatprep.mubr.f32.mxu0 0.0
  %1192 = vmatmul.mubr.f32.gmra.mrb[0].mxu0 %v1083
  %v1193 = vpop.f32.mrb[0].mxu0
  %v1194 = vadd.f32 %v1054, %v1193
  %v1195 = vpop.f32.mrb[0].mxu0
  %1196 = vdwg.mxu0
  %v1197 = vld [vmem:[%s6 + $0x100] sm:$0xff]
  %v1198 = vld [vmem:[%s6 + $0x108] sm:$0xff]
  %v1199 = vld [vmem:[%s6 + $0x110] sm:$0xff]
  %v1200 = vld [vmem:[%s6 + $0x118] sm:$0xff]
  %v1201 = vld [vmem:[%s6 + $0x120] sm:$0xff]
  %v1202 = vld [vmem:[%s6 + $0x128] sm:$0xff]
  %v1203 = vld [vmem:[%s6 + $0x130] sm:$0xff]
  %v1204 = vld [vmem:[%s6 + $0x138] sm:$0xff]
  %v1205 = vld [vmem:[%s6 + $0x140] sm:$0xff]
  %v1206 = vld [vmem:[%s6 + $0x148] sm:$0xff]
  %v1207 = vld [vmem:[%s6 + $0x150] sm:$0xff]
  %v1208 = vld [vmem:[%s6 + $0x158] sm:$0xff]
  %v1209 = vld [vmem:[%s6 + $0x160] sm:$0xff]
  %v1210 = vld [vmem:[%s6 + $0x168] sm:$0xff]
  %v1211 = vld [vmem:[%s6 + $0x170] sm:$0xff]
  %v1212 = vld [vmem:[%s6 + $0x178] sm:$0xff]
  %vm1216 = vcmask 1046528
  %v1217 = vrot.slane %v918, 1
  %v1218 = vrot.slane %v910, 1
  %v1219 = vsel %vm1216, %v1217, %v1218
  %v1220 = vrot.slane %v911, 1
  %v1221 = vsel %vm1216, %v1218, %v1220
  %v1222 = vrot.slane %v912, 1
  %v1223 = vsel %vm1216, %v1220, %v1222
  %v1224 = vrot.slane %v913, 1
  %v1225 = vsel %vm1216, %v1222, %v1224
  %v1226 = vrot.slane %v914, 1
  %v1227 = vsel %vm1216, %v1224, %v1226
  %v1228 = vrot.slane %v915, 1
  %v1229 = vsel %vm1216, %v1226, %v1228
  %v1230 = vrot.slane %v917, 1
  %v1231 = vsel %vm1216, %v1228, %v1230
  %v1232 = vrot.slane %v919, 1
  %v1233 = vsel %vm1216, %v1230, %v1232
  %1242 = vmatprep.subr.mxu0 0.0
  %1243 = vmatpush1.msra.mxu0 %v1197
  %1244 = vmatprep.subr.mxu0 0.0
  %1245 = vmatpush1.msra.mxu0 %v1198
  %1246 = vmatprep.subr.mxu0 0.0
  %1247 = vmatpush1.msra.mxu0 %v1199
  %1248 = vmatprep.subr.mxu0 0.0
  %1249 = vmatpush1.msra.mxu0 %v1200
  %1250 = vmatprep.subr.mxu0 0.0
  %1251 = vmatpush1.msra.mxu0 %v1201
  %1252 = vmatprep.subr.mxu0 0.0
  %1253 = vmatpush1.msra.mxu0 %v1202
  %1254 = vmatprep.subr.mxu0 0.0
  %1255 = vmatpush1.msra.mxu0 %v1203
  %1256 = vmatprep.subr.mxu0 0.0
  %1257 = vmatpush1.msra.mxu0 %v1204
  %1258 = vmatprep.subr.mxu0 0.0
  %1259 = vmatpush1.msra.mxu0 %v1205
  %1260 = vmatprep.subr.mxu0 0.0
  %1261 = vmatpush1.msra.mxu0 %v1206
  %1262 = vmatprep.subr.mxu0 0.0
  %1263 = vmatpush1.msra.mxu0 %v1207
  %1264 = vmatprep.subr.mxu0 0.0
  %1265 = vmatpush1.msra.mxu0 %v1208
  %1266 = vmatprep.subr.mxu0 0.0
  %1267 = vmatpush1.msra.mxu0 %v1209
  %1268 = vmatprep.subr.mxu0 0.0
  %1269 = vmatpush1.msra.mxu0 %v1210
  %1270 = vmatprep.subr.mxu0 0.0
  %1271 = vmatpush1.msra.mxu0 %v1211
  %1272 = vmatprep.subr.mxu0 0.0
  %1273 = vmatpush1.msra.mxu0 %v1212
  %1274 = vmatprep.subr.mxu0 0.0
  %1275 = vmatpush1.msra.mxu0 0.0
  %1276 = vmatprep.subr.mxu0 0.0
  %1277 = vmatpush1.msra.mxu0 0.0
  %1278 = vmatprep.subr.mxu0 0.0
  %1279 = vmatpush1.msra.mxu0 0.0
  %1280 = vmatprep.subr.mxu0 0.0
  %1281 = vmatpush1.msra.mxu0 0.0
  %1282 = vmatprep.subr.mxu0 0.0
  %1283 = vmatpush1.msra.mxu0 0.0
  %1284 = vmatprep.subr.mxu0 0.0
  %1285 = vmatpush1.msra.mxu0 0.0
  %1286 = vmatprep.subr.mxu0 0.0
  %1287 = vmatpush1.msra.mxu0 0.0
  %1288 = vmatprep.subr.mxu0 0.0
  %1289 = vmatpush1.msra.mxu0 0.0
  %1290 = vmatprep.subr.mxu0 0.0
  %1291 = vmatpush1.msra.mxu0 0.0
  %1292 = vmatprep.subr.mxu0 0.0
  %1293 = vmatpush1.msra.mxu0 0.0
  %1294 = vmatprep.subr.mxu0 0.0
  %1295 = vmatpush1.msra.mxu0 0.0
  %1296 = vmatprep.subr.mxu0 0.0
  %1297 = vmatpush1.msra.mxu0 0.0
  %1298 = vmatprep.subr.mxu0 0.0
  %1299 = vmatpush1.msra.mxu0 0.0
  %1300 = vmatprep.subr.mxu0 0.0
  %1301 = vmatpush1.msra.mxu0 0.0
  %1302 = vmatprep.subr.mxu0 0.0
  %1303 = vmatpush1.msra.mxu0 0.0
  %1304 = vmatprep.subr.mxu0 0.0
  %1305 = vmatpush1.msra.mxu0 0.0
  %1306 = vmatprep.mubr.f32.mxu0 0.0
  %1307 = vmatmul.mubr.f32.gmra.mrb[0].mxu0 %v1219
  %v1308 = vpop.f32.mrb[0].mxu0
  %v1309 = vadd.f32 0.0, %v1308
  %v1310 = vpop.f32.mrb[0].mxu0
  %1311 = vmatprep.mubr.f32.mxu0 0.0
  %1312 = vmatmul.mubr.f32.gmra.mrb[0].mxu0 %v1221
  %v1313 = vpop.f32.mrb[0].mxu0
  %v1314 = vadd.f32 0.0, %v1313
  %v1315 = vpop.f32.mrb[0].mxu0
  %1316 = vmatprep.mubr.f32.mxu0 0.0
  %1317 = vmatmul.mubr.f32.gmra.mrb[0].mxu0 %v1223
  %v1318 = vpop.f32.mrb[0].mxu0
  %v1319 = vadd.f32 0.0, %v1318
  %v1320 = vpop.f32.mrb[0].mxu0
  %1321 = vmatprep.mubr.f32.mxu0 0.0
  %1322 = vmatmul.mubr.f32.gmra.mrb[0].mxu0 %v1225
  %v1323 = vpop.f32.mrb[0].mxu0
  %v1324 = vadd.f32 0.0, %v1323
  %v1325 = vpop.f32.mrb[0].mxu0
  %1326 = vmatprep.mubr.f32.mxu0 0.0
  %1327 = vmatmul.mubr.f32.gmra.mrb[0].mxu0 %v1227
  %v1328 = vpop.f32.mrb[0].mxu0
  %v1329 = vadd.f32 0.0, %v1328
  %v1330 = vpop.f32.mrb[0].mxu0
  %1331 = vmatprep.mubr.f32.mxu0 0.0
  %1332 = vmatmul.mubr.f32.gmra.mrb[0].mxu0 %v1229
  %v1333 = vpop.f32.mrb[0].mxu0
  %v1334 = vadd.f32 0.0, %v1333
  %v1335 = vpop.f32.mrb[0].mxu0
  %1336 = vmatprep.mubr.f32.mxu0 0.0
  %1337 = vmatmul.mubr.f32.gmra.mrb[0].mxu0 %v1231
  %v1338 = vpop.f32.mrb[0].mxu0
  %v1339 = vadd.f32 0.0, %v1338
  %v1340 = vpop.f32.mrb[0].mxu0
  %1341 = vmatprep.mubr.f32.mxu0 0.0
  %1342 = vmatmul.mubr.f32.gmra.mrb[0].mxu0 %v1233
  %v1343 = vpop.f32.mrb[0].mxu0
  %v1344 = vadd.f32 0.0, %v1343
  %v1345 = vpop.f32.mrb[0].mxu0
  %1346 = vdwg.mxu0
  %v1347 = vadd.f32 %v1159, %v1309
  %v1348 = vadd.f32 %v1164, %v1314
  %v1349 = vadd.f32 %v1169, %v1319
  %v1350 = vadd.f32 %v1174, %v1324
  %v1351 = vadd.f32 %v1179, %v1329
  %v1352 = vadd.f32 %v1184, %v1334
  %v1353 = vadd.f32 %v1189, %v1339
  %v1354 = vadd.f32 %v1194, %v1344
  %v1355 = vld [vmem:[%s7] sm:$0x1]
  %v1357 = vlaneseq
  %v1358 = vshrl.u32 %v1357, 7
  %v1359 = vsub.s32 0, %v1358
  %v1360 = vrot.slane %v1355, %v1359
  %v1362 = vadd.f32 %v1347, %v1360
  %v1363 = vadd.f32 %v1348, %v1360
  %v1364 = vadd.f32 %v1349, %v1360
  %v1365 = vadd.f32 %v1350, %v1360
  %v1366 = vadd.f32 %v1351, %v1360
  %v1367 = vadd.f32 %v1352, %v1360
  %v1368 = vadd.f32 %v1353, %v1360
  %v1369 = vadd.f32 %v1354, %v1360
  %v1370 = vld [vmem:[%s8] sm:$0x1]
  %v1371 = vld [vmem:[%s9] sm:$0x1]
  %v1372 = vmul.f32 %v1362, %v196
  %v1373 = vmul.f32 %v1363, %v197
  %v1374 = vmul.f32 %v1364, %v198
  %v1375 = vmul.f32 %v1365, %v199
  %v1376 = vmul.f32 %v1366, %v200
  %v1377 = vmul.f32 %v1367, %v201
  %v1378 = vmul.f32 %v1368, %v202
  %v1379 = vmul.f32 %v1369, %v203
  %v1380 = vadd.f32 %v1372, %v1373
  %v1381 = vadd.f32 %v1380, %v1374
  %v1382 = vadd.f32 %v1381, %v1375
  %v1383 = vadd.f32 %v1382, %v1376
  %v1384 = vadd.f32 %v1383, %v1377
  %v1385 = vadd.f32 %v1384, %v1378
  %v1386 = vadd.f32 %v1385, %v1379
  %v1387 = vrot.slane %v1386, 4
  %v1388 = vadd.f32 %v1386, %v1387
  %v1389 = vrot.slane %v1388, 2
  %v1390 = vadd.f32 %v1388, %v1389
  %v1391 = vrot.slane %v1390, 1
  %v1392 = vadd.f32 %v1390, %v1391
  %v1393 = vmul.f32 %v1372, %v1372
  %v1394 = vmul.f32 %v1373, %v1373
  %v1395 = vmul.f32 %v1374, %v1374
  %v1396 = vmul.f32 %v1375, %v1375
  %v1397 = vmul.f32 %v1376, %v1376
  %v1398 = vmul.f32 %v1377, %v1377
  %v1399 = vmul.f32 %v1378, %v1378
  %v1400 = vmul.f32 %v1379, %v1379
  %v1401 = vadd.f32 %v1393, %v1394
  %v1402 = vadd.f32 %v1401, %v1395
  %v1403 = vadd.f32 %v1402, %v1396
  %v1404 = vadd.f32 %v1403, %v1397
  %v1405 = vadd.f32 %v1404, %v1398
  %v1406 = vadd.f32 %v1405, %v1399
  %v1407 = vadd.f32 %v1406, %v1400
  %v1408 = vrot.slane %v1407, 4
  %v1409 = vadd.f32 %v1407, %v1408
  %v1410 = vrot.slane %v1409, 2
  %v1411 = vadd.f32 %v1409, %v1410
  %v1412 = vrot.slane %v1411, 1
  %v1413 = vadd.f32 %v1411, %v1412
  %v1414 = vmul.f32 %v1392, 0.016666668
  %v1415 = vmul.f32 %v1413, 0.016666668
  %v1416 = vmul.f32 %v1414, %v1414
  %v1417 = vsub.f32 %v1415, %v1416
  %v1418 = vmax.f32 %v1417, 0.0
  %v1419 = vadd.f32 %v1418, 1e-05
  %v1420 = vrsqrt.pop %v1419
  %v1421 = vmul.f32 %v1370, %v1420
  %v1422 = vmul.f32 %v1414, %v1421
  %v1423 = vsub.f32 %v1371, %v1422
  %v1425 = vlaneseq
  %v1426 = vshrl.u32 %v1425, 7
  %v1427 = vsub.s32 0, %v1426
  %v1428 = vrot.slane %v1421, %v1427
  %v1430 = vmul.f32 %v1362, %v1428
  %v1431 = vmul.f32 %v1363, %v1428
  %v1432 = vmul.f32 %v1364, %v1428
  %v1433 = vmul.f32 %v1365, %v1428
  %v1434 = vmul.f32 %v1366, %v1428
  %v1435 = vmul.f32 %v1367, %v1428
  %v1436 = vmul.f32 %v1368, %v1428
  %v1437 = vmul.f32 %v1369, %v1428
  %v1439 = vlaneseq
  %v1440 = vshrl.u32 %v1439, 7
  %v1441 = vsub.s32 0, %v1440
  %v1442 = vrot.slane %v1423, %v1441
  %v1444 = vadd.f32 %v1430, %v1442
  %v1445 = vadd.f32 %v1431, %v1442
  %v1446 = vadd.f32 %v1432, %v1442
  %v1447 = vadd.f32 %v1433, %v1442
  %v1448 = vadd.f32 %v1434, %v1442
  %v1449 = vadd.f32 %v1435, %v1442
  %v1450 = vadd.f32 %v1436, %v1442
  %v1451 = vadd.f32 %v1437, %v1442
  %v1452 = vmax.f32 %v1444, 0.0
  %v1453 = vmax.f32 %v1445, 0.0
  %v1454 = vmax.f32 %v1446, 0.0
  %v1455 = vmax.f32 %v1447, 0.0
  %v1456 = vmax.f32 %v1448, 0.0
  %v1457 = vmax.f32 %v1449, 0.0
  %v1458 = vmax.f32 %v1450, 0.0
  %v1459 = vmax.f32 %v1451, 0.0
  %v1460 = vmul.f32 %v1452, %v196
  %v1461 = vmul.f32 %v1453, %v197
  %v1462 = vmul.f32 %v1454, %v198
  %v1463 = vmul.f32 %v1455, %v199
  %v1464 = vmul.f32 %v1456, %v200
  %v1465 = vmul.f32 %v1457, %v201
  %v1466 = vmul.f32 %v1458, %v202
  %v1467 = vmul.f32 %v1459, %v203
  %1468 = vst [vmem:[#allocation3 + $0x10] sm:$0xff] %v1460
  %1469 = vst [vmem:[#allocation3 + $0x20] sm:$0xff] %v1461
  %1470 = vst [vmem:[#allocation3 + $0x30] sm:$0xff] %v1462
  %1471 = vst [vmem:[#allocation3 + $0x40] sm:$0xff] %v1463
  %1472 = vst [vmem:[#allocation3 + $0x50] sm:$0xff] %v1464
  %1473 = vst [vmem:[#allocation3 + $0x60] sm:$0xff] %v1465
  %1474 = vst [vmem:[#allocation3 + $0x70] sm:$0xff] %v1466
  %1475 = vst [vmem:[#allocation3 + $0x80] sm:$0xff] %v1467
  %v1476 = vld [vmem:[#allocation3] sm:$0x80]
  %v1477 = vld [vmem:[#allocation3 + $0x10] sm:$0xff]
  %v1478 = vld [vmem:[#allocation3 + $0x20] sm:$0xff]
  %v1479 = vld [vmem:[#allocation3 + $0x30] sm:$0xff]
  %v1480 = vld [vmem:[#allocation3 + $0x40] sm:$0xff]
  %v1481 = vld [vmem:[#allocation3 + $0x50] sm:$0xff]
  %v1482 = vld [vmem:[#allocation3 + $0x60] sm:$0xff]
  %v1483 = vld [vmem:[#allocation3 + $0x70] sm:$0xff]
  %v1484 = vld [vmem:[#allocation3 + $0x80] sm:$0x7f]
  %v1485 = vld [vmem:[#allocation3 + $0x80] sm:$0xff]
  %v1486 = vld [vmem:[#allocation3 + $0x10] sm:$0xfe]
  %v1487 = vld [vmem:[#allocation3 + $0x90] sm:$0x1]
  %v1488 = vld [vmem:[%s10] sm:$0xff]
  %v1489 = vld [vmem:[%s10 + $0x8] sm:$0xff]
  %v1490 = vld [vmem:[%s10 + $0x10] sm:$0xff]
  %v1491 = vld [vmem:[%s10 + $0x18] sm:$0xff]
  %v1492 = vld [vmem:[%s10 + $0x20] sm:$0xff]
  %v1493 = vld [vmem:[%s10 + $0x28] sm:$0xff]
  %v1494 = vld [vmem:[%s10 + $0x30] sm:$0xff]
  %v1495 = vld [vmem:[%s10 + $0x38] sm:$0xff]
  %v1496 = vld [vmem:[%s10 + $0x40] sm:$0xff]
  %v1497 = vld [vmem:[%s10 + $0x48] sm:$0xff]
  %v1498 = vld [vmem:[%s10 + $0x50] sm:$0xff]
  %v1499 = vld [vmem:[%s10 + $0x58] sm:$0xff]
  %v1500 = vld [vmem:[%s10 + $0x60] sm:$0xff]
  %v1501 = vld [vmem:[%s10 + $0x68] sm:$0xff]
  %v1502 = vld [vmem:[%s10 + $0x70] sm:$0xff]
  %v1503 = vld [vmem:[%s10 + $0x78] sm:$0xff]
  %v1504 = vld [vmem:[%s10 + $0x80] sm:$0xff]
  %v1505 = vld [vmem:[%s10 + $0x88] sm:$0xff]
  %v1506 = vld [vmem:[%s10 + $0x90] sm:$0xff]
  %v1507 = vld [vmem:[%s10 + $0x98] sm:$0xff]
  %v1508 = vld [vmem:[%s10 + $0xa0] sm:$0xff]
  %v1509 = vld [vmem:[%s10 + $0xa8] sm:$0xff]
  %v1510 = vld [vmem:[%s10 + $0xb0] sm:$0xff]
  %v1511 = vld [vmem:[%s10 + $0xb8] sm:$0xff]
  %v1512 = vld [vmem:[%s10 + $0xc0] sm:$0xff]
  %v1513 = vld [vmem:[%s10 + $0xc8] sm:$0xff]
  %v1514 = vld [vmem:[%s10 + $0xd0] sm:$0xff]
  %v1515 = vld [vmem:[%s10 + $0xd8] sm:$0xff]
  %v1516 = vld [vmem:[%s10 + $0xe0] sm:$0xff]
  %v1517 = vld [vmem:[%s10 + $0xe8] sm:$0xff]
  %v1518 = vld [vmem:[%s10 + $0xf0] sm:$0xff]
  %v1519 = vld [vmem:[%s10 + $0xf8] sm:$0xff]
  %1520 = vmatprep.subr.mxu0 0.0
  %1521 = vmatpush1.msra.mxu0 %v1504
  %1522 = vmatprep.subr.mxu0 0.0
  %1523 = vmatpush1.msra.mxu0 %v1505
  %1524 = vmatprep.subr.mxu0 0.0
  %1525 = vmatpush1.msra.mxu0 %v1506
  %1526 = vmatprep.subr.mxu0 0.0
  %1527 = vmatpush1.msra.mxu0 %v1507
  %1528 = vmatprep.subr.mxu0 0.0
  %1529 = vmatpush1.msra.mxu0 %v1508
  %1530 = vmatprep.subr.mxu0 0.0
  %1531 = vmatpush1.msra.mxu0 %v1509
  %1532 = vmatprep.subr.mxu0 0.0
  %1533 = vmatpush1.msra.mxu0 %v1510
  %1534 = vmatprep.subr.mxu0 0.0
  %1535 = vmatpush1.msra.mxu0 %v1511
  %1536 = vmatprep.subr.mxu0 0.0
  %1537 = vmatpush1.msra.mxu0 %v1512
  %1538 = vmatprep.subr.mxu0 0.0
  %1539 = vmatpush1.msra.mxu0 %v1513
  %1540 = vmatprep.subr.mxu0 0.0
  %1541 = vmatpush1.msra.mxu0 %v1514
  %1542 = vmatprep.subr.mxu0 0.0
  %1543 = vmatpush1.msra.mxu0 %v1515
  %1544 = vmatprep.subr.mxu0 0.0
  %1545 = vmatpush1.msra.mxu0 %v1516
  %1546 = vmatprep.subr.mxu0 0.0
  %1547 = vmatpush1.msra.mxu0 %v1517
  %1548 = vmatprep.subr.mxu0 0.0
  %1549 = vmatpush1.msra.mxu0 %v1518
  %1550 = vmatprep.subr.mxu0 0.0
  %1551 = vmatpush1.msra.mxu0 %v1519
  %1552 = vmatprep.subr.mxu0 0.0
  %1553 = vmatpush1.msra.mxu0 0.0
  %1554 = vmatprep.subr.mxu0 0.0
  %1555 = vmatpush1.msra.mxu0 0.0
  %1556 = vmatprep.subr.mxu0 0.0
  %1557 = vmatpush1.msra.mxu0 0.0
  %1558 = vmatprep.subr.mxu0 0.0
  %1559 = vmatpush1.msra.mxu0 0.0
  %1560 = vmatprep.subr.mxu0 0.0
  %1561 = vmatpush1.msra.mxu0 0.0
  %1562 = vmatprep.subr.mxu0 0.0
  %1563 = vmatpush1.msra.mxu0 0.0
  %1564 = vmatprep.subr.mxu0 0.0
  %1565 = vmatpush1.msra.mxu0 0.0
  %1566 = vmatprep.subr.mxu0 0.0
  %1567 = vmatpush1.msra.mxu0 0.0
  %1568 = vmatprep.subr.mxu0 0.0
  %1569 = vmatpush1.msra.mxu0 0.0
  %1570 = vmatprep.subr.mxu0 0.0
  %1571 = vmatpush1.msra.mxu0 0.0
  %1572 = vmatprep.subr.mxu0 0.0
  %1573 = vmatpush1.msra.mxu0 0.0
  %1574 = vmatprep.subr.mxu0 0.0
  %1575 = vmatpush1.msra.mxu0 0.0
  %1576 = vmatprep.subr.mxu0 0.0
  %1577 = vmatpush1.msra.mxu0 0.0
  %1578 = vmatprep.subr.mxu0 0.0
  %1579 = vmatpush1.msra.mxu0 0.0
  %1580 = vmatprep.subr.mxu0 0.0
  %1581 = vmatpush1.msra.mxu0 0.0
  %1582 = vmatprep.subr.mxu0 0.0
  %1583 = vmatpush1.msra.mxu0 0.0
  %1584 = vmatprep.mubr.f32.mxu0 0.0
  %1585 = vmatmul.mubr.f32.gmra.mrb[0].mxu0 %v1477
  %v1586 = vpop.f32.mrb[0].mxu0
  %v1587 = vadd.f32 0.0, %v1586
  %v1588 = vpop.f32.mrb[0].mxu0
  %1589 = vmatprep.mubr.f32.mxu0 0.0
  %1590 = vmatmul.mubr.f32.gmra.mrb[0].mxu0 %v1478
  %v1591 = vpop.f32.mrb[0].mxu0
  %v1592 = vadd.f32 0.0, %v1591
  %v1593 = vpop.f32.mrb[0].mxu0
  %1594 = vmatprep.mubr.f32.mxu0 0.0
  %1595 = vmatmul.mubr.f32.gmra.mrb[0].mxu0 %v1479
  %v1596 = vpop.f32.mrb[0].mxu0
  %v1597 = vadd.f32 0.0, %v1596
  %v1598 = vpop.f32.mrb[0].mxu0
  %1599 = vmatprep.mubr.f32.mxu0 0.0
  %1600 = vmatmul.mubr.f32.gmra.mrb[0].mxu0 %v1480
  %v1601 = vpop.f32.mrb[0].mxu0
  %v1602 = vadd.f32 0.0, %v1601
  %v1603 = vpop.f32.mrb[0].mxu0
  %1604 = vmatprep.mubr.f32.mxu0 0.0
  %1605 = vmatmul.mubr.f32.gmra.mrb[0].mxu0 %v1481
  %v1606 = vpop.f32.mrb[0].mxu0
  %v1607 = vadd.f32 0.0, %v1606
  %v1608 = vpop.f32.mrb[0].mxu0
  %1609 = vmatprep.mubr.f32.mxu0 0.0
  %1610 = vmatmul.mubr.f32.gmra.mrb[0].mxu0 %v1482
  %v1611 = vpop.f32.mrb[0].mxu0
  %v1612 = vadd.f32 0.0, %v1611
  %v1613 = vpop.f32.mrb[0].mxu0
  %1614 = vmatprep.mubr.f32.mxu0 0.0
  %1615 = vmatmul.mubr.f32.gmra.mrb[0].mxu0 %v1483
  %v1616 = vpop.f32.mrb[0].mxu0
  %v1617 = vadd.f32 0.0, %v1616
  %v1618 = vpop.f32.mrb[0].mxu0
  %1619 = vmatprep.mubr.f32.mxu0 0.0
  %1620 = vmatmul.mubr.f32.gmra.mrb[0].mxu0 %v1485
  %v1621 = vpop.f32.mrb[0].mxu0
  %v1622 = vadd.f32 0.0, %v1621
  %v1623 = vpop.f32.mrb[0].mxu0
  %1624 = vdwg.mxu0
  %v1634 = vrot.slane %v1476, 7
  %v1635 = vrot.slane %v1477, 7
  %v1636 = vsel %vm1066, %v1634, %v1635
  %v1637 = vrot.slane %v1478, 7
  %v1638 = vsel %vm1066, %v1635, %v1637
  %v1639 = vrot.slane %v1479, 7
  %v1640 = vsel %vm1066, %v1637, %v1639
  %v1641 = vrot.slane %v1480, 7
  %v1642 = vsel %vm1066, %v1639, %v1641
  %v1643 = vrot.slane %v1481, 7
  %v1644 = vsel %vm1066, %v1641, %v1643
  %v1645 = vrot.slane %v1482, 7
  %v1646 = vsel %vm1066, %v1643, %v1645
  %v1647 = vrot.slane %v1483, 7
  %v1648 = vsel %vm1066, %v1645, %v1647
  %v1649 = vrot.slane %v1484, 7
  %v1650 = vsel %vm1066, %v1647, %v1649
  %1659 = vmatprep.subr.mxu0 0.0
  %1660 = vmatpush1.msra.mxu0 %v1488
  %1661 = vmatprep.subr.mxu0 0.0
  %1662 = vmatpush1.msra.mxu0 %v1489
  %1663 = vmatprep.subr.mxu0 0.0
  %1664 = vmatpush1.msra.mxu0 %v1490
  %1665 = vmatprep.subr.mxu0 0.0
  %1666 = vmatpush1.msra.mxu0 %v1491
  %1667 = vmatprep.subr.mxu0 0.0
  %1668 = vmatpush1.msra.mxu0 %v1492
  %1669 = vmatprep.subr.mxu0 0.0
  %1670 = vmatpush1.msra.mxu0 %v1493
  %1671 = vmatprep.subr.mxu0 0.0
  %1672 = vmatpush1.msra.mxu0 %v1494
  %1673 = vmatprep.subr.mxu0 0.0
  %1674 = vmatpush1.msra.mxu0 %v1495
  %1675 = vmatprep.subr.mxu0 0.0
  %1676 = vmatpush1.msra.mxu0 %v1496
  %1677 = vmatprep.subr.mxu0 0.0
  %1678 = vmatpush1.msra.mxu0 %v1497
  %1679 = vmatprep.subr.mxu0 0.0
  %1680 = vmatpush1.msra.mxu0 %v1498
  %1681 = vmatprep.subr.mxu0 0.0
  %1682 = vmatpush1.msra.mxu0 %v1499
  %1683 = vmatprep.subr.mxu0 0.0
  %1684 = vmatpush1.msra.mxu0 %v1500
  %1685 = vmatprep.subr.mxu0 0.0
  %1686 = vmatpush1.msra.mxu0 %v1501
  %1687 = vmatprep.subr.mxu0 0.0
  %1688 = vmatpush1.msra.mxu0 %v1502
  %1689 = vmatprep.subr.mxu0 0.0
  %1690 = vmatpush1.msra.mxu0 %v1503
  %1691 = vmatprep.subr.mxu0 0.0
  %1692 = vmatpush1.msra.mxu0 0.0
  %1693 = vmatprep.subr.mxu0 0.0
  %1694 = vmatpush1.msra.mxu0 0.0
  %1695 = vmatprep.subr.mxu0 0.0
  %1696 = vmatpush1.msra.mxu0 0.0
  %1697 = vmatprep.subr.mxu0 0.0
  %1698 = vmatpush1.msra.mxu0 0.0
  %1699 = vmatprep.subr.mxu0 0.0
  %1700 = vmatpush1.msra.mxu0 0.0
  %1701 = vmatprep.subr.mxu0 0.0
  %1702 = vmatpush1.msra.mxu0 0.0
  %1703 = vmatprep.subr.mxu0 0.0
  %1704 = vmatpush1.msra.mxu0 0.0
  %1705 = vmatprep.subr.mxu0 0.0
  %1706 = vmatpush1.msra.mxu0 0.0
  %1707 = vmatprep.subr.mxu0 0.0
  %1708 = vmatpush1.msra.mxu0 0.0
  %1709 = vmatprep.subr.mxu0 0.0
  %1710 = vmatpush1.msra.mxu0 0.0
  %1711 = vmatprep.subr.mxu0 0.0
  %1712 = vmatpush1.msra.mxu0 0.0
  %1713 = vmatprep.subr.mxu0 0.0
  %1714 = vmatpush1.msra.mxu0 0.0
  %1715 = vmatprep.subr.mxu0 0.0
  %1716 = vmatpush1.msra.mxu0 0.0
  %1717 = vmatprep.subr.mxu0 0.0
  %1718 = vmatpush1.msra.mxu0 0.0
  %1719 = vmatprep.subr.mxu0 0.0
  %1720 = vmatpush1.msra.mxu0 0.0
  %1721 = vmatprep.subr.mxu0 0.0
  %1722 = vmatpush1.msra.mxu0 0.0
  %1723 = vmatprep.mubr.f32.mxu0 0.0
  %1724 = vmatmul.mubr.f32.gmra.mrb[0].mxu0 %v1636
  %v1725 = vpop.f32.mrb[0].mxu0
  %v1726 = vadd.f32 %v1587, %v1725
  %v1727 = vpop.f32.mrb[0].mxu0
  %1728 = vmatprep.mubr.f32.mxu0 0.0
  %1729 = vmatmul.mubr.f32.gmra.mrb[0].mxu0 %v1638
  %v1730 = vpop.f32.mrb[0].mxu0
  %v1731 = vadd.f32 %v1592, %v1730
  %v1732 = vpop.f32.mrb[0].mxu0
  %1733 = vmatprep.mubr.f32.mxu0 0.0
  %1734 = vmatmul.mubr.f32.gmra.mrb[0].mxu0 %v1640
  %v1735 = vpop.f32.mrb[0].mxu0
  %v1736 = vadd.f32 %v1597, %v1735
  %v1737 = vpop.f32.mrb[0].mxu0
  %1738 = vmatprep.mubr.f32.mxu0 0.0
  %1739 = vmatmul.mubr.f32.gmra.mrb[0].mxu0 %v1642
  %v1740 = vpop.f32.mrb[0].mxu0
  %v1741 = vadd.f32 %v1602, %v1740
  %v1742 = vpop.f32.mrb[0].mxu0
  %1743 = vmatprep.mubr.f32.mxu0 0.0
  %1744 = vmatmul.mubr.f32.gmra.mrb[0].mxu0 %v1644
  %v1745 = vpop.f32.mrb[0].mxu0
  %v1746 = vadd.f32 %v1607, %v1745
  %v1747 = vpop.f32.mrb[0].mxu0
  %1748 = vmatprep.mubr.f32.mxu0 0.0
  %1749 = vmatmul.mubr.f32.gmra.mrb[0].mxu0 %v1646
  %v1750 = vpop.f32.mrb[0].mxu0
  %v1751 = vadd.f32 %v1612, %v1750
  %v1752 = vpop.f32.mrb[0].mxu0
  %1753 = vmatprep.mubr.f32.mxu0 0.0
  %1754 = vmatmul.mubr.f32.gmra.mrb[0].mxu0 %v1648
  %v1755 = vpop.f32.mrb[0].mxu0
  %v1756 = vadd.f32 %v1617, %v1755
  %v1757 = vpop.f32.mrb[0].mxu0
  %1758 = vmatprep.mubr.f32.mxu0 0.0
  %1759 = vmatmul.mubr.f32.gmra.mrb[0].mxu0 %v1650
  %v1760 = vpop.f32.mrb[0].mxu0
  %v1761 = vadd.f32 %v1622, %v1760
  %v1762 = vpop.f32.mrb[0].mxu0
  %1763 = vdwg.mxu0
  %v1764 = vld [vmem:[%s10 + $0x100] sm:$0xff]
  %v1765 = vld [vmem:[%s10 + $0x108] sm:$0xff]
  %v1766 = vld [vmem:[%s10 + $0x110] sm:$0xff]
  %v1767 = vld [vmem:[%s10 + $0x118] sm:$0xff]
  %v1768 = vld [vmem:[%s10 + $0x120] sm:$0xff]
  %v1769 = vld [vmem:[%s10 + $0x128] sm:$0xff]
  %v1770 = vld [vmem:[%s10 + $0x130] sm:$0xff]
  %v1771 = vld [vmem:[%s10 + $0x138] sm:$0xff]
  %v1772 = vld [vmem:[%s10 + $0x140] sm:$0xff]
  %v1773 = vld [vmem:[%s10 + $0x148] sm:$0xff]
  %v1774 = vld [vmem:[%s10 + $0x150] sm:$0xff]
  %v1775 = vld [vmem:[%s10 + $0x158] sm:$0xff]
  %v1776 = vld [vmem:[%s10 + $0x160] sm:$0xff]
  %v1777 = vld [vmem:[%s10 + $0x168] sm:$0xff]
  %v1778 = vld [vmem:[%s10 + $0x170] sm:$0xff]
  %v1779 = vld [vmem:[%s10 + $0x178] sm:$0xff]
  %v1783 = vrot.slane %v1486, 1
  %v1784 = vrot.slane %v1478, 1
  %v1785 = vsel %vm1216, %v1783, %v1784
  %v1786 = vrot.slane %v1479, 1
  %v1787 = vsel %vm1216, %v1784, %v1786
  %v1788 = vrot.slane %v1480, 1
  %v1789 = vsel %vm1216, %v1786, %v1788
  %v1790 = vrot.slane %v1481, 1
  %v1791 = vsel %vm1216, %v1788, %v1790
  %v1792 = vrot.slane %v1482, 1
  %v1793 = vsel %vm1216, %v1790, %v1792
  %v1794 = vrot.slane %v1483, 1
  %v1795 = vsel %vm1216, %v1792, %v1794
  %v1796 = vrot.slane %v1485, 1
  %v1797 = vsel %vm1216, %v1794, %v1796
  %v1798 = vrot.slane %v1487, 1
  %v1799 = vsel %vm1216, %v1796, %v1798
  %1808 = vmatprep.subr.mxu0 0.0
  %1809 = vmatpush1.msra.mxu0 %v1764
  %1810 = vmatprep.subr.mxu0 0.0
  %1811 = vmatpush1.msra.mxu0 %v1765
  %1812 = vmatprep.subr.mxu0 0.0
  %1813 = vmatpush1.msra.mxu0 %v1766
  %1814 = vmatprep.subr.mxu0 0.0
  %1815 = vmatpush1.msra.mxu0 %v1767
  %1816 = vmatprep.subr.mxu0 0.0
  %1817 = vmatpush1.msra.mxu0 %v1768
  %1818 = vmatprep.subr.mxu0 0.0
  %1819 = vmatpush1.msra.mxu0 %v1769
  %1820 = vmatprep.subr.mxu0 0.0
  %1821 = vmatpush1.msra.mxu0 %v1770
  %1822 = vmatprep.subr.mxu0 0.0
  %1823 = vmatpush1.msra.mxu0 %v1771
  %1824 = vmatprep.subr.mxu0 0.0
  %1825 = vmatpush1.msra.mxu0 %v1772
  %1826 = vmatprep.subr.mxu0 0.0
  %1827 = vmatpush1.msra.mxu0 %v1773
  %1828 = vmatprep.subr.mxu0 0.0
  %1829 = vmatpush1.msra.mxu0 %v1774
  %1830 = vmatprep.subr.mxu0 0.0
  %1831 = vmatpush1.msra.mxu0 %v1775
  %1832 = vmatprep.subr.mxu0 0.0
  %1833 = vmatpush1.msra.mxu0 %v1776
  %1834 = vmatprep.subr.mxu0 0.0
  %1835 = vmatpush1.msra.mxu0 %v1777
  %1836 = vmatprep.subr.mxu0 0.0
  %1837 = vmatpush1.msra.mxu0 %v1778
  %1838 = vmatprep.subr.mxu0 0.0
  %1839 = vmatpush1.msra.mxu0 %v1779
  %1840 = vmatprep.subr.mxu0 0.0
  %1841 = vmatpush1.msra.mxu0 0.0
  %1842 = vmatprep.subr.mxu0 0.0
  %1843 = vmatpush1.msra.mxu0 0.0
  %1844 = vmatprep.subr.mxu0 0.0
  %1845 = vmatpush1.msra.mxu0 0.0
  %1846 = vmatprep.subr.mxu0 0.0
  %1847 = vmatpush1.msra.mxu0 0.0
  %1848 = vmatprep.subr.mxu0 0.0
  %1849 = vmatpush1.msra.mxu0 0.0
  %1850 = vmatprep.subr.mxu0 0.0
  %1851 = vmatpush1.msra.mxu0 0.0
  %1852 = vmatprep.subr.mxu0 0.0
  %1853 = vmatpush1.msra.mxu0 0.0
  %1854 = vmatprep.subr.mxu0 0.0
  %1855 = vmatpush1.msra.mxu0 0.0
  %1856 = vmatprep.subr.mxu0 0.0
  %1857 = vmatpush1.msra.mxu0 0.0
  %1858 = vmatprep.subr.mxu0 0.0
  %1859 = vmatpush1.msra.mxu0 0.0
  %1860 = vmatprep.subr.mxu0 0.0
  %1861 = vmatpush1.msra.mxu0 0.0
  %1862 = vmatprep.subr.mxu0 0.0
  %1863 = vmatpush1.msra.mxu0 0.0
  %1864 = vmatprep.subr.mxu0 0.0
  %1865 = vmatpush1.msra.mxu0 0.0
  %1866 = vmatprep.subr.mxu0 0.0
  %1867 = vmatpush1.msra.mxu0 0.0
  %1868 = vmatprep.subr.mxu0 0.0
  %1869 = vmatpush1.msra.mxu0 0.0
  %1870 = vmatprep.subr.mxu0 0.0
  %1871 = vmatpush1.msra.mxu0 0.0
  %1872 = vmatprep.mubr.f32.mxu0 0.0
  %1873 = vmatmul.mubr.f32.gmra.mrb[0].mxu0 %v1785
  %v1874 = vpop.f32.mrb[0].mxu0
  %v1875 = vadd.f32 0.0, %v1874
  %v1876 = vpop.f32.mrb[0].mxu0
  %1877 = vmatprep.mubr.f32.mxu0 0.0
  %1878 = vmatmul.mubr.f32.gmra.mrb[0].mxu0 %v1787
  %v1879 = vpop.f32.mrb[0].mxu0
  %v1880 = vadd.f32 0.0, %v1879
  %v1881 = vpop.f32.mrb[0].mxu0
  %1882 = vmatprep.mubr.f32.mxu0 0.0
  %1883 = vmatmul.mubr.f32.gmra.mrb[0].mxu0 %v1789
  %v1884 = vpop.f32.mrb[0].mxu0
  %v1885 = vadd.f32 0.0, %v1884
  %v1886 = vpop.f32.mrb[0].mxu0
  %1887 = vmatprep.mubr.f32.mxu0 0.0
  %1888 = vmatmul.mubr.f32.gmra.mrb[0].mxu0 %v1791
  %v1889 = vpop.f32.mrb[0].mxu0
  %v1890 = vadd.f32 0.0, %v1889
  %v1891 = vpop.f32.mrb[0].mxu0
  %1892 = vmatprep.mubr.f32.mxu0 0.0
  %1893 = vmatmul.mubr.f32.gmra.mrb[0].mxu0 %v1793
  %v1894 = vpop.f32.mrb[0].mxu0
  %v1895 = vadd.f32 0.0, %v1894
  %v1896 = vpop.f32.mrb[0].mxu0
  %1897 = vmatprep.mubr.f32.mxu0 0.0
  %1898 = vmatmul.mubr.f32.gmra.mrb[0].mxu0 %v1795
  %v1899 = vpop.f32.mrb[0].mxu0
  %v1900 = vadd.f32 0.0, %v1899
  %v1901 = vpop.f32.mrb[0].mxu0
  %1902 = vmatprep.mubr.f32.mxu0 0.0
  %1903 = vmatmul.mubr.f32.gmra.mrb[0].mxu0 %v1797
  %v1904 = vpop.f32.mrb[0].mxu0
  %v1905 = vadd.f32 0.0, %v1904
  %v1906 = vpop.f32.mrb[0].mxu0
  %1907 = vmatprep.mubr.f32.mxu0 0.0
  %1908 = vmatmul.mubr.f32.gmra.mrb[0].mxu0 %v1799
  %v1909 = vpop.f32.mrb[0].mxu0
  %v1910 = vadd.f32 0.0, %v1909
  %v1911 = vpop.f32.mrb[0].mxu0
  %1912 = vdwg.mxu0
  %v1913 = vadd.f32 %v1726, %v1875
  %v1914 = vadd.f32 %v1731, %v1880
  %v1915 = vadd.f32 %v1736, %v1885
  %v1916 = vadd.f32 %v1741, %v1890
  %v1917 = vadd.f32 %v1746, %v1895
  %v1918 = vadd.f32 %v1751, %v1900
  %v1919 = vadd.f32 %v1756, %v1905
  %v1920 = vadd.f32 %v1761, %v1910
  %v1921 = vld [vmem:[%s11] sm:$0x1]
  %v1923 = vlaneseq
  %v1924 = vshrl.u32 %v1923, 7
  %v1925 = vsub.s32 0, %v1924
  %v1926 = vrot.slane %v1921, %v1925
  %v1928 = vadd.f32 %v1913, %v1926
  %v1929 = vadd.f32 %v1914, %v1926
  %v1930 = vadd.f32 %v1915, %v1926
  %v1931 = vadd.f32 %v1916, %v1926
  %v1932 = vadd.f32 %v1917, %v1926
  %v1933 = vadd.f32 %v1918, %v1926
  %v1934 = vadd.f32 %v1919, %v1926
  %v1935 = vadd.f32 %v1920, %v1926
  %v1936 = vld [vmem:[%s12] sm:$0x1]
  %v1937 = vld [vmem:[%s13] sm:$0x1]
  %v1938 = vmul.f32 %v1928, %v196
  %v1939 = vmul.f32 %v1929, %v197
  %v1940 = vmul.f32 %v1930, %v198
  %v1941 = vmul.f32 %v1931, %v199
  %v1942 = vmul.f32 %v1932, %v200
  %v1943 = vmul.f32 %v1933, %v201
  %v1944 = vmul.f32 %v1934, %v202
  %v1945 = vmul.f32 %v1935, %v203
  %v1946 = vadd.f32 %v1938, %v1939
  %v1947 = vadd.f32 %v1946, %v1940
  %v1948 = vadd.f32 %v1947, %v1941
  %v1949 = vadd.f32 %v1948, %v1942
  %v1950 = vadd.f32 %v1949, %v1943
  %v1951 = vadd.f32 %v1950, %v1944
  %v1952 = vadd.f32 %v1951, %v1945
  %v1953 = vrot.slane %v1952, 4
  %v1954 = vadd.f32 %v1952, %v1953
  %v1955 = vrot.slane %v1954, 2
  %v1956 = vadd.f32 %v1954, %v1955
  %v1957 = vrot.slane %v1956, 1
  %v1958 = vadd.f32 %v1956, %v1957
  %v1959 = vmul.f32 %v1938, %v1938
  %v1960 = vmul.f32 %v1939, %v1939
  %v1961 = vmul.f32 %v1940, %v1940
  %v1962 = vmul.f32 %v1941, %v1941
  %v1963 = vmul.f32 %v1942, %v1942
  %v1964 = vmul.f32 %v1943, %v1943
  %v1965 = vmul.f32 %v1944, %v1944
  %v1966 = vmul.f32 %v1945, %v1945
  %v1967 = vadd.f32 %v1959, %v1960
  %v1968 = vadd.f32 %v1967, %v1961
  %v1969 = vadd.f32 %v1968, %v1962
  %v1970 = vadd.f32 %v1969, %v1963
  %v1971 = vadd.f32 %v1970, %v1964
  %v1972 = vadd.f32 %v1971, %v1965
  %v1973 = vadd.f32 %v1972, %v1966
  %v1974 = vrot.slane %v1973, 4
  %v1975 = vadd.f32 %v1973, %v1974
  %v1976 = vrot.slane %v1975, 2
  %v1977 = vadd.f32 %v1975, %v1976
  %v1978 = vrot.slane %v1977, 1
  %v1979 = vadd.f32 %v1977, %v1978
  %v1980 = vmul.f32 %v1958, 0.016666668
  %v1981 = vmul.f32 %v1979, 0.016666668
  %v1982 = vmul.f32 %v1980, %v1980
  %v1983 = vsub.f32 %v1981, %v1982
  %v1984 = vmax.f32 %v1983, 0.0
  %v1985 = vadd.f32 %v1984, 1e-05
  %v1986 = vrsqrt.pop %v1985
  %v1987 = vmul.f32 %v1936, %v1986
  %v1988 = vmul.f32 %v1980, %v1987
  %v1989 = vsub.f32 %v1937, %v1988
  %v1991 = vlaneseq
  %v1992 = vshrl.u32 %v1991, 7
  %v1993 = vsub.s32 0, %v1992
  %v1994 = vrot.slane %v1987, %v1993
  %v1996 = vmul.f32 %v1928, %v1994
  %v1997 = vmul.f32 %v1929, %v1994
  %v1998 = vmul.f32 %v1930, %v1994
  %v1999 = vmul.f32 %v1931, %v1994
  %v2000 = vmul.f32 %v1932, %v1994
  %v2001 = vmul.f32 %v1933, %v1994
  %v2002 = vmul.f32 %v1934, %v1994
  %v2003 = vmul.f32 %v1935, %v1994
  %v2005 = vlaneseq
  %v2006 = vshrl.u32 %v2005, 7
  %v2007 = vsub.s32 0, %v2006
  %v2008 = vrot.slane %v1989, %v2007
  %v2010 = vadd.f32 %v1996, %v2008
  %v2011 = vadd.f32 %v1997, %v2008
  %v2012 = vadd.f32 %v1998, %v2008
  %v2013 = vadd.f32 %v1999, %v2008
  %v2014 = vadd.f32 %v2000, %v2008
  %v2015 = vadd.f32 %v2001, %v2008
  %v2016 = vadd.f32 %v2002, %v2008
  %v2017 = vadd.f32 %v2003, %v2008
  %v2018 = vmul.f32 %v2010, %v196
  %v2019 = vmul.f32 %v2011, %v197
  %v2020 = vmul.f32 %v2012, %v198
  %v2021 = vmul.f32 %v2013, %v199
  %v2022 = vmul.f32 %v2014, %v200
  %v2023 = vmul.f32 %v2015, %v201
  %v2024 = vmul.f32 %v2016, %v202
  %v2025 = vmul.f32 %v2017, %v203
  %2026 = vst [vmem:[#allocation3 + $0x10] sm:$0xff] %v892
  %2027 = vst [vmem:[#allocation3 + $0x20] sm:$0xff] %v893
  %2028 = vst [vmem:[#allocation3 + $0x30] sm:$0xff] %v894
  %2029 = vst [vmem:[#allocation3 + $0x40] sm:$0xff] %v895
  %2030 = vst [vmem:[#allocation3 + $0x50] sm:$0xff] %v896
  %2031 = vst [vmem:[#allocation3 + $0x60] sm:$0xff] %v897
  %2032 = vst [vmem:[#allocation3 + $0x70] sm:$0xff] %v898
  %2033 = vst [vmem:[#allocation3 + $0x80] sm:$0xff] %v899
  %2034 = vst [vmem:[#allocation3 + $0x18] sm:$0xff] %v2018
  %2035 = vst [vmem:[#allocation3 + $0x28] sm:$0xff] %v2019
  %2036 = vst [vmem:[#allocation3 + $0x38] sm:$0xff] %v2020
  %2037 = vst [vmem:[#allocation3 + $0x48] sm:$0xff] %v2021
  %2038 = vst [vmem:[#allocation3 + $0x58] sm:$0xff] %v2022
  %2039 = vst [vmem:[#allocation3 + $0x68] sm:$0xff] %v2023
  %2040 = vst [vmem:[#allocation3 + $0x78] sm:$0xff] %v2024
  %2041 = vst [vmem:[#allocation3 + $0x88] sm:$0xff] %v2025
  %v2042 = vld [vmem:[#allocation3] sm:$0x80]
  %v2043 = vld [vmem:[#allocation3 + $0x8] sm:$0x80]
  %v2044 = vld [vmem:[#allocation3 + $0x10] sm:$0xff]
  %v2045 = vld [vmem:[#allocation3 + $0x18] sm:$0xff]
  %v2046 = vld [vmem:[#allocation3 + $0x20] sm:$0xff]
  %v2047 = vld [vmem:[#allocation3 + $0x28] sm:$0xff]
  %v2048 = vld [vmem:[#allocation3 + $0x30] sm:$0xff]
  %v2049 = vld [vmem:[#allocation3 + $0x38] sm:$0xff]
  %v2050 = vld [vmem:[#allocation3 + $0x40] sm:$0xff]
  %v2051 = vld [vmem:[#allocation3 + $0x48] sm:$0xff]
  %v2052 = vld [vmem:[#allocation3 + $0x50] sm:$0xff]
  %v2053 = vld [vmem:[#allocation3 + $0x58] sm:$0xff]
  %v2054 = vld [vmem:[#allocation3 + $0x60] sm:$0xff]
  %v2055 = vld [vmem:[#allocation3 + $0x68] sm:$0xff]
  %v2056 = vld [vmem:[#allocation3 + $0x70] sm:$0xff]
  %v2057 = vld [vmem:[#allocation3 + $0x78] sm:$0xff]
  %v2058 = vld [vmem:[#allocation3 + $0x80] sm:$0x7f]
  %v2059 = vld [vmem:[#allocation3 + $0x88] sm:$0x7f]
  %v2060 = vld [vmem:[#allocation3 + $0x80] sm:$0xff]
  %v2061 = vld [vmem:[#allocation3 + $0x88] sm:$0xff]
  %v2062 = vld [vmem:[#allocation3 + $0x10] sm:$0xfe]
  %v2063 = vld [vmem:[#allocation3 + $0x18] sm:$0xfe]
  %v2064 = vld [vmem:[#allocation3 + $0x20] sm:$0xff]
  %v2065 = vld [vmem:[#allocation3 + $0x28] sm:$0xff]
  %v2066 = vld [vmem:[#allocation3 + $0x30] sm:$0xff]
  %v2067 = vld [vmem:[#allocation3 + $0x38] sm:$0xff]
  %v2068 = vld [vmem:[#allocation3 + $0x40] sm:$0xff]
  %v2069 = vld [vmem:[#allocation3 + $0x48] sm:$0xff]
  %v2070 = vld [vmem:[#allocation3 + $0x50] sm:$0xff]
  %v2071 = vld [vmem:[#allocation3 + $0x58] sm:$0xff]
  %v2072 = vld [vmem:[#allocation3 + $0x60] sm:$0xff]
  %v2073 = vld [vmem:[#allocation3 + $0x68] sm:$0xff]
  %v2074 = vld [vmem:[#allocation3 + $0x70] sm:$0xff]
  %v2075 = vld [vmem:[#allocation3 + $0x78] sm:$0xff]
  %v2076 = vld [vmem:[#allocation3 + $0x80] sm:$0xff]
  %v2077 = vld [vmem:[#allocation3 + $0x88] sm:$0xff]
  %v2078 = vld [vmem:[#allocation3 + $0x90] sm:$0x1]
  %v2079 = vld [vmem:[#allocation3 + $0x98] sm:$0x1]
  %v2080 = vld [vmem:[%s14] sm:$0xff]
  %v2081 = vld [vmem:[%s14 + $0x8] sm:$0xff]
  %v2082 = vld [vmem:[%s14 + $0x10] sm:$0xff]
  %v2083 = vld [vmem:[%s14 + $0x18] sm:$0xff]
  %v2084 = vld [vmem:[%s14 + $0x20] sm:$0xff]
  %v2085 = vld [vmem:[%s14 + $0x28] sm:$0xff]
  %v2086 = vld [vmem:[%s14 + $0x30] sm:$0xff]
  %v2087 = vld [vmem:[%s14 + $0x38] sm:$0xff]
  %v2088 = vld [vmem:[%s14 + $0x40] sm:$0xff]
  %v2089 = vld [vmem:[%s14 + $0x48] sm:$0xff]
  %v2090 = vld [vmem:[%s14 + $0x50] sm:$0xff]
  %v2091 = vld [vmem:[%s14 + $0x58] sm:$0xff]
  %v2092 = vld [vmem:[%s14 + $0x60] sm:$0xff]
  %v2093 = vld [vmem:[%s14 + $0x68] sm:$0xff]
  %v2094 = vld [vmem:[%s14 + $0x70] sm:$0xff]
  %v2095 = vld [vmem:[%s14 + $0x78] sm:$0xff]
  %v2096 = vld [vmem:[%s14 + $0x80] sm:$0xff]
  %v2097 = vld [vmem:[%s14 + $0x88] sm:$0xff]
  %v2098 = vld [vmem:[%s14 + $0x90] sm:$0xff]
  %v2099 = vld [vmem:[%s14 + $0x98] sm:$0xff]
  %v2100 = vld [vmem:[%s14 + $0xa0] sm:$0xff]
  %v2101 = vld [vmem:[%s14 + $0xa8] sm:$0xff]
  %v2102 = vld [vmem:[%s14 + $0xb0] sm:$0xff]
  %v2103 = vld [vmem:[%s14 + $0xb8] sm:$0xff]
  %v2104 = vld [vmem:[%s14 + $0xc0] sm:$0xff]
  %v2105 = vld [vmem:[%s14 + $0xc8] sm:$0xff]
  %v2106 = vld [vmem:[%s14 + $0xd0] sm:$0xff]
  %v2107 = vld [vmem:[%s14 + $0xd8] sm:$0xff]
  %v2108 = vld [vmem:[%s14 + $0xe0] sm:$0xff]
  %v2109 = vld [vmem:[%s14 + $0xe8] sm:$0xff]
  %v2110 = vld [vmem:[%s14 + $0xf0] sm:$0xff]
  %v2111 = vld [vmem:[%s14 + $0xf8] sm:$0xff]
  %v2112 = vld [vmem:[%s14 + $0x100] sm:$0xff]
  %v2113 = vld [vmem:[%s14 + $0x108] sm:$0xff]
  %v2114 = vld [vmem:[%s14 + $0x110] sm:$0xff]
  %v2115 = vld [vmem:[%s14 + $0x118] sm:$0xff]
  %v2116 = vld [vmem:[%s14 + $0x120] sm:$0xff]
  %v2117 = vld [vmem:[%s14 + $0x128] sm:$0xff]
  %v2118 = vld [vmem:[%s14 + $0x130] sm:$0xff]
  %v2119 = vld [vmem:[%s14 + $0x138] sm:$0xff]
  %v2120 = vld [vmem:[%s14 + $0x140] sm:$0xff]
  %v2121 = vld [vmem:[%s14 + $0x148] sm:$0xff]
  %v2122 = vld [vmem:[%s14 + $0x150] sm:$0xff]
  %v2123 = vld [vmem:[%s14 + $0x158] sm:$0xff]
  %v2124 = vld [vmem:[%s14 + $0x160] sm:$0xff]
  %v2125 = vld [vmem:[%s14 + $0x168] sm:$0xff]
  %v2126 = vld [vmem:[%s14 + $0x170] sm:$0xff]
  %v2127 = vld [vmem:[%s14 + $0x178] sm:$0xff]
  %v2128 = vld [vmem:[%s14 + $0x180] sm:$0xff]
  %v2129 = vld [vmem:[%s14 + $0x188] sm:$0xff]
  %v2130 = vld [vmem:[%s14 + $0x190] sm:$0xff]
  %v2131 = vld [vmem:[%s14 + $0x198] sm:$0xff]
  %v2132 = vld [vmem:[%s14 + $0x1a0] sm:$0xff]
  %v2133 = vld [vmem:[%s14 + $0x1a8] sm:$0xff]
  %v2134 = vld [vmem:[%s14 + $0x1b0] sm:$0xff]
  %v2135 = vld [vmem:[%s14 + $0x1b8] sm:$0xff]
  %v2136 = vld [vmem:[%s14 + $0x1c0] sm:$0xff]
  %v2137 = vld [vmem:[%s14 + $0x1c8] sm:$0xff]
  %v2138 = vld [vmem:[%s14 + $0x1d0] sm:$0xff]
  %v2139 = vld [vmem:[%s14 + $0x1d8] sm:$0xff]
  %v2140 = vld [vmem:[%s14 + $0x1e0] sm:$0xff]
  %v2141 = vld [vmem:[%s14 + $0x1e8] sm:$0xff]
  %v2142 = vld [vmem:[%s14 + $0x1f0] sm:$0xff]
  %v2143 = vld [vmem:[%s14 + $0x1f8] sm:$0xff]
  %2144 = vmatprep.subr.mxu0 0.0
  %2145 = vmatpush1.msra.mxu0 %v2112
  %2146 = vmatprep.subr.mxu0 0.0
  %2147 = vmatpush1.msra.mxu0 %v2113
  %2148 = vmatprep.subr.mxu0 0.0
  %2149 = vmatpush1.msra.mxu0 %v2114
  %2150 = vmatprep.subr.mxu0 0.0
  %2151 = vmatpush1.msra.mxu0 %v2115
  %2152 = vmatprep.subr.mxu0 0.0
  %2153 = vmatpush1.msra.mxu0 %v2116
  %2154 = vmatprep.subr.mxu0 0.0
  %2155 = vmatpush1.msra.mxu0 %v2117
  %2156 = vmatprep.subr.mxu0 0.0
  %2157 = vmatpush1.msra.mxu0 %v2118
  %2158 = vmatprep.subr.mxu0 0.0
  %2159 = vmatpush1.msra.mxu0 %v2119
  %2160 = vmatprep.subr.mxu0 0.0
  %2161 = vmatpush1.msra.mxu0 %v2120
  %2162 = vmatprep.subr.mxu0 0.0
  %2163 = vmatpush1.msra.mxu0 %v2121
  %2164 = vmatprep.subr.mxu0 0.0
  %2165 = vmatpush1.msra.mxu0 %v2122
  %2166 = vmatprep.subr.mxu0 0.0
  %2167 = vmatpush1.msra.mxu0 %v2123
  %2168 = vmatprep.subr.mxu0 0.0
  %2169 = vmatpush1.msra.mxu0 %v2124
  %2170 = vmatprep.subr.mxu0 0.0
  %2171 = vmatpush1.msra.mxu0 %v2125
  %2172 = vmatprep.subr.mxu0 0.0
  %2173 = vmatpush1.msra.mxu0 %v2126
  %2174 = vmatprep.subr.mxu0 0.0
  %2175 = vmatpush1.msra.mxu0 %v2127
  %2176 = vmatprep.subr.mxu0 0.0
  %2177 = vmatpush1.msra.mxu0 %v2128
  %2178 = vmatprep.subr.mxu0 0.0
  %2179 = vmatpush1.msra.mxu0 %v2129
  %2180 = vmatprep.subr.mxu0 0.0
  %2181 = vmatpush1.msra.mxu0 %v2130
  %2182 = vmatprep.subr.mxu0 0.0
  %2183 = vmatpush1.msra.mxu0 %v2131
  %2184 = vmatprep.subr.mxu0 0.0
  %2185 = vmatpush1.msra.mxu0 %v2132
  %2186 = vmatprep.subr.mxu0 0.0
  %2187 = vmatpush1.msra.mxu0 %v2133
  %2188 = vmatprep.subr.mxu0 0.0
  %2189 = vmatpush1.msra.mxu0 %v2134
  %2190 = vmatprep.subr.mxu0 0.0
  %2191 = vmatpush1.msra.mxu0 %v2135
  %2192 = vmatprep.subr.mxu0 0.0
  %2193 = vmatpush1.msra.mxu0 %v2136
  %2194 = vmatprep.subr.mxu0 0.0
  %2195 = vmatpush1.msra.mxu0 %v2137
  %2196 = vmatprep.subr.mxu0 0.0
  %2197 = vmatpush1.msra.mxu0 %v2138
  %2198 = vmatprep.subr.mxu0 0.0
  %2199 = vmatpush1.msra.mxu0 %v2139
  %2200 = vmatprep.subr.mxu0 0.0
  %2201 = vmatpush1.msra.mxu0 %v2140
  %2202 = vmatprep.subr.mxu0 0.0
  %2203 = vmatpush1.msra.mxu0 %v2141
  %2204 = vmatprep.subr.mxu0 0.0
  %2205 = vmatpush1.msra.mxu0 %v2142
  %2206 = vmatprep.subr.mxu0 0.0
  %2207 = vmatpush1.msra.mxu0 %v2143
  %2208 = vmatprep.mubr.f32.mxu0 %v2045
  %2209 = vmatmul.mubr.f32.gmra.mrb[0].mxu0 %v2044
  %v2210 = vpop.f32.mrb[0].mxu0
  %v2211 = vadd.f32 0.0, %v2210
  %v2212 = vpop.f32.mrb[0].mxu0
  %2213 = vmatprep.mubr.f32.mxu0 %v2047
  %2214 = vmatmul.mubr.f32.gmra.mrb[0].mxu0 %v2046
  %v2215 = vpop.f32.mrb[0].mxu0
  %v2216 = vadd.f32 0.0, %v2215
  %v2217 = vpop.f32.mrb[0].mxu0
  %2218 = vmatprep.mubr.f32.mxu0 %v2049
  %2219 = vmatmul.mubr.f32.gmra.mrb[0].mxu0 %v2048
  %v2220 = vpop.f32.mrb[0].mxu0
  %v2221 = vadd.f32 0.0, %v2220
  %v2222 = vpop.f32.mrb[0].mxu0
  %2223 = vmatprep.mubr.f32.mxu0 %v2051
  %2224 = vmatmul.mubr.f32.gmra.mrb[0].mxu0 %v2050
  %v2225 = vpop.f32.mrb[0].mxu0
  %v2226 = vadd.f32 0.0, %v2225
  %v2227 = vpop.f32.mrb[0].mxu0
  %2228 = vmatprep.mubr.f32.mxu0 %v2053
  %2229 = vmatmul.mubr.f32.gmra.mrb[0].mxu0 %v2052
  %v2230 = vpop.f32.mrb[0].mxu0
  %v2231 = vadd.f32 0.0, %v2230
  %v2232 = vpop.f32.mrb[0].mxu0
  %2233 = vmatprep.mubr.f32.mxu0 %v2055
  %2234 = vmatmul.mubr.f32.gmra.mrb[0].mxu0 %v2054
  %v2235 = vpop.f32.mrb[0].mxu0
  %v2236 = vadd.f32 0.0, %v2235
  %v2237 = vpop.f32.mrb[0].mxu0
  %2238 = vmatprep.mubr.f32.mxu0 %v2057
  %2239 = vmatmul.mubr.f32.gmra.mrb[0].mxu0 %v2056
  %v2240 = vpop.f32.mrb[0].mxu0
  %v2241 = vadd.f32 0.0, %v2240
  %v2242 = vpop.f32.mrb[0].mxu0
  %2243 = vmatprep.mubr.f32.mxu0 %v2061
  %2244 = vmatmul.mubr.f32.gmra.mrb[0].mxu0 %v2060
  %v2245 = vpop.f32.mrb[0].mxu0
  %v2246 = vadd.f32 0.0, %v2245
  %v2247 = vpop.f32.mrb[0].mxu0
  %2248 = vdwg.mxu0
  %v2267 = vrot.slane %v2042, 7
  %v2268 = vrot.slane %v2044, 7
  %v2269 = vsel %vm1066, %v2267, %v2268
  %v2270 = vrot.slane %v2043, 7
  %v2271 = vrot.slane %v2045, 7
  %v2272 = vsel %vm1066, %v2270, %v2271
  %v2273 = vrot.slane %v2046, 7
  %v2274 = vsel %vm1066, %v2268, %v2273
  %v2275 = vrot.slane %v2047, 7
  %v2276 = vsel %vm1066, %v2271, %v2275
  %v2277 = vrot.slane %v2048, 7
  %v2278 = vsel %vm1066, %v2273, %v2277
  %v2279 = vrot.slane %v2049, 7
  %v2280 = vsel %vm1066, %v2275, %v2279
  %v2281 = vrot.slane %v2050, 7
  %v2282 = vsel %vm1066, %v2277, %v2281
  %v2283 = vrot.slane %v2051, 7
  %v2284 = vsel %vm1066, %v2279, %v2283
  %v2285 = vrot.slane %v2052, 7
  %v2286 = vsel %vm1066, %v2281, %v2285
  %v2287 = vrot.slane %v2053, 7
  %v2288 = vsel %vm1066, %v2283, %v2287
  %v2289 = vrot.slane %v2054, 7
  %v2290 = vsel %vm1066, %v2285, %v2289
  %v2291 = vrot.slane %v2055, 7
  %v2292 = vsel %vm1066, %v2287, %v2291
  %v2293 = vrot.slane %v2056, 7
  %v2294 = vsel %vm1066, %v2289, %v2293
  %v2295 = vrot.slane %v2057, 7
  %v2296 = vsel %vm1066, %v2291, %v2295
  %v2297 = vrot.slane %v2058, 7
  %v2298 = vsel %vm1066, %v2293, %v2297
  %v2299 = vrot.slane %v2059, 7
  %v2300 = vsel %vm1066, %v2295, %v2299
  %2317 = vmatprep.subr.mxu0 0.0
  %2318 = vmatpush1.msra.mxu0 %v2080
  %2319 = vmatprep.subr.mxu0 0.0
  %2320 = vmatpush1.msra.mxu0 %v2081
  %2321 = vmatprep.subr.mxu0 0.0
  %2322 = vmatpush1.msra.mxu0 %v2082
  %2323 = vmatprep.subr.mxu0 0.0
  %2324 = vmatpush1.msra.mxu0 %v2083
  %2325 = vmatprep.subr.mxu0 0.0
  %2326 = vmatpush1.msra.mxu0 %v2084
  %2327 = vmatprep.subr.mxu0 0.0
  %2328 = vmatpush1.msra.mxu0 %v2085
  %2329 = vmatprep.subr.mxu0 0.0
  %2330 = vmatpush1.msra.mxu0 %v2086
  %2331 = vmatprep.subr.mxu0 0.0
  %2332 = vmatpush1.msra.mxu0 %v2087
  %2333 = vmatprep.subr.mxu0 0.0
  %2334 = vmatpush1.msra.mxu0 %v2088
  %2335 = vmatprep.subr.mxu0 0.0
  %2336 = vmatpush1.msra.mxu0 %v2089
  %2337 = vmatprep.subr.mxu0 0.0
  %2338 = vmatpush1.msra.mxu0 %v2090
  %2339 = vmatprep.subr.mxu0 0.0
  %2340 = vmatpush1.msra.mxu0 %v2091
  %2341 = vmatprep.subr.mxu0 0.0
  %2342 = vmatpush1.msra.mxu0 %v2092
  %2343 = vmatprep.subr.mxu0 0.0
  %2344 = vmatpush1.msra.mxu0 %v2093
  %2345 = vmatprep.subr.mxu0 0.0
  %2346 = vmatpush1.msra.mxu0 %v2094
  %2347 = vmatprep.subr.mxu0 0.0
  %2348 = vmatpush1.msra.mxu0 %v2095
  %2349 = vmatprep.subr.mxu0 0.0
  %2350 = vmatpush1.msra.mxu0 %v2096
  %2351 = vmatprep.subr.mxu0 0.0
  %2352 = vmatpush1.msra.mxu0 %v2097
  %2353 = vmatprep.subr.mxu0 0.0
  %2354 = vmatpush1.msra.mxu0 %v2098
  %2355 = vmatprep.subr.mxu0 0.0
  %2356 = vmatpush1.msra.mxu0 %v2099
  %2357 = vmatprep.subr.mxu0 0.0
  %2358 = vmatpush1.msra.mxu0 %v2100
  %2359 = vmatprep.subr.mxu0 0.0
  %2360 = vmatpush1.msra.mxu0 %v2101
  %2361 = vmatprep.subr.mxu0 0.0
  %2362 = vmatpush1.msra.mxu0 %v2102
  %2363 = vmatprep.subr.mxu0 0.0
  %2364 = vmatpush1.msra.mxu0 %v2103
  %2365 = vmatprep.subr.mxu0 0.0
  %2366 = vmatpush1.msra.mxu0 %v2104
  %2367 = vmatprep.subr.mxu0 0.0
  %2368 = vmatpush1.msra.mxu0 %v2105
  %2369 = vmatprep.subr.mxu0 0.0
  %2370 = vmatpush1.msra.mxu0 %v2106
  %2371 = vmatprep.subr.mxu0 0.0
  %2372 = vmatpush1.msra.mxu0 %v2107
  %2373 = vmatprep.subr.mxu0 0.0
  %2374 = vmatpush1.msra.mxu0 %v2108
  %2375 = vmatprep.subr.mxu0 0.0
  %2376 = vmatpush1.msra.mxu0 %v2109
  %2377 = vmatprep.subr.mxu0 0.0
  %2378 = vmatpush1.msra.mxu0 %v2110
  %2379 = vmatprep.subr.mxu0 0.0
  %2380 = vmatpush1.msra.mxu0 %v2111
  %2381 = vmatprep.mubr.f32.mxu0 %v2272
  %2382 = vmatmul.mubr.f32.gmra.mrb[0].mxu0 %v2269
  %v2383 = vpop.f32.mrb[0].mxu0
  %v2384 = vadd.f32 %v2211, %v2383
  %v2385 = vpop.f32.mrb[0].mxu0
  %2386 = vmatprep.mubr.f32.mxu0 %v2276
  %2387 = vmatmul.mubr.f32.gmra.mrb[0].mxu0 %v2274
  %v2388 = vpop.f32.mrb[0].mxu0
  %v2389 = vadd.f32 %v2216, %v2388
  %v2390 = vpop.f32.mrb[0].mxu0
  %2391 = vmatprep.mubr.f32.mxu0 %v2280
  %2392 = vmatmul.mubr.f32.gmra.mrb[0].mxu0 %v2278
  %v2393 = vpop.f32.mrb[0].mxu0
  %v2394 = vadd.f32 %v2221, %v2393
  %v2395 = vpop.f32.mrb[0].mxu0
  %2396 = vmatprep.mubr.f32.mxu0 %v2284
  %2397 = vmatmul.mubr.f32.gmra.mrb[0].mxu0 %v2282
  %v2398 = vpop.f32.mrb[0].mxu0
  %v2399 = vadd.f32 %v2226, %v2398
  %v2400 = vpop.f32.mrb[0].mxu0
  %2401 = vmatprep.mubr.f32.mxu0 %v2288
  %2402 = vmatmul.mubr.f32.gmra.mrb[0].mxu0 %v2286
  %v2403 = vpop.f32.mrb[0].mxu0
  %v2404 = vadd.f32 %v2231, %v2403
  %v2405 = vpop.f32.mrb[0].mxu0
  %2406 = vmatprep.mubr.f32.mxu0 %v2292
  %2407 = vmatmul.mubr.f32.gmra.mrb[0].mxu0 %v2290
  %v2408 = vpop.f32.mrb[0].mxu0
  %v2409 = vadd.f32 %v2236, %v2408
  %v2410 = vpop.f32.mrb[0].mxu0
  %2411 = vmatprep.mubr.f32.mxu0 %v2296
  %2412 = vmatmul.mubr.f32.gmra.mrb[0].mxu0 %v2294
  %v2413 = vpop.f32.mrb[0].mxu0
  %v2414 = vadd.f32 %v2241, %v2413
  %v2415 = vpop.f32.mrb[0].mxu0
  %2416 = vmatprep.mubr.f32.mxu0 %v2300
  %2417 = vmatmul.mubr.f32.gmra.mrb[0].mxu0 %v2298
  %v2418 = vpop.f32.mrb[0].mxu0
  %v2419 = vadd.f32 %v2246, %v2418
  %v2420 = vpop.f32.mrb[0].mxu0
  %2421 = vdwg.mxu0
  %v2422 = vld [vmem:[%s14 + $0x200] sm:$0xff]
  %v2423 = vld [vmem:[%s14 + $0x208] sm:$0xff]
  %v2424 = vld [vmem:[%s14 + $0x210] sm:$0xff]
  %v2425 = vld [vmem:[%s14 + $0x218] sm:$0xff]
  %v2426 = vld [vmem:[%s14 + $0x220] sm:$0xff]
  %v2427 = vld [vmem:[%s14 + $0x228] sm:$0xff]
  %v2428 = vld [vmem:[%s14 + $0x230] sm:$0xff]
  %v2429 = vld [vmem:[%s14 + $0x238] sm:$0xff]
  %v2430 = vld [vmem:[%s14 + $0x240] sm:$0xff]
  %v2431 = vld [vmem:[%s14 + $0x248] sm:$0xff]
  %v2432 = vld [vmem:[%s14 + $0x250] sm:$0xff]
  %v2433 = vld [vmem:[%s14 + $0x258] sm:$0xff]
  %v2434 = vld [vmem:[%s14 + $0x260] sm:$0xff]
  %v2435 = vld [vmem:[%s14 + $0x268] sm:$0xff]
  %v2436 = vld [vmem:[%s14 + $0x270] sm:$0xff]
  %v2437 = vld [vmem:[%s14 + $0x278] sm:$0xff]
  %v2438 = vld [vmem:[%s14 + $0x280] sm:$0xff]
  %v2439 = vld [vmem:[%s14 + $0x288] sm:$0xff]
  %v2440 = vld [vmem:[%s14 + $0x290] sm:$0xff]
  %v2441 = vld [vmem:[%s14 + $0x298] sm:$0xff]
  %v2442 = vld [vmem:[%s14 + $0x2a0] sm:$0xff]
  %v2443 = vld [vmem:[%s14 + $0x2a8] sm:$0xff]
  %v2444 = vld [vmem:[%s14 + $0x2b0] sm:$0xff]
  %v2445 = vld [vmem:[%s14 + $0x2b8] sm:$0xff]
  %v2446 = vld [vmem:[%s14 + $0x2c0] sm:$0xff]
  %v2447 = vld [vmem:[%s14 + $0x2c8] sm:$0xff]
  %v2448 = vld [vmem:[%s14 + $0x2d0] sm:$0xff]
  %v2449 = vld [vmem:[%s14 + $0x2d8] sm:$0xff]
  %v2450 = vld [vmem:[%s14 + $0x2e0] sm:$0xff]
  %v2451 = vld [vmem:[%s14 + $0x2e8] sm:$0xff]
  %v2452 = vld [vmem:[%s14 + $0x2f0] sm:$0xff]
  %v2453 = vld [vmem:[%s14 + $0x2f8] sm:$0xff]
  %v2472 = vrot.slane %v2062, 1
  %v2473 = vrot.slane %v2064, 1
  %v2474 = vsel %vm1216, %v2472, %v2473
  %v2475 = vrot.slane %v2063, 1
  %v2476 = vrot.slane %v2065, 1
  %v2477 = vsel %vm1216, %v2475, %v2476
  %v2478 = vrot.slane %v2066, 1
  %v2479 = vsel %vm1216, %v2473, %v2478
  %v2480 = vrot.slane %v2067, 1
  %v2481 = vsel %vm1216, %v2476, %v2480
  %v2482 = vrot.slane %v2068, 1
  %v2483 = vsel %vm1216, %v2478, %v2482
  %v2484 = vrot.slane %v2069, 1
  %v2485 = vsel %vm1216, %v2480, %v2484
  %v2486 = vrot.slane %v2070, 1
  %v2487 = vsel %vm1216, %v2482, %v2486
  %v2488 = vrot.slane %v2071, 1
  %v2489 = vsel %vm1216, %v2484, %v2488
  %v2490 = vrot.slane %v2072, 1
  %v2491 = vsel %vm1216, %v2486, %v2490
  %v2492 = vrot.slane %v2073, 1
  %v2493 = vsel %vm1216, %v2488, %v2492
  %v2494 = vrot.slane %v2074, 1
  %v2495 = vsel %vm1216, %v2490, %v2494
  %v2496 = vrot.slane %v2075, 1
  %v2497 = vsel %vm1216, %v2492, %v2496
  %v2498 = vrot.slane %v2076, 1
  %v2499 = vsel %vm1216, %v2494, %v2498
  %v2500 = vrot.slane %v2077, 1
  %v2501 = vsel %vm1216, %v2496, %v2500
  %v2502 = vrot.slane %v2078, 1
  %v2503 = vsel %vm1216, %v2498, %v2502
  %v2504 = vrot.slane %v2079, 1
  %v2505 = vsel %vm1216, %v2500, %v2504
  %2522 = vmatprep.subr.mxu0 0.0
  %2523 = vmatpush1.msra.mxu0 %v2422
  %2524 = vmatprep.subr.mxu0 0.0
  %2525 = vmatpush1.msra.mxu0 %v2423
  %2526 = vmatprep.subr.mxu0 0.0
  %2527 = vmatpush1.msra.mxu0 %v2424
  %2528 = vmatprep.subr.mxu0 0.0
  %2529 = vmatpush1.msra.mxu0 %v2425
  %2530 = vmatprep.subr.mxu0 0.0
  %2531 = vmatpush1.msra.mxu0 %v2426
  %2532 = vmatprep.subr.mxu0 0.0
  %2533 = vmatpush1.msra.mxu0 %v2427
  %2534 = vmatprep.subr.mxu0 0.0
  %2535 = vmatpush1.msra.mxu0 %v2428
  %2536 = vmatprep.subr.mxu0 0.0
  %2537 = vmatpush1.msra.mxu0 %v2429
  %2538 = vmatprep.subr.mxu0 0.0
  %2539 = vmatpush1.msra.mxu0 %v2430
  %2540 = vmatprep.subr.mxu0 0.0
  %2541 = vmatpush1.msra.mxu0 %v2431
  %2542 = vmatprep.subr.mxu0 0.0
  %2543 = vmatpush1.msra.mxu0 %v2432
  %2544 = vmatprep.subr.mxu0 0.0
  %2545 = vmatpush1.msra.mxu0 %v2433
  %2546 = vmatprep.subr.mxu0 0.0
  %2547 = vmatpush1.msra.mxu0 %v2434
  %2548 = vmatprep.subr.mxu0 0.0
  %2549 = vmatpush1.msra.mxu0 %v2435
  %2550 = vmatprep.subr.mxu0 0.0
  %2551 = vmatpush1.msra.mxu0 %v2436
  %2552 = vmatprep.subr.mxu0 0.0
  %2553 = vmatpush1.msra.mxu0 %v2437
  %2554 = vmatprep.subr.mxu0 0.0
  %2555 = vmatpush1.msra.mxu0 %v2438
  %2556 = vmatprep.subr.mxu0 0.0
  %2557 = vmatpush1.msra.mxu0 %v2439
  %2558 = vmatprep.subr.mxu0 0.0
  %2559 = vmatpush1.msra.mxu0 %v2440
  %2560 = vmatprep.subr.mxu0 0.0
  %2561 = vmatpush1.msra.mxu0 %v2441
  %2562 = vmatprep.subr.mxu0 0.0
  %2563 = vmatpush1.msra.mxu0 %v2442
  %2564 = vmatprep.subr.mxu0 0.0
  %2565 = vmatpush1.msra.mxu0 %v2443
  %2566 = vmatprep.subr.mxu0 0.0
  %2567 = vmatpush1.msra.mxu0 %v2444
  %2568 = vmatprep.subr.mxu0 0.0
  %2569 = vmatpush1.msra.mxu0 %v2445
  %2570 = vmatprep.subr.mxu0 0.0
  %2571 = vmatpush1.msra.mxu0 %v2446
  %2572 = vmatprep.subr.mxu0 0.0
  %2573 = vmatpush1.msra.mxu0 %v2447
  %2574 = vmatprep.subr.mxu0 0.0
  %2575 = vmatpush1.msra.mxu0 %v2448
  %2576 = vmatprep.subr.mxu0 0.0
  %2577 = vmatpush1.msra.mxu0 %v2449
  %2578 = vmatprep.subr.mxu0 0.0
  %2579 = vmatpush1.msra.mxu0 %v2450
  %2580 = vmatprep.subr.mxu0 0.0
  %2581 = vmatpush1.msra.mxu0 %v2451
  %2582 = vmatprep.subr.mxu0 0.0
  %2583 = vmatpush1.msra.mxu0 %v2452
  %2584 = vmatprep.subr.mxu0 0.0
  %2585 = vmatpush1.msra.mxu0 %v2453
  %2586 = vmatprep.mubr.f32.mxu0 %v2477
  %2587 = vmatmul.mubr.f32.gmra.mrb[0].mxu0 %v2474
  %v2588 = vpop.f32.mrb[0].mxu0
  %v2589 = vadd.f32 0.0, %v2588
  %v2590 = vpop.f32.mrb[0].mxu0
  %2591 = vmatprep.mubr.f32.mxu0 %v2481
  %2592 = vmatmul.mubr.f32.gmra.mrb[0].mxu0 %v2479
  %v2593 = vpop.f32.mrb[0].mxu0
  %v2594 = vadd.f32 0.0, %v2593
  %v2595 = vpop.f32.mrb[0].mxu0
  %2596 = vmatprep.mubr.f32.mxu0 %v2485
  %2597 = vmatmul.mubr.f32.gmra.mrb[0].mxu0 %v2483
  %v2598 = vpop.f32.mrb[0].mxu0
  %v2599 = vadd.f32 0.0, %v2598
  %v2600 = vpop.f32.mrb[0].mxu0
  %2601 = vmatprep.mubr.f32.mxu0 %v2489
  %2602 = vmatmul.mubr.f32.gmra.mrb[0].mxu0 %v2487
  %v2603 = vpop.f32.mrb[0].mxu0
  %v2604 = vadd.f32 0.0, %v2603
  %v2605 = vpop.f32.mrb[0].mxu0
  %2606 = vmatprep.mubr.f32.mxu0 %v2493
  %2607 = vmatmul.mubr.f32.gmra.mrb[0].mxu0 %v2491
  %v2608 = vpop.f32.mrb[0].mxu0
  %v2609 = vadd.f32 0.0, %v2608
  %v2610 = vpop.f32.mrb[0].mxu0
  %2611 = vmatprep.mubr.f32.mxu0 %v2497
  %2612 = vmatmul.mubr.f32.gmra.mrb[0].mxu0 %v2495
  %v2613 = vpop.f32.mrb[0].mxu0
  %v2614 = vadd.f32 0.0, %v2613
  %v2615 = vpop.f32.mrb[0].mxu0
  %2616 = vmatprep.mubr.f32.mxu0 %v2501
  %2617 = vmatmul.mubr.f32.gmra.mrb[0].mxu0 %v2499
  %v2618 = vpop.f32.mrb[0].mxu0
  %v2619 = vadd.f32 0.0, %v2618
  %v2620 = vpop.f32.mrb[0].mxu0
  %2621 = vmatprep.mubr.f32.mxu0 %v2505
  %2622 = vmatmul.mubr.f32.gmra.mrb[0].mxu0 %v2503
  %v2623 = vpop.f32.mrb[0].mxu0
  %v2624 = vadd.f32 0.0, %v2623
  %v2625 = vpop.f32.mrb[0].mxu0
  %2626 = vdwg.mxu0
  %v2627 = vadd.f32 %v2384, %v2589
  %v2628 = vadd.f32 %v2389, %v2594
  %v2629 = vadd.f32 %v2394, %v2599
  %v2630 = vadd.f32 %v2399, %v2604
  %v2631 = vadd.f32 %v2404, %v2609
  %v2632 = vadd.f32 %v2409, %v2614
  %v2633 = vadd.f32 %v2414, %v2619
  %v2634 = vadd.f32 %v2419, %v2624
  %v2635 = vld [vmem:[%s15] sm:$0x1]
  %v2637 = vlaneseq
  %v2638 = vshrl.u32 %v2637, 7
  %v2639 = vsub.s32 0, %v2638
  %v2640 = vrot.slane %v2635, %v2639
  %v2642 = vadd.f32 %v2627, %v2640
  %v2643 = vadd.f32 %v2628, %v2640
  %v2644 = vadd.f32 %v2629, %v2640
  %v2645 = vadd.f32 %v2630, %v2640
  %v2646 = vadd.f32 %v2631, %v2640
  %v2647 = vadd.f32 %v2632, %v2640
  %v2648 = vadd.f32 %v2633, %v2640
  %v2649 = vadd.f32 %v2634, %v2640
  %v2650 = vld [vmem:[%s16] sm:$0x1]
  %v2651 = vld [vmem:[%s17] sm:$0x1]
  %v2652 = vmul.f32 %v2642, %v196
  %v2653 = vmul.f32 %v2643, %v197
  %v2654 = vmul.f32 %v2644, %v198
  %v2655 = vmul.f32 %v2645, %v199
  %v2656 = vmul.f32 %v2646, %v200
  %v2657 = vmul.f32 %v2647, %v201
  %v2658 = vmul.f32 %v2648, %v202
  %v2659 = vmul.f32 %v2649, %v203
  %v2660 = vadd.f32 %v2652, %v2653
  %v2661 = vadd.f32 %v2660, %v2654
  %v2662 = vadd.f32 %v2661, %v2655
  %v2663 = vadd.f32 %v2662, %v2656
  %v2664 = vadd.f32 %v2663, %v2657
  %v2665 = vadd.f32 %v2664, %v2658
  %v2666 = vadd.f32 %v2665, %v2659
  %v2667 = vrot.slane %v2666, 4
  %v2668 = vadd.f32 %v2666, %v2667
  %v2669 = vrot.slane %v2668, 2
  %v2670 = vadd.f32 %v2668, %v2669
  %v2671 = vrot.slane %v2670, 1
  %v2672 = vadd.f32 %v2670, %v2671
  %v2673 = vmul.f32 %v2652, %v2652
  %v2674 = vmul.f32 %v2653, %v2653
  %v2675 = vmul.f32 %v2654, %v2654
  %v2676 = vmul.f32 %v2655, %v2655
  %v2677 = vmul.f32 %v2656, %v2656
  %v2678 = vmul.f32 %v2657, %v2657
  %v2679 = vmul.f32 %v2658, %v2658
  %v2680 = vmul.f32 %v2659, %v2659
  %v2681 = vadd.f32 %v2673, %v2674
  %v2682 = vadd.f32 %v2681, %v2675
  %v2683 = vadd.f32 %v2682, %v2676
  %v2684 = vadd.f32 %v2683, %v2677
  %v2685 = vadd.f32 %v2684, %v2678
  %v2686 = vadd.f32 %v2685, %v2679
  %v2687 = vadd.f32 %v2686, %v2680
  %v2688 = vrot.slane %v2687, 4
  %v2689 = vadd.f32 %v2687, %v2688
  %v2690 = vrot.slane %v2689, 2
  %v2691 = vadd.f32 %v2689, %v2690
  %v2692 = vrot.slane %v2691, 1
  %v2693 = vadd.f32 %v2691, %v2692
  %v2694 = vmul.f32 %v2672, 0.016666668
  %v2695 = vmul.f32 %v2693, 0.016666668
  %v2696 = vmul.f32 %v2694, %v2694
  %v2697 = vsub.f32 %v2695, %v2696
  %v2698 = vmax.f32 %v2697, 0.0
  %v2699 = vadd.f32 %v2698, 1e-05
  %v2700 = vrsqrt.pop %v2699
  %v2701 = vmul.f32 %v2650, %v2700
  %v2702 = vmul.f32 %v2694, %v2701
  %v2703 = vsub.f32 %v2651, %v2702
  %v2705 = vlaneseq
  %v2706 = vshrl.u32 %v2705, 7
  %v2707 = vsub.s32 0, %v2706
  %v2708 = vrot.slane %v2701, %v2707
  %v2710 = vmul.f32 %v2642, %v2708
  %v2711 = vmul.f32 %v2643, %v2708
  %v2712 = vmul.f32 %v2644, %v2708
  %v2713 = vmul.f32 %v2645, %v2708
  %v2714 = vmul.f32 %v2646, %v2708
  %v2715 = vmul.f32 %v2647, %v2708
  %v2716 = vmul.f32 %v2648, %v2708
  %v2717 = vmul.f32 %v2649, %v2708
  %v2719 = vlaneseq
  %v2720 = vshrl.u32 %v2719, 7
  %v2721 = vsub.s32 0, %v2720
  %v2722 = vrot.slane %v2703, %v2721
  %v2724 = vadd.f32 %v2710, %v2722
  %v2725 = vadd.f32 %v2711, %v2722
  %v2726 = vadd.f32 %v2712, %v2722
  %v2727 = vadd.f32 %v2713, %v2722
  %v2728 = vadd.f32 %v2714, %v2722
  %v2729 = vadd.f32 %v2715, %v2722
  %v2730 = vadd.f32 %v2716, %v2722
  %v2731 = vadd.f32 %v2717, %v2722
  %v2732 = vmax.f32 %v2724, 0.0
  %v2733 = vmax.f32 %v2725, 0.0
  %v2734 = vmax.f32 %v2726, 0.0
  %v2735 = vmax.f32 %v2727, 0.0
  %v2736 = vmax.f32 %v2728, 0.0
  %v2737 = vmax.f32 %v2729, 0.0
  %v2738 = vmax.f32 %v2730, 0.0
  %v2739 = vmax.f32 %v2731, 0.0
  %v2740 = vmul.f32 %v2732, %v196
  %v2741 = vmul.f32 %v2733, %v197
  %v2742 = vmul.f32 %v2734, %v198
  %v2743 = vmul.f32 %v2735, %v199
  %v2744 = vmul.f32 %v2736, %v200
  %v2745 = vmul.f32 %v2737, %v201
  %v2746 = vmul.f32 %v2738, %v202
  %v2747 = vmul.f32 %v2739, %v203
  %2748 = vst [vmem:[#allocation3 + $0x10] sm:$0xff] %v2740
  %2749 = vst [vmem:[#allocation3 + $0x20] sm:$0xff] %v2741
  %2750 = vst [vmem:[#allocation3 + $0x30] sm:$0xff] %v2742
  %2751 = vst [vmem:[#allocation3 + $0x40] sm:$0xff] %v2743
  %2752 = vst [vmem:[#allocation3 + $0x50] sm:$0xff] %v2744
  %2753 = vst [vmem:[#allocation3 + $0x60] sm:$0xff] %v2745
  %2754 = vst [vmem:[#allocation3 + $0x70] sm:$0xff] %v2746
  %2755 = vst [vmem:[#allocation3 + $0x80] sm:$0xff] %v2747
  %v2756 = vld [vmem:[#allocation3] sm:$0x80]
  %v2757 = vld [vmem:[#allocation3 + $0x10] sm:$0xff]
  %v2758 = vld [vmem:[#allocation3 + $0x20] sm:$0xff]
  %v2759 = vld [vmem:[#allocation3 + $0x30] sm:$0xff]
  %v2760 = vld [vmem:[#allocation3 + $0x40] sm:$0xff]
  %v2761 = vld [vmem:[#allocation3 + $0x50] sm:$0xff]
  %v2762 = vld [vmem:[#allocation3 + $0x60] sm:$0xff]
  %v2763 = vld [vmem:[#allocation3 + $0x70] sm:$0xff]
  %v2764 = vld [vmem:[#allocation3 + $0x80] sm:$0x7f]
  %v2765 = vld [vmem:[#allocation3 + $0x80] sm:$0xff]
  %v2766 = vld [vmem:[#allocation3 + $0x10] sm:$0xfe]
  %v2767 = vld [vmem:[#allocation3 + $0x90] sm:$0x1]
  %v2768 = vld [vmem:[%s18] sm:$0xff]
  %v2769 = vld [vmem:[%s18 + $0x8] sm:$0xff]
  %v2770 = vld [vmem:[%s18 + $0x10] sm:$0xff]
  %v2771 = vld [vmem:[%s18 + $0x18] sm:$0xff]
  %v2772 = vld [vmem:[%s18 + $0x20] sm:$0xff]
  %v2773 = vld [vmem:[%s18 + $0x28] sm:$0xff]
  %v2774 = vld [vmem:[%s18 + $0x30] sm:$0xff]
  %v2775 = vld [vmem:[%s18 + $0x38] sm:$0xff]
  %v2776 = vld [vmem:[%s18 + $0x40] sm:$0xff]
  %v2777 = vld [vmem:[%s18 + $0x48] sm:$0xff]
  %v2778 = vld [vmem:[%s18 + $0x50] sm:$0xff]
  %v2779 = vld [vmem:[%s18 + $0x58] sm:$0xff]
  %v2780 = vld [vmem:[%s18 + $0x60] sm:$0xff]
  %v2781 = vld [vmem:[%s18 + $0x68] sm:$0xff]
  %v2782 = vld [vmem:[%s18 + $0x70] sm:$0xff]
  %v2783 = vld [vmem:[%s18 + $0x78] sm:$0xff]
  %v2784 = vld [vmem:[%s18 + $0x80] sm:$0xff]
  %v2785 = vld [vmem:[%s18 + $0x88] sm:$0xff]
  %v2786 = vld [vmem:[%s18 + $0x90] sm:$0xff]
  %v2787 = vld [vmem:[%s18 + $0x98] sm:$0xff]
  %v2788 = vld [vmem:[%s18 + $0xa0] sm:$0xff]
  %v2789 = vld [vmem:[%s18 + $0xa8] sm:$0xff]
  %v2790 = vld [vmem:[%s18 + $0xb0] sm:$0xff]
  %v2791 = vld [vmem:[%s18 + $0xb8] sm:$0xff]
  %v2792 = vld [vmem:[%s18 + $0xc0] sm:$0xff]
  %v2793 = vld [vmem:[%s18 + $0xc8] sm:$0xff]
  %v2794 = vld [vmem:[%s18 + $0xd0] sm:$0xff]
  %v2795 = vld [vmem:[%s18 + $0xd8] sm:$0xff]
  %v2796 = vld [vmem:[%s18 + $0xe0] sm:$0xff]
  %v2797 = vld [vmem:[%s18 + $0xe8] sm:$0xff]
  %v2798 = vld [vmem:[%s18 + $0xf0] sm:$0xff]
  %v2799 = vld [vmem:[%s18 + $0xf8] sm:$0xff]
  %2800 = vmatprep.subr.mxu0 0.0
  %2801 = vmatpush1.msra.mxu0 %v2784
  %2802 = vmatprep.subr.mxu0 0.0
  %2803 = vmatpush1.msra.mxu0 %v2785
  %2804 = vmatprep.subr.mxu0 0.0
  %2805 = vmatpush1.msra.mxu0 %v2786
  %2806 = vmatprep.subr.mxu0 0.0
  %2807 = vmatpush1.msra.mxu0 %v2787
  %2808 = vmatprep.subr.mxu0 0.0
  %2809 = vmatpush1.msra.mxu0 %v2788
  %2810 = vmatprep.subr.mxu0 0.0
  %2811 = vmatpush1.msra.mxu0 %v2789
  %2812 = vmatprep.subr.mxu0 0.0
  %2813 = vmatpush1.msra.mxu0 %v2790
  %2814 = vmatprep.subr.mxu0 0.0
  %2815 = vmatpush1.msra.mxu0 %v2791
  %2816 = vmatprep.subr.mxu0 0.0
  %2817 = vmatpush1.msra.mxu0 %v2792
  %2818 = vmatprep.subr.mxu0 0.0
  %2819 = vmatpush1.msra.mxu0 %v2793
  %2820 = vmatprep.subr.mxu0 0.0
  %2821 = vmatpush1.msra.mxu0 %v2794
  %2822 = vmatprep.subr.mxu0 0.0
  %2823 = vmatpush1.msra.mxu0 %v2795
  %2824 = vmatprep.subr.mxu0 0.0
  %2825 = vmatpush1.msra.mxu0 %v2796
  %2826 = vmatprep.subr.mxu0 0.0
  %2827 = vmatpush1.msra.mxu0 %v2797
  %2828 = vmatprep.subr.mxu0 0.0
  %2829 = vmatpush1.msra.mxu0 %v2798
  %2830 = vmatprep.subr.mxu0 0.0
  %2831 = vmatpush1.msra.mxu0 %v2799
  %2832 = vmatprep.subr.mxu0 0.0
  %2833 = vmatpush1.msra.mxu0 0.0
  %2834 = vmatprep.subr.mxu0 0.0
  %2835 = vmatpush1.msra.mxu0 0.0
  %2836 = vmatprep.subr.mxu0 0.0
  %2837 = vmatpush1.msra.mxu0 0.0
  %2838 = vmatprep.subr.mxu0 0.0
  %2839 = vmatpush1.msra.mxu0 0.0
  %2840 = vmatprep.subr.mxu0 0.0
  %2841 = vmatpush1.msra.mxu0 0.0
  %2842 = vmatprep.subr.mxu0 0.0
  %2843 = vmatpush1.msra.mxu0 0.0
  %2844 = vmatprep.subr.mxu0 0.0
  %2845 = vmatpush1.msra.mxu0 0.0
  %2846 = vmatprep.subr.mxu0 0.0
  %2847 = vmatpush1.msra.mxu0 0.0
  %2848 = vmatprep.subr.mxu0 0.0
  %2849 = vmatpush1.msra.mxu0 0.0
  %2850 = vmatprep.subr.mxu0 0.0
  %2851 = vmatpush1.msra.mxu0 0.0
  %2852 = vmatprep.subr.mxu0 0.0
  %2853 = vmatpush1.msra.mxu0 0.0
  %2854 = vmatprep.subr.mxu0 0.0
  %2855 = vmatpush1.msra.mxu0 0.0
  %2856 = vmatprep.subr.mxu0 0.0
  %2857 = vmatpush1.msra.mxu0 0.0
  %2858 = vmatprep.subr.mxu0 0.0
  %2859 = vmatpush1.msra.mxu0 0.0
  %2860 = vmatprep.subr.mxu0 0.0
  %2861 = vmatpush1.msra.mxu0 0.0
  %2862 = vmatprep.subr.mxu0 0.0
  %2863 = vmatpush1.msra.mxu0 0.0
  %2864 = vmatprep.mubr.f32.mxu0 0.0
  %2865 = vmatmul.mubr.f32.gmra.mrb[0].mxu0 %v2757
  %v2866 = vpop.f32.mrb[0].mxu0
  %v2867 = vadd.f32 0.0, %v2866
  %v2868 = vpop.f32.mrb[0].mxu0
  %2869 = vmatprep.mubr.f32.mxu0 0.0
  %2870 = vmatmul.mubr.f32.gmra.mrb[0].mxu0 %v2758
  %v2871 = vpop.f32.mrb[0].mxu0
  %v2872 = vadd.f32 0.0, %v2871
  %v2873 = vpop.f32.mrb[0].mxu0
  %2874 = vmatprep.mubr.f32.mxu0 0.0
  %2875 = vmatmul.mubr.f32.gmra.mrb[0].mxu0 %v2759
  %v2876 = vpop.f32.mrb[0].mxu0
  %v2877 = vadd.f32 0.0, %v2876
  %v2878 = vpop.f32.mrb[0].mxu0
  %2879 = vmatprep.mubr.f32.mxu0 0.0
  %2880 = vmatmul.mubr.f32.gmra.mrb[0].mxu0 %v2760
  %v2881 = vpop.f32.mrb[0].mxu0
  %v2882 = vadd.f32 0.0, %v2881
  %v2883 = vpop.f32.mrb[0].mxu0
  %2884 = vmatprep.mubr.f32.mxu0 0.0
  %2885 = vmatmul.mubr.f32.gmra.mrb[0].mxu0 %v2761
  %v2886 = vpop.f32.mrb[0].mxu0
  %v2887 = vadd.f32 0.0, %v2886
  %v2888 = vpop.f32.mrb[0].mxu0
  %2889 = vmatprep.mubr.f32.mxu0 0.0
  %2890 = vmatmul.mubr.f32.gmra.mrb[0].mxu0 %v2762
  %v2891 = vpop.f32.mrb[0].mxu0
  %v2892 = vadd.f32 0.0, %v2891
  %v2893 = vpop.f32.mrb[0].mxu0
  %2894 = vmatprep.mubr.f32.mxu0 0.0
  %2895 = vmatmul.mubr.f32.gmra.mrb[0].mxu0 %v2763
  %v2896 = vpop.f32.mrb[0].mxu0
  %v2897 = vadd.f32 0.0, %v2896
  %v2898 = vpop.f32.mrb[0].mxu0
  %2899 = vmatprep.mubr.f32.mxu0 0.0
  %2900 = vmatmul.mubr.f32.gmra.mrb[0].mxu0 %v2765
  %v2901 = vpop.f32.mrb[0].mxu0
  %v2902 = vadd.f32 0.0, %v2901
  %v2903 = vpop.f32.mrb[0].mxu0
  %2904 = vdwg.mxu0
  %v2914 = vrot.slane %v2756, 7
  %v2915 = vrot.slane %v2757, 7
  %v2916 = vsel %vm1066, %v2914, %v2915
  %v2917 = vrot.slane %v2758, 7
  %v2918 = vsel %vm1066, %v2915, %v2917
  %v2919 = vrot.slane %v2759, 7
  %v2920 = vsel %vm1066, %v2917, %v2919
  %v2921 = vrot.slane %v2760, 7
  %v2922 = vsel %vm1066, %v2919, %v2921
  %v2923 = vrot.slane %v2761, 7
  %v2924 = vsel %vm1066, %v2921, %v2923
  %v2925 = vrot.slane %v2762, 7
  %v2926 = vsel %vm1066, %v2923, %v2925
  %v2927 = vrot.slane %v2763, 7
  %v2928 = vsel %vm1066, %v2925, %v2927
  %v2929 = vrot.slane %v2764, 7
  %v2930 = vsel %vm1066, %v2927, %v2929
  %2939 = vmatprep.subr.mxu0 0.0
  %2940 = vmatpush1.msra.mxu0 %v2768
  %2941 = vmatprep.subr.mxu0 0.0
  %2942 = vmatpush1.msra.mxu0 %v2769
  %2943 = vmatprep.subr.mxu0 0.0
  %2944 = vmatpush1.msra.mxu0 %v2770
  %2945 = vmatprep.subr.mxu0 0.0
  %2946 = vmatpush1.msra.mxu0 %v2771
  %2947 = vmatprep.subr.mxu0 0.0
  %2948 = vmatpush1.msra.mxu0 %v2772
  %2949 = vmatprep.subr.mxu0 0.0
  %2950 = vmatpush1.msra.mxu0 %v2773
  %2951 = vmatprep.subr.mxu0 0.0
  %2952 = vmatpush1.msra.mxu0 %v2774
  %2953 = vmatprep.subr.mxu0 0.0
  %2954 = vmatpush1.msra.mxu0 %v2775
  %2955 = vmatprep.subr.mxu0 0.0
  %2956 = vmatpush1.msra.mxu0 %v2776
  %2957 = vmatprep.subr.mxu0 0.0
  %2958 = vmatpush1.msra.mxu0 %v2777
  %2959 = vmatprep.subr.mxu0 0.0
  %2960 = vmatpush1.msra.mxu0 %v2778
  %2961 = vmatprep.subr.mxu0 0.0
  %2962 = vmatpush1.msra.mxu0 %v2779
  %2963 = vmatprep.subr.mxu0 0.0
  %2964 = vmatpush1.msra.mxu0 %v2780
  %2965 = vmatprep.subr.mxu0 0.0
  %2966 = vmatpush1.msra.mxu0 %v2781
  %2967 = vmatprep.subr.mxu0 0.0
  %2968 = vmatpush1.msra.mxu0 %v2782
  %2969 = vmatprep.subr.mxu0 0.0
  %2970 = vmatpush1.msra.mxu0 %v2783
  %2971 = vmatprep.subr.mxu0 0.0
  %2972 = vmatpush1.msra.mxu0 0.0
  %2973 = vmatprep.subr.mxu0 0.0
  %2974 = vmatpush1.msra.mxu0 0.0
  %2975 = vmatprep.subr.mxu0 0.0
  %2976 = vmatpush1.msra.mxu0 0.0
  %2977 = vmatprep.subr.mxu0 0.0
  %2978 = vmatpush1.msra.mxu0 0.0
  %2979 = vmatprep.subr.mxu0 0.0
  %2980 = vmatpush1.msra.mxu0 0.0
  %2981 = vmatprep.subr.mxu0 0.0
  %2982 = vmatpush1.msra.mxu0 0.0
  %2983 = vmatprep.subr.mxu0 0.0
  %2984 = vmatpush1.msra.mxu0 0.0
  %2985 = vmatprep.subr.mxu0 0.0
  %2986 = vmatpush1.msra.mxu0 0.0
  %2987 = vmatprep.subr.mxu0 0.0
  %2988 = vmatpush1.msra.mxu0 0.0
  %2989 = vmatprep.subr.mxu0 0.0
  %2990 = vmatpush1.msra.mxu0 0.0
  %2991 = vmatprep.subr.mxu0 0.0
  %2992 = vmatpush1.msra.mxu0 0.0
  %2993 = vmatprep.subr.mxu0 0.0
  %2994 = vmatpush1.msra.mxu0 0.0
  %2995 = vmatprep.subr.mxu0 0.0
  %2996 = vmatpush1.msra.mxu0 0.0
  %2997 = vmatprep.subr.mxu0 0.0
  %2998 = vmatpush1.msra.mxu0 0.0
  %2999 = vmatprep.subr.mxu0 0.0
  %3000 = vmatpush1.msra.mxu0 0.0
  %3001 = vmatprep.subr.mxu0 0.0
  %3002 = vmatpush1.msra.mxu0 0.0
  %3003 = vmatprep.mubr.f32.mxu0 0.0
  %3004 = vmatmul.mubr.f32.gmra.mrb[0].mxu0 %v2916
  %v3005 = vpop.f32.mrb[0].mxu0
  %v3006 = vadd.f32 %v2867, %v3005
  %v3007 = vpop.f32.mrb[0].mxu0
  %3008 = vmatprep.mubr.f32.mxu0 0.0
  %3009 = vmatmul.mubr.f32.gmra.mrb[0].mxu0 %v2918
  %v3010 = vpop.f32.mrb[0].mxu0
  %v3011 = vadd.f32 %v2872, %v3010
  %v3012 = vpop.f32.mrb[0].mxu0
  %3013 = vmatprep.mubr.f32.mxu0 0.0
  %3014 = vmatmul.mubr.f32.gmra.mrb[0].mxu0 %v2920
  %v3015 = vpop.f32.mrb[0].mxu0
  %v3016 = vadd.f32 %v2877, %v3015
  %v3017 = vpop.f32.mrb[0].mxu0
  %3018 = vmatprep.mubr.f32.mxu0 0.0
  %3019 = vmatmul.mubr.f32.gmra.mrb[0].mxu0 %v2922
  %v3020 = vpop.f32.mrb[0].mxu0
  %v3021 = vadd.f32 %v2882, %v3020
  %v3022 = vpop.f32.mrb[0].mxu0
  %3023 = vmatprep.mubr.f32.mxu0 0.0
  %3024 = vmatmul.mubr.f32.gmra.mrb[0].mxu0 %v2924
  %v3025 = vpop.f32.mrb[0].mxu0
  %v3026 = vadd.f32 %v2887, %v3025
  %v3027 = vpop.f32.mrb[0].mxu0
  %3028 = vmatprep.mubr.f32.mxu0 0.0
  %3029 = vmatmul.mubr.f32.gmra.mrb[0].mxu0 %v2926
  %v3030 = vpop.f32.mrb[0].mxu0
  %v3031 = vadd.f32 %v2892, %v3030
  %v3032 = vpop.f32.mrb[0].mxu0
  %3033 = vmatprep.mubr.f32.mxu0 0.0
  %3034 = vmatmul.mubr.f32.gmra.mrb[0].mxu0 %v2928
  %v3035 = vpop.f32.mrb[0].mxu0
  %v3036 = vadd.f32 %v2897, %v3035
  %v3037 = vpop.f32.mrb[0].mxu0
  %3038 = vmatprep.mubr.f32.mxu0 0.0
  %3039 = vmatmul.mubr.f32.gmra.mrb[0].mxu0 %v2930
  %v3040 = vpop.f32.mrb[0].mxu0
  %v3041 = vadd.f32 %v2902, %v3040
  %v3042 = vpop.f32.mrb[0].mxu0
  %3043 = vdwg.mxu0
  %v3044 = vld [vmem:[%s18 + $0x100] sm:$0xff]
  %v3045 = vld [vmem:[%s18 + $0x108] sm:$0xff]
  %v3046 = vld [vmem:[%s18 + $0x110] sm:$0xff]
  %v3047 = vld [vmem:[%s18 + $0x118] sm:$0xff]
  %v3048 = vld [vmem:[%s18 + $0x120] sm:$0xff]
  %v3049 = vld [vmem:[%s18 + $0x128] sm:$0xff]
  %v3050 = vld [vmem:[%s18 + $0x130] sm:$0xff]
  %v3051 = vld [vmem:[%s18 + $0x138] sm:$0xff]
  %v3052 = vld [vmem:[%s18 + $0x140] sm:$0xff]
  %v3053 = vld [vmem:[%s18 + $0x148] sm:$0xff]
  %v3054 = vld [vmem:[%s18 + $0x150] sm:$0xff]
  %v3055 = vld [vmem:[%s18 + $0x158] sm:$0xff]
  %v3056 = vld [vmem:[%s18 + $0x160] sm:$0xff]
  %v3057 = vld [vmem:[%s18 + $0x168] sm:$0xff]
  %v3058 = vld [vmem:[%s18 + $0x170] sm:$0xff]
  %v3059 = vld [vmem:[%s18 + $0x178] sm:$0xff]
  %v3063 = vrot.slane %v2766, 1
  %v3064 = vrot.slane %v2758, 1
  %v3065 = vsel %vm1216, %v3063, %v3064
  %v3066 = vrot.slane %v2759, 1
  %v3067 = vsel %vm1216, %v3064, %v3066
  %v3068 = vrot.slane %v2760, 1
  %v3069 = vsel %vm1216, %v3066, %v3068
  %v3070 = vrot.slane %v2761, 1
  %v3071 = vsel %vm1216, %v3068, %v3070
  %v3072 = vrot.slane %v2762, 1
  %v3073 = vsel %vm1216, %v3070, %v3072
  %v3074 = vrot.slane %v2763, 1
  %v3075 = vsel %vm1216, %v3072, %v3074
  %v3076 = vrot.slane %v2765, 1
  %v3077 = vsel %vm1216, %v3074, %v3076
  %v3078 = vrot.slane %v2767, 1
  %v3079 = vsel %vm1216, %v3076, %v3078
  %3088 = vmatprep.subr.mxu0 0.0
  %3089 = vmatpush1.msra.mxu0 %v3044
  %3090 = vmatprep.subr.mxu0 0.0
  %3091 = vmatpush1.msra.mxu0 %v3045
  %3092 = vmatprep.subr.mxu0 0.0
  %3093 = vmatpush1.msra.mxu0 %v3046
  %3094 = vmatprep.subr.mxu0 0.0
  %3095 = vmatpush1.msra.mxu0 %v3047
  %3096 = vmatprep.subr.mxu0 0.0
  %3097 = vmatpush1.msra.mxu0 %v3048
  %3098 = vmatprep.subr.mxu0 0.0
  %3099 = vmatpush1.msra.mxu0 %v3049
  %3100 = vmatprep.subr.mxu0 0.0
  %3101 = vmatpush1.msra.mxu0 %v3050
  %3102 = vmatprep.subr.mxu0 0.0
  %3103 = vmatpush1.msra.mxu0 %v3051
  %3104 = vmatprep.subr.mxu0 0.0
  %3105 = vmatpush1.msra.mxu0 %v3052
  %3106 = vmatprep.subr.mxu0 0.0
  %3107 = vmatpush1.msra.mxu0 %v3053
  %3108 = vmatprep.subr.mxu0 0.0
  %3109 = vmatpush1.msra.mxu0 %v3054
  %3110 = vmatprep.subr.mxu0 0.0
  %3111 = vmatpush1.msra.mxu0 %v3055
  %3112 = vmatprep.subr.mxu0 0.0
  %3113 = vmatpush1.msra.mxu0 %v3056
  %3114 = vmatprep.subr.mxu0 0.0
  %3115 = vmatpush1.msra.mxu0 %v3057
  %3116 = vmatprep.subr.mxu0 0.0
  %3117 = vmatpush1.msra.mxu0 %v3058
  %3118 = vmatprep.subr.mxu0 0.0
  %3119 = vmatpush1.msra.mxu0 %v3059
  %3120 = vmatprep.subr.mxu0 0.0
  %3121 = vmatpush1.msra.mxu0 0.0
  %3122 = vmatprep.subr.mxu0 0.0
  %3123 = vmatpush1.msra.mxu0 0.0
  %3124 = vmatprep.subr.mxu0 0.0
  %3125 = vmatpush1.msra.mxu0 0.0
  %3126 = vmatprep.subr.mxu0 0.0
  %3127 = vmatpush1.msra.mxu0 0.0
  %3128 = vmatprep.subr.mxu0 0.0
  %3129 = vmatpush1.msra.mxu0 0.0
  %3130 = vmatprep.subr.mxu0 0.0
  %3131 = vmatpush1.msra.mxu0 0.0
  %3132 = vmatprep.subr.mxu0 0.0
  %3133 = vmatpush1.msra.mxu0 0.0
  %3134 = vmatprep.subr.mxu0 0.0
  %3135 = vmatpush1.msra.mxu0 0.0
  %3136 = vmatprep.subr.mxu0 0.0
  %3137 = vmatpush1.msra.mxu0 0.0
  %3138 = vmatprep.subr.mxu0 0.0
  %3139 = vmatpush1.msra.mxu0 0.0
  %3140 = vmatprep.subr.mxu0 0.0
  %3141 = vmatpush1.msra.mxu0 0.0
  %3142 = vmatprep.subr.mxu0 0.0
  %3143 = vmatpush1.msra.mxu0 0.0
  %3144 = vmatprep.subr.mxu0 0.0
  %3145 = vmatpush1.msra.mxu0 0.0
  %3146 = vmatprep.subr.mxu0 0.0
  %3147 = vmatpush1.msra.mxu0 0.0
  %3148 = vmatprep.subr.mxu0 0.0
  %3149 = vmatpush1.msra.mxu0 0.0
  %3150 = vmatprep.subr.mxu0 0.0
  %3151 = vmatpush1.msra.mxu0 0.0
  %3152 = vmatprep.mubr.f32.mxu0 0.0
  %3153 = vmatmul.mubr.f32.gmra.mrb[0].mxu0 %v3065
  %v3154 = vpop.f32.mrb[0].mxu0
  %v3155 = vadd.f32 0.0, %v3154
  %v3156 = vpop.f32.mrb[0].mxu0
  %3157 = vmatprep.mubr.f32.mxu0 0.0
  %3158 = vmatmul.mubr.f32.gmra.mrb[0].mxu0 %v3067
  %v3159 = vpop.f32.mrb[0].mxu0
  %v3160 = vadd.f32 0.0, %v3159
  %v3161 = vpop.f32.mrb[0].mxu0
  %3162 = vmatprep.mubr.f32.mxu0 0.0
  %3163 = vmatmul.mubr.f32.gmra.mrb[0].mxu0 %v3069
  %v3164 = vpop.f32.mrb[0].mxu0
  %v3165 = vadd.f32 0.0, %v3164
  %v3166 = vpop.f32.mrb[0].mxu0
  %3167 = vmatprep.mubr.f32.mxu0 0.0
  %3168 = vmatmul.mubr.f32.gmra.mrb[0].mxu0 %v3071
  %v3169 = vpop.f32.mrb[0].mxu0
  %v3170 = vadd.f32 0.0, %v3169
  %v3171 = vpop.f32.mrb[0].mxu0
  %3172 = vmatprep.mubr.f32.mxu0 0.0
  %3173 = vmatmul.mubr.f32.gmra.mrb[0].mxu0 %v3073
  %v3174 = vpop.f32.mrb[0].mxu0
  %v3175 = vadd.f32 0.0, %v3174
  %v3176 = vpop.f32.mrb[0].mxu0
  %3177 = vmatprep.mubr.f32.mxu0 0.0
  %3178 = vmatmul.mubr.f32.gmra.mrb[0].mxu0 %v3075
  %v3179 = vpop.f32.mrb[0].mxu0
  %v3180 = vadd.f32 0.0, %v3179
  %v3181 = vpop.f32.mrb[0].mxu0
  %3182 = vmatprep.mubr.f32.mxu0 0.0
  %3183 = vmatmul.mubr.f32.gmra.mrb[0].mxu0 %v3077
  %v3184 = vpop.f32.mrb[0].mxu0
  %v3185 = vadd.f32 0.0, %v3184
  %v3186 = vpop.f32.mrb[0].mxu0
  %3187 = vmatprep.mubr.f32.mxu0 0.0
  %3188 = vmatmul.mubr.f32.gmra.mrb[0].mxu0 %v3079
  %v3189 = vpop.f32.mrb[0].mxu0
  %v3190 = vadd.f32 0.0, %v3189
  %v3191 = vpop.f32.mrb[0].mxu0
  %3192 = vdwg.mxu0
  %v3193 = vadd.f32 %v3006, %v3155
  %v3194 = vadd.f32 %v3011, %v3160
  %v3195 = vadd.f32 %v3016, %v3165
  %v3196 = vadd.f32 %v3021, %v3170
  %v3197 = vadd.f32 %v3026, %v3175
  %v3198 = vadd.f32 %v3031, %v3180
  %v3199 = vadd.f32 %v3036, %v3185
  %v3200 = vadd.f32 %v3041, %v3190
  %v3201 = vld [vmem:[%s19] sm:$0x1]
  %v3203 = vlaneseq
  %v3204 = vshrl.u32 %v3203, 7
  %v3205 = vsub.s32 0, %v3204
  %v3206 = vrot.slane %v3201, %v3205
  %v3208 = vadd.f32 %v3193, %v3206
  %v3209 = vadd.f32 %v3194, %v3206
  %v3210 = vadd.f32 %v3195, %v3206
  %v3211 = vadd.f32 %v3196, %v3206
  %v3212 = vadd.f32 %v3197, %v3206
  %v3213 = vadd.f32 %v3198, %v3206
  %v3214 = vadd.f32 %v3199, %v3206
  %v3215 = vadd.f32 %v3200, %v3206
  %v3216 = vld [vmem:[%s20] sm:$0x1]
  %v3217 = vld [vmem:[%s21] sm:$0x1]
  %v3218 = vmul.f32 %v3208, %v196
  %v3219 = vmul.f32 %v3209, %v197
  %v3220 = vmul.f32 %v3210, %v198
  %v3221 = vmul.f32 %v3211, %v199
  %v3222 = vmul.f32 %v3212, %v200
  %v3223 = vmul.f32 %v3213, %v201
  %v3224 = vmul.f32 %v3214, %v202
  %v3225 = vmul.f32 %v3215, %v203
  %v3226 = vadd.f32 %v3218, %v3219
  %v3227 = vadd.f32 %v3226, %v3220
  %v3228 = vadd.f32 %v3227, %v3221
  %v3229 = vadd.f32 %v3228, %v3222
  %v3230 = vadd.f32 %v3229, %v3223
  %v3231 = vadd.f32 %v3230, %v3224
  %v3232 = vadd.f32 %v3231, %v3225
  %v3233 = vrot.slane %v3232, 4
  %v3234 = vadd.f32 %v3232, %v3233
  %v3235 = vrot.slane %v3234, 2
  %v3236 = vadd.f32 %v3234, %v3235
  %v3237 = vrot.slane %v3236, 1
  %v3238 = vadd.f32 %v3236, %v3237
  %v3239 = vmul.f32 %v3218, %v3218
  %v3240 = vmul.f32 %v3219, %v3219
  %v3241 = vmul.f32 %v3220, %v3220
  %v3242 = vmul.f32 %v3221, %v3221
  %v3243 = vmul.f32 %v3222, %v3222
  %v3244 = vmul.f32 %v3223, %v3223
  %v3245 = vmul.f32 %v3224, %v3224
  %v3246 = vmul.f32 %v3225, %v3225
  %v3247 = vadd.f32 %v3239, %v3240
  %v3248 = vadd.f32 %v3247, %v3241
  %v3249 = vadd.f32 %v3248, %v3242
  %v3250 = vadd.f32 %v3249, %v3243
  %v3251 = vadd.f32 %v3250, %v3244
  %v3252 = vadd.f32 %v3251, %v3245
  %v3253 = vadd.f32 %v3252, %v3246
  %v3254 = vrot.slane %v3253, 4
  %v3255 = vadd.f32 %v3253, %v3254
  %v3256 = vrot.slane %v3255, 2
  %v3257 = vadd.f32 %v3255, %v3256
  %v3258 = vrot.slane %v3257, 1
  %v3259 = vadd.f32 %v3257, %v3258
  %v3260 = vmul.f32 %v3238, 0.016666668
  %v3261 = vmul.f32 %v3259, 0.016666668
  %v3262 = vmul.f32 %v3260, %v3260
  %v3263 = vsub.f32 %v3261, %v3262
  %v3264 = vmax.f32 %v3263, 0.0
  %v3265 = vadd.f32 %v3264, 1e-05
  %v3266 = vrsqrt.pop %v3265
  %v3267 = vmul.f32 %v3216, %v3266
  %v3268 = vmul.f32 %v3260, %v3267
  %v3269 = vsub.f32 %v3217, %v3268
  %v3271 = vlaneseq
  %v3272 = vshrl.u32 %v3271, 7
  %v3273 = vsub.s32 0, %v3272
  %v3274 = vrot.slane %v3267, %v3273
  %v3276 = vmul.f32 %v3208, %v3274
  %v3277 = vmul.f32 %v3209, %v3274
  %v3278 = vmul.f32 %v3210, %v3274
  %v3279 = vmul.f32 %v3211, %v3274
  %v3280 = vmul.f32 %v3212, %v3274
  %v3281 = vmul.f32 %v3213, %v3274
  %v3282 = vmul.f32 %v3214, %v3274
  %v3283 = vmul.f32 %v3215, %v3274
  %v3285 = vlaneseq
  %v3286 = vshrl.u32 %v3285, 7
  %v3287 = vsub.s32 0, %v3286
  %v3288 = vrot.slane %v3269, %v3287
  %v3290 = vadd.f32 %v3276, %v3288
  %v3291 = vadd.f32 %v3277, %v3288
  %v3292 = vadd.f32 %v3278, %v3288
  %v3293 = vadd.f32 %v3279, %v3288
  %v3294 = vadd.f32 %v3280, %v3288
  %v3295 = vadd.f32 %v3281, %v3288
  %v3296 = vadd.f32 %v3282, %v3288
  %v3297 = vadd.f32 %v3283, %v3288
  %v3298 = vmul.f32 %v3290, %v196
  %v3299 = vmul.f32 %v3291, %v197
  %v3300 = vmul.f32 %v3292, %v198
  %v3301 = vmul.f32 %v3293, %v199
  %v3302 = vmul.f32 %v3294, %v200
  %v3303 = vmul.f32 %v3295, %v201
  %v3304 = vmul.f32 %v3296, %v202
  %v3305 = vmul.f32 %v3297, %v203
  %v3306 = vld [vmem:[%s1] sm:$0x3]
  %vm3307 = vcmask 523264
  %v3309 = vsel %vm3307, %v3306, 0
  %3311 = vmatprep.subr.mxu0 0.0
  %3312 = vmatpush1.msra.mxu0 %v892
  %3313 = vmatprep.subr.mxu0 0.0
  %3314 = vmatpush1.msra.mxu0 %v893
  %3315 = vmatprep.subr.mxu0 0.0
  %3316 = vmatpush1.msra.mxu0 %v894
  %3317 = vmatprep.subr.mxu0 0.0
  %3318 = vmatpush1.msra.mxu0 %v895
  %3319 = vmatprep.subr.mxu0 0.0
  %3320 = vmatpush1.msra.mxu0 %v896
  %3321 = vmatprep.subr.mxu0 0.0
  %3322 = vmatpush1.msra.mxu0 %v897
  %3323 = vmatprep.subr.mxu0 0.0
  %3324 = vmatpush1.msra.mxu0 %v898
  %3325 = vmatprep.subr.mxu0 0.0
  %3326 = vmatpush1.msra.mxu0 %v899
  %3327 = vmatprep.subr.mxu0 0.0
  %3328 = vmatpush1.msra.mxu0 0.0
  %3329 = vmatprep.subr.mxu0 0.0
  %3330 = vmatpush1.msra.mxu0 0.0
  %3331 = vmatprep.subr.mxu0 0.0
  %3332 = vmatpush1.msra.mxu0 0.0
  %3333 = vmatprep.subr.mxu0 0.0
  %3334 = vmatpush1.msra.mxu0 0.0
  %3335 = vmatprep.subr.mxu0 0.0
  %3336 = vmatpush1.msra.mxu0 0.0
  %3337 = vmatprep.subr.mxu0 0.0
  %3338 = vmatpush1.msra.mxu0 0.0
  %3339 = vmatprep.subr.mxu0 0.0
  %3340 = vmatpush1.msra.mxu0 0.0
  %3341 = vmatprep.subr.mxu0 0.0
  %3342 = vmatpush1.msra.mxu0 0.0
  %3343 = vmatprep.subr.mxu0 0.0
  %3344 = vmatpush1.msra.mxu0 0.0
  %3345 = vmatprep.subr.mxu0 0.0
  %3346 = vmatpush1.msra.mxu0 0.0
  %3347 = vmatprep.subr.mxu0 0.0
  %3348 = vmatpush1.msra.mxu0 0.0
  %3349 = vmatprep.subr.mxu0 0.0
  %3350 = vmatpush1.msra.mxu0 0.0
  %3351 = vmatprep.subr.mxu0 0.0
  %3352 = vmatpush1.msra.mxu0 0.0
  %3353 = vmatprep.subr.mxu0 0.0
  %3354 = vmatpush1.msra.mxu0 0.0
  %3355 = vmatprep.subr.mxu0 0.0
  %3356 = vmatpush1.msra.mxu0 0.0
  %3357 = vmatprep.subr.mxu0 0.0
  %3358 = vmatpush1.msra.mxu0 0.0
  %3359 = vmatprep.subr.mxu0 0.0
  %3360 = vmatpush1.msra.mxu0 0.0
  %3361 = vmatprep.subr.mxu0 0.0
  %3362 = vmatpush1.msra.mxu0 0.0
  %3363 = vmatprep.subr.mxu0 0.0
  %3364 = vmatpush1.msra.mxu0 0.0
  %3365 = vmatprep.subr.mxu0 0.0
  %3366 = vmatpush1.msra.mxu0 0.0
  %3367 = vmatprep.subr.mxu0 0.0
  %3368 = vmatpush1.msra.mxu0 0.0
  %3369 = vmatprep.subr.mxu0 0.0
  %3370 = vmatpush1.msra.mxu0 0.0
  %3371 = vmatprep.subr.mxu0 0.0
  %3372 = vmatpush1.msra.mxu0 0.0
  %3373 = vmatprep.subr.mxu0 0.0
  %3374 = vmatpush1.msra.mxu0 0.0
  %3375 = vmatprep.mubr.f32.mxu0 0.0
  %3376 = vmatmul.mubr.f32.gmra.mrb[0].mxu0 %v3309
  %v3377 = vpop.f32.mrb[0].mxu0
  %v3378 = vadd.f32 0.0, %v3377
  %v3379 = vpop.f32.mrb[0].mxu0
  %3380 = vdwg.mxu0
  %v3381 = vmax.f32 %v3378, 0.0
  %3382 = vmatprep.subr.mxu0 0.0
  %3383 = vmatpush1.msra.mxu0 %v2018
  %3384 = vmatprep.subr.mxu0 0.0
  %3385 = vmatpush1.msra.mxu0 %v2019
  %3386 = vmatprep.subr.mxu0 0.0
  %3387 = vmatpush1.msra.mxu0 %v2020
  %3388 = vmatprep.subr.mxu0 0.0
  %3389 = vmatpush1.msra.mxu0 %v2021
  %3390 = vmatprep.subr.mxu0 0.0
  %3391 = vmatpush1.msra.mxu0 %v2022
  %3392 = vmatprep.subr.mxu0 0.0
  %3393 = vmatpush1.msra.mxu0 %v2023
  %3394 = vmatprep.subr.mxu0 0.0
  %3395 = vmatpush1.msra.mxu0 %v2024
  %3396 = vmatprep.subr.mxu0 0.0
  %3397 = vmatpush1.msra.mxu0 %v2025
  %3398 = vmatprep.subr.mxu0 0.0
  %3399 = vmatpush1.msra.mxu0 0.0
  %3400 = vmatprep.subr.mxu0 0.0
  %3401 = vmatpush1.msra.mxu0 0.0
  %3402 = vmatprep.subr.mxu0 0.0
  %3403 = vmatpush1.msra.mxu0 0.0
  %3404 = vmatprep.subr.mxu0 0.0
  %3405 = vmatpush1.msra.mxu0 0.0
  %3406 = vmatprep.subr.mxu0 0.0
  %3407 = vmatpush1.msra.mxu0 0.0
  %3408 = vmatprep.subr.mxu0 0.0
  %3409 = vmatpush1.msra.mxu0 0.0
  %3410 = vmatprep.subr.mxu0 0.0
  %3411 = vmatpush1.msra.mxu0 0.0
  %3412 = vmatprep.subr.mxu0 0.0
  %3413 = vmatpush1.msra.mxu0 0.0
  %3414 = vmatprep.subr.mxu0 0.0
  %3415 = vmatpush1.msra.mxu0 0.0
  %3416 = vmatprep.subr.mxu0 0.0
  %3417 = vmatpush1.msra.mxu0 0.0
  %3418 = vmatprep.subr.mxu0 0.0
  %3419 = vmatpush1.msra.mxu0 0.0
  %3420 = vmatprep.subr.mxu0 0.0
  %3421 = vmatpush1.msra.mxu0 0.0
  %3422 = vmatprep.subr.mxu0 0.0
  %3423 = vmatpush1.msra.mxu0 0.0
  %3424 = vmatprep.subr.mxu0 0.0
  %3425 = vmatpush1.msra.mxu0 0.0
  %3426 = vmatprep.subr.mxu0 0.0
  %3427 = vmatpush1.msra.mxu0 0.0
  %3428 = vmatprep.subr.mxu0 0.0
  %3429 = vmatpush1.msra.mxu0 0.0
  %3430 = vmatprep.subr.mxu0 0.0
  %3431 = vmatpush1.msra.mxu0 0.0
  %3432 = vmatprep.subr.mxu0 0.0
  %3433 = vmatpush1.msra.mxu0 0.0
  %3434 = vmatprep.subr.mxu0 0.0
  %3435 = vmatpush1.msra.mxu0 0.0
  %3436 = vmatprep.subr.mxu0 0.0
  %3437 = vmatpush1.msra.mxu0 0.0
  %3438 = vmatprep.subr.mxu0 0.0
  %3439 = vmatpush1.msra.mxu0 0.0
  %3440 = vmatprep.subr.mxu0 0.0
  %3441 = vmatpush1.msra.mxu0 0.0
  %3442 = vmatprep.subr.mxu0 0.0
  %3443 = vmatpush1.msra.mxu0 0.0
  %3444 = vmatprep.subr.mxu0 0.0
  %3445 = vmatpush1.msra.mxu0 0.0
  %3446 = vmatprep.mubr.f32.mxu0 0.0
  %3447 = vmatmul.mubr.f32.gmra.mrb[0].mxu0 %v3309
  %v3448 = vpop.f32.mrb[0].mxu0
  %v3449 = vadd.f32 0.0, %v3448
  %v3450 = vpop.f32.mrb[0].mxu0
  %3451 = vdwg.mxu0
  %v3452 = vmax.f32 %v3449, 0.0
  %3453 = vmatprep.subr.mxu0 0.0
  %3454 = vmatpush1.msra.mxu0 %v3298
  %3455 = vmatprep.subr.mxu0 0.0
  %3456 = vmatpush1.msra.mxu0 %v3299
  %3457 = vmatprep.subr.mxu0 0.0
  %3458 = vmatpush1.msra.mxu0 %v3300
  %3459 = vmatprep.subr.mxu0 0.0
  %3460 = vmatpush1.msra.mxu0 %v3301
  %3461 = vmatprep.subr.mxu0 0.0
  %3462 = vmatpush1.msra.mxu0 %v3302
  %3463 = vmatprep.subr.mxu0 0.0
  %3464 = vmatpush1.msra.mxu0 %v3303
  %3465 = vmatprep.subr.mxu0 0.0
  %3466 = vmatpush1.msra.mxu0 %v3304
  %3467 = vmatprep.subr.mxu0 0.0
  %3468 = vmatpush1.msra.mxu0 %v3305
  %3469 = vmatprep.subr.mxu0 0.0
  %3470 = vmatpush1.msra.mxu0 0.0
  %3471 = vmatprep.subr.mxu0 0.0
  %3472 = vmatpush1.msra.mxu0 0.0
  %3473 = vmatprep.subr.mxu0 0.0
  %3474 = vmatpush1.msra.mxu0 0.0
  %3475 = vmatprep.subr.mxu0 0.0
  %3476 = vmatpush1.msra.mxu0 0.0
  %3477 = vmatprep.subr.mxu0 0.0
  %3478 = vmatpush1.msra.mxu0 0.0
  %3479 = vmatprep.subr.mxu0 0.0
  %3480 = vmatpush1.msra.mxu0 0.0
  %3481 = vmatprep.subr.mxu0 0.0
  %3482 = vmatpush1.msra.mxu0 0.0
  %3483 = vmatprep.subr.mxu0 0.0
  %3484 = vmatpush1.msra.mxu0 0.0
  %3485 = vmatprep.subr.mxu0 0.0
  %3486 = vmatpush1.msra.mxu0 0.0
  %3487 = vmatprep.subr.mxu0 0.0
  %3488 = vmatpush1.msra.mxu0 0.0
  %3489 = vmatprep.subr.mxu0 0.0
  %3490 = vmatpush1.msra.mxu0 0.0
  %3491 = vmatprep.subr.mxu0 0.0
  %3492 = vmatpush1.msra.mxu0 0.0
  %3493 = vmatprep.subr.mxu0 0.0
  %3494 = vmatpush1.msra.mxu0 0.0
  %3495 = vmatprep.subr.mxu0 0.0
  %3496 = vmatpush1.msra.mxu0 0.0
  %3497 = vmatprep.subr.mxu0 0.0
  %3498 = vmatpush1.msra.mxu0 0.0
  %3499 = vmatprep.subr.mxu0 0.0
  %3500 = vmatpush1.msra.mxu0 0.0
  %3501 = vmatprep.subr.mxu0 0.0
  %3502 = vmatpush1.msra.mxu0 0.0
  %3503 = vmatprep.subr.mxu0 0.0
  %3504 = vmatpush1.msra.mxu0 0.0
  %3505 = vmatprep.subr.mxu0 0.0
  %3506 = vmatpush1.msra.mxu0 0.0
  %3507 = vmatprep.subr.mxu0 0.0
  %3508 = vmatpush1.msra.mxu0 0.0
  %3509 = vmatprep.subr.mxu0 0.0
  %3510 = vmatpush1.msra.mxu0 0.0
  %3511 = vmatprep.subr.mxu0 0.0
  %3512 = vmatpush1.msra.mxu0 0.0
  %3513 = vmatprep.subr.mxu0 0.0
  %3514 = vmatpush1.msra.mxu0 0.0
  %3515 = vmatprep.subr.mxu0 0.0
  %3516 = vmatpush1.msra.mxu0 0.0
  %3517 = vmatprep.mubr.f32.mxu0 0.0
  %3518 = vmatmul.mubr.f32.gmra.mrb[0].mxu0 %v3309
  %v3519 = vpop.f32.mrb[0].mxu0
  %v3520 = vadd.f32 0.0, %v3519
  %v3521 = vpop.f32.mrb[0].mxu0
  %3522 = vdwg.mxu0
  %v3523 = vmax.f32 %v3520, 0.0
  %v3524 = vld [vmem:[%s22] sm:$0xff]
  %v3525 = vld [vmem:[%s22 + $0x8] sm:$0xff]
  %v3526 = vld [vmem:[%s22 + $0x10] sm:$0xff]
  %v3527 = vld [vmem:[%s22 + $0x18] sm:$0xff]
  %v3528 = vld [vmem:[%s22 + $0x20] sm:$0xff]
  %v3529 = vld [vmem:[%s22 + $0x28] sm:$0xff]
  %v3530 = vld [vmem:[%s22 + $0x30] sm:$0xff]
  %v3531 = vld [vmem:[%s22 + $0x38] sm:$0xff]
  %v3532 = vld [vmem:[%s22 + $0x40] sm:$0xff]
  %v3533 = vld [vmem:[%s22 + $0x48] sm:$0xff]
  %v3534 = vld [vmem:[%s22 + $0x50] sm:$0xff]
  %v3535 = vld [vmem:[%s22 + $0x58] sm:$0xff]
  %v3536 = vld [vmem:[%s22 + $0x60] sm:$0xff]
  %v3537 = vld [vmem:[%s22 + $0x68] sm:$0xff]
  %v3538 = vld [vmem:[%s22 + $0x70] sm:$0xff]
  %v3539 = vld [vmem:[%s22 + $0x78] sm:$0xff]
  %v3540 = vld [vmem:[%s22 + $0x80] sm:$0xff]
  %v3541 = vld [vmem:[%s22 + $0x88] sm:$0xff]
  %v3542 = vld [vmem:[%s22 + $0x90] sm:$0xff]
  %v3543 = vld [vmem:[%s22 + $0x98] sm:$0xff]
  %v3544 = vld [vmem:[%s22 + $0xa0] sm:$0xff]
  %v3545 = vld [vmem:[%s22 + $0xa8] sm:$0xff]
  %v3546 = vld [vmem:[%s22 + $0xb0] sm:$0xff]
  %v3547 = vld [vmem:[%s22 + $0xb8] sm:$0xff]
  %v3548 = vld [vmem:[%s22 + $0xc0] sm:$0xff]
  %v3549 = vld [vmem:[%s22 + $0xc8] sm:$0xff]
  %v3550 = vld [vmem:[%s22 + $0xd0] sm:$0xff]
  %v3551 = vld [vmem:[%s22 + $0xd8] sm:$0xff]
  %v3552 = vld [vmem:[%s22 + $0xe0] sm:$0xff]
  %v3553 = vld [vmem:[%s22 + $0xe8] sm:$0xff]
  %v3554 = vld [vmem:[%s22 + $0xf0] sm:$0xff]
  %v3555 = vld [vmem:[%s22 + $0xf8] sm:$0xff]
  %3556 = vmatprep.subr.mxu0 0.0
  %3557 = vmatpush1.msra.mxu0 %v3540
  %3558 = vmatprep.subr.mxu0 0.0
  %3559 = vmatpush1.msra.mxu0 %v3541
  %3560 = vmatprep.subr.mxu0 0.0
  %3561 = vmatpush1.msra.mxu0 %v3542
  %3562 = vmatprep.subr.mxu0 0.0
  %3563 = vmatpush1.msra.mxu0 %v3543
  %3564 = vmatprep.subr.mxu0 0.0
  %3565 = vmatpush1.msra.mxu0 %v3544
  %3566 = vmatprep.subr.mxu0 0.0
  %3567 = vmatpush1.msra.mxu0 %v3545
  %3568 = vmatprep.subr.mxu0 0.0
  %3569 = vmatpush1.msra.mxu0 %v3546
  %3570 = vmatprep.subr.mxu0 0.0
  %3571 = vmatpush1.msra.mxu0 %v3547
  %3572 = vmatprep.subr.mxu0 0.0
  %3573 = vmatpush1.msra.mxu0 %v3548
  %3574 = vmatprep.subr.mxu0 0.0
  %3575 = vmatpush1.msra.mxu0 %v3549
  %3576 = vmatprep.subr.mxu0 0.0
  %3577 = vmatpush1.msra.mxu0 %v3550
  %3578 = vmatprep.subr.mxu0 0.0
  %3579 = vmatpush1.msra.mxu0 %v3551
  %3580 = vmatprep.subr.mxu0 0.0
  %3581 = vmatpush1.msra.mxu0 %v3552
  %3582 = vmatprep.subr.mxu0 0.0
  %3583 = vmatpush1.msra.mxu0 %v3553
  %3584 = vmatprep.subr.mxu0 0.0
  %3585 = vmatpush1.msra.mxu0 %v3554
  %3586 = vmatprep.subr.mxu0 0.0
  %3587 = vmatpush1.msra.mxu0 %v3555
  %3588 = vmatprep.subr.mxu0 0.0
  %3589 = vmatpush1.msra.mxu0 0.0
  %3590 = vmatprep.subr.mxu0 0.0
  %3591 = vmatpush1.msra.mxu0 0.0
  %3592 = vmatprep.subr.mxu0 0.0
  %3593 = vmatpush1.msra.mxu0 0.0
  %3594 = vmatprep.subr.mxu0 0.0
  %3595 = vmatpush1.msra.mxu0 0.0
  %3596 = vmatprep.subr.mxu0 0.0
  %3597 = vmatpush1.msra.mxu0 0.0
  %3598 = vmatprep.subr.mxu0 0.0
  %3599 = vmatpush1.msra.mxu0 0.0
  %3600 = vmatprep.subr.mxu0 0.0
  %3601 = vmatpush1.msra.mxu0 0.0
  %3602 = vmatprep.subr.mxu0 0.0
  %3603 = vmatpush1.msra.mxu0 0.0
  %3604 = vmatprep.subr.mxu0 0.0
  %3605 = vmatpush1.msra.mxu0 0.0
  %3606 = vmatprep.subr.mxu0 0.0
  %3607 = vmatpush1.msra.mxu0 0.0
  %3608 = vmatprep.subr.mxu0 0.0
  %3609 = vmatpush1.msra.mxu0 0.0
  %3610 = vmatprep.subr.mxu0 0.0
  %3611 = vmatpush1.msra.mxu0 0.0
  %3612 = vmatprep.subr.mxu0 0.0
  %3613 = vmatpush1.msra.mxu0 0.0
  %3614 = vmatprep.subr.mxu0 0.0
  %3615 = vmatpush1.msra.mxu0 0.0
  %3616 = vmatprep.subr.mxu0 0.0
  %3617 = vmatpush1.msra.mxu0 0.0
  %3618 = vmatprep.subr.mxu0 0.0
  %3619 = vmatpush1.msra.mxu0 0.0
  %3620 = vmatprep.mubr.f32.mxu0 0.0
  %3621 = vmatmul.mubr.f32.gmra.mrb[0].mxu0 %v3452
  %v3622 = vpop.f32.mrb[0].mxu0
  %v3623 = vadd.f32 0.0, %v3622
  %v3624 = vpop.f32.mrb[0].mxu0
  %3625 = vdwg.mxu0
  %3626 = vmatprep.subr.mxu0 0.0
  %3627 = vmatpush1.msra.mxu0 %v3524
  %3628 = vmatprep.subr.mxu0 0.0
  %3629 = vmatpush1.msra.mxu0 %v3525
  %3630 = vmatprep.subr.mxu0 0.0
  %3631 = vmatpush1.msra.mxu0 %v3526
  %3632 = vmatprep.subr.mxu0 0.0
  %3633 = vmatpush1.msra.mxu0 %v3527
  %3634 = vmatprep.subr.mxu0 0.0
  %3635 = vmatpush1.msra.mxu0 %v3528
  %3636 = vmatprep.subr.mxu0 0.0
  %3637 = vmatpush1.msra.mxu0 %v3529
  %3638 = vmatprep.subr.mxu0 0.0
  %3639 = vmatpush1.msra.mxu0 %v3530
  %3640 = vmatprep.subr.mxu0 0.0
  %3641 = vmatpush1.msra.mxu0 %v3531
  %3642 = vmatprep.subr.mxu0 0.0
  %3643 = vmatpush1.msra.mxu0 %v3532
  %3644 = vmatprep.subr.mxu0 0.0
  %3645 = vmatpush1.msra.mxu0 %v3533
  %3646 = vmatprep.subr.mxu0 0.0
  %3647 = vmatpush1.msra.mxu0 %v3534
  %3648 = vmatprep.subr.mxu0 0.0
  %3649 = vmatpush1.msra.mxu0 %v3535
  %3650 = vmatprep.subr.mxu0 0.0
  %3651 = vmatpush1.msra.mxu0 %v3536
  %3652 = vmatprep.subr.mxu0 0.0
  %3653 = vmatpush1.msra.mxu0 %v3537
  %3654 = vmatprep.subr.mxu0 0.0
  %3655 = vmatpush1.msra.mxu0 %v3538
  %3656 = vmatprep.subr.mxu0 0.0
  %3657 = vmatpush1.msra.mxu0 %v3539
  %3658 = vmatprep.subr.mxu0 0.0
  %3659 = vmatpush1.msra.mxu0 0.0
  %3660 = vmatprep.subr.mxu0 0.0
  %3661 = vmatpush1.msra.mxu0 0.0
  %3662 = vmatprep.subr.mxu0 0.0
  %3663 = vmatpush1.msra.mxu0 0.0
  %3664 = vmatprep.subr.mxu0 0.0
  %3665 = vmatpush1.msra.mxu0 0.0
  %3666 = vmatprep.subr.mxu0 0.0
  %3667 = vmatpush1.msra.mxu0 0.0
  %3668 = vmatprep.subr.mxu0 0.0
  %3669 = vmatpush1.msra.mxu0 0.0
  %3670 = vmatprep.subr.mxu0 0.0
  %3671 = vmatpush1.msra.mxu0 0.0
  %3672 = vmatprep.subr.mxu0 0.0
  %3673 = vmatpush1.msra.mxu0 0.0
  %3674 = vmatprep.subr.mxu0 0.0
  %3675 = vmatpush1.msra.mxu0 0.0
  %3676 = vmatprep.subr.mxu0 0.0
  %3677 = vmatpush1.msra.mxu0 0.0
  %3678 = vmatprep.subr.mxu0 0.0
  %3679 = vmatpush1.msra.mxu0 0.0
  %3680 = vmatprep.subr.mxu0 0.0
  %3681 = vmatpush1.msra.mxu0 0.0
  %3682 = vmatprep.subr.mxu0 0.0
  %3683 = vmatpush1.msra.mxu0 0.0
  %3684 = vmatprep.subr.mxu0 0.0
  %3685 = vmatpush1.msra.mxu0 0.0
  %3686 = vmatprep.subr.mxu0 0.0
  %3687 = vmatpush1.msra.mxu0 0.0
  %3688 = vmatprep.subr.mxu0 0.0
  %3689 = vmatpush1.msra.mxu0 0.0
  %3690 = vmatprep.mubr.f32.mxu0 0.0
  %3691 = vmatmul.mubr.f32.gmra.mrb[0].mxu0 %v3381
  %v3692 = vpop.f32.mrb[0].mxu0
  %v3693 = vadd.f32 %v3623, %v3692
  %v3694 = vpop.f32.mrb[0].mxu0
  %3695 = vdwg.mxu0
  %v3696 = vld [vmem:[%s22 + $0x100] sm:$0xff]
  %v3697 = vld [vmem:[%s22 + $0x108] sm:$0xff]
  %v3698 = vld [vmem:[%s22 + $0x110] sm:$0xff]
  %v3699 = vld [vmem:[%s22 + $0x118] sm:$0xff]
  %v3700 = vld [vmem:[%s22 + $0x120] sm:$0xff]
  %v3701 = vld [vmem:[%s22 + $0x128] sm:$0xff]
  %v3702 = vld [vmem:[%s22 + $0x130] sm:$0xff]
  %v3703 = vld [vmem:[%s22 + $0x138] sm:$0xff]
  %v3704 = vld [vmem:[%s22 + $0x140] sm:$0xff]
  %v3705 = vld [vmem:[%s22 + $0x148] sm:$0xff]
  %v3706 = vld [vmem:[%s22 + $0x150] sm:$0xff]
  %v3707 = vld [vmem:[%s22 + $0x158] sm:$0xff]
  %v3708 = vld [vmem:[%s22 + $0x160] sm:$0xff]
  %v3709 = vld [vmem:[%s22 + $0x168] sm:$0xff]
  %v3710 = vld [vmem:[%s22 + $0x170] sm:$0xff]
  %v3711 = vld [vmem:[%s22 + $0x178] sm:$0xff]
  %3712 = vmatprep.subr.mxu0 0.0
  %3713 = vmatpush1.msra.mxu0 %v3696
  %3714 = vmatprep.subr.mxu0 0.0
  %3715 = vmatpush1.msra.mxu0 %v3697
  %3716 = vmatprep.subr.mxu0 0.0
  %3717 = vmatpush1.msra.mxu0 %v3698
  %3718 = vmatprep.subr.mxu0 0.0
  %3719 = vmatpush1.msra.mxu0 %v3699
  %3720 = vmatprep.subr.mxu0 0.0
  %3721 = vmatpush1.msra.mxu0 %v3700
  %3722 = vmatprep.subr.mxu0 0.0
  %3723 = vmatpush1.msra.mxu0 %v3701
  %3724 = vmatprep.subr.mxu0 0.0
  %3725 = vmatpush1.msra.mxu0 %v3702
  %3726 = vmatprep.subr.mxu0 0.0
  %3727 = vmatpush1.msra.mxu0 %v3703
  %3728 = vmatprep.subr.mxu0 0.0
  %3729 = vmatpush1.msra.mxu0 %v3704
  %3730 = vmatprep.subr.mxu0 0.0
  %3731 = vmatpush1.msra.mxu0 %v3705
  %3732 = vmatprep.subr.mxu0 0.0
  %3733 = vmatpush1.msra.mxu0 %v3706
  %3734 = vmatprep.subr.mxu0 0.0
  %3735 = vmatpush1.msra.mxu0 %v3707
  %3736 = vmatprep.subr.mxu0 0.0
  %3737 = vmatpush1.msra.mxu0 %v3708
  %3738 = vmatprep.subr.mxu0 0.0
  %3739 = vmatpush1.msra.mxu0 %v3709
  %3740 = vmatprep.subr.mxu0 0.0
  %3741 = vmatpush1.msra.mxu0 %v3710
  %3742 = vmatprep.subr.mxu0 0.0
  %3743 = vmatpush1.msra.mxu0 %v3711
  %3744 = vmatprep.subr.mxu0 0.0
  %3745 = vmatpush1.msra.mxu0 0.0
  %3746 = vmatprep.subr.mxu0 0.0
  %3747 = vmatpush1.msra.mxu0 0.0
  %3748 = vmatprep.subr.mxu0 0.0
  %3749 = vmatpush1.msra.mxu0 0.0
  %3750 = vmatprep.subr.mxu0 0.0
  %3751 = vmatpush1.msra.mxu0 0.0
  %3752 = vmatprep.subr.mxu0 0.0
  %3753 = vmatpush1.msra.mxu0 0.0
  %3754 = vmatprep.subr.mxu0 0.0
  %3755 = vmatpush1.msra.mxu0 0.0
  %3756 = vmatprep.subr.mxu0 0.0
  %3757 = vmatpush1.msra.mxu0 0.0
  %3758 = vmatprep.subr.mxu0 0.0
  %3759 = vmatpush1.msra.mxu0 0.0
  %3760 = vmatprep.subr.mxu0 0.0
  %3761 = vmatpush1.msra.mxu0 0.0
  %3762 = vmatprep.subr.mxu0 0.0
  %3763 = vmatpush1.msra.mxu0 0.0
  %3764 = vmatprep.subr.mxu0 0.0
  %3765 = vmatpush1.msra.mxu0 0.0
  %3766 = vmatprep.subr.mxu0 0.0
  %3767 = vmatpush1.msra.mxu0 0.0
  %3768 = vmatprep.subr.mxu0 0.0
  %3769 = vmatpush1.msra.mxu0 0.0
  %3770 = vmatprep.subr.mxu0 0.0
  %3771 = vmatpush1.msra.mxu0 0.0
  %3772 = vmatprep.subr.mxu0 0.0
  %3773 = vmatpush1.msra.mxu0 0.0
  %3774 = vmatprep.subr.mxu0 0.0
  %3775 = vmatpush1.msra.mxu0 0.0
  %3776 = vmatprep.mubr.f32.mxu0 0.0
  %3777 = vmatmul.mubr.f32.gmra.mrb[0].mxu0 %v3523
  %v3778 = vpop.f32.mrb[0].mxu0
  %v3779 = vadd.f32 0.0, %v3778
  %v3780 = vpop.f32.mrb[0].mxu0
  %3781 = vdwg.mxu0
  %v3782 = vadd.f32 %v3693, %v3779
  %v3783 = vld [vmem:[%s23] sm:$0x1]
  %v3785 = vlaneseq
  %v3786 = vshrl.u32 %v3785, 7
  %v3787 = vsub.s32 0, %v3786
  %v3788 = vrot.slane %v3783, %v3787
  %v3790 = vadd.f32 %v3782, %v3788
  %v3791 = vmax.f32 %v3790, 0.0
  %v3792 = vld [vmem:[%s24] sm:$0xff]
  %v3793 = vld [vmem:[%s24 + $0x8] sm:$0xff]
  %v3794 = vld [vmem:[%s24 + $0x10] sm:$0xff]
  %v3795 = vld [vmem:[%s24 + $0x18] sm:$0xff]
  %v3796 = vld [vmem:[%s24 + $0x20] sm:$0xff]
  %v3797 = vld [vmem:[%s24 + $0x28] sm:$0xff]
  %v3798 = vld [vmem:[%s24 + $0x30] sm:$0xff]
  %v3799 = vld [vmem:[%s24 + $0x38] sm:$0xff]
  %v3800 = vld [vmem:[%s24 + $0x40] sm:$0xff]
  %v3801 = vld [vmem:[%s24 + $0x48] sm:$0xff]
  %v3802 = vld [vmem:[%s24 + $0x50] sm:$0xff]
  %v3803 = vld [vmem:[%s24 + $0x58] sm:$0xff]
  %v3804 = vld [vmem:[%s24 + $0x60] sm:$0xff]
  %v3805 = vld [vmem:[%s24 + $0x68] sm:$0xff]
  %v3806 = vld [vmem:[%s24 + $0x70] sm:$0xff]
  %v3807 = vld [vmem:[%s24 + $0x78] sm:$0xff]
  %v3808 = vld [vmem:[%s25] sm:$0x1]
  %v3810 = vlaneseq
  %v3811 = vshrl.u32 %v3810, 7
  %v3812 = vsub.s32 0, %v3811
  %v3813 = vrot.slane %v3808, %v3812
  %3815 = vmatprep.subr.mxu0 0.0
  %3816 = vmatpush1.msra.mxu0 %v3792
  %3817 = vmatprep.subr.mxu0 0.0
  %3818 = vmatpush1.msra.mxu0 %v3793
  %3819 = vmatprep.subr.mxu0 0.0
  %3820 = vmatpush1.msra.mxu0 %v3794
  %3821 = vmatprep.subr.mxu0 0.0
  %3822 = vmatpush1.msra.mxu0 %v3795
  %3823 = vmatprep.subr.mxu0 0.0
  %3824 = vmatpush1.msra.mxu0 %v3796
  %3825 = vmatprep.subr.mxu0 0.0
  %3826 = vmatpush1.msra.mxu0 %v3797
  %3827 = vmatprep.subr.mxu0 0.0
  %3828 = vmatpush1.msra.mxu0 %v3798
  %3829 = vmatprep.subr.mxu0 0.0
  %3830 = vmatpush1.msra.mxu0 %v3799
  %3831 = vmatprep.subr.mxu0 0.0
  %3832 = vmatpush1.msra.mxu0 %v3800
  %3833 = vmatprep.subr.mxu0 0.0
  %3834 = vmatpush1.msra.mxu0 %v3801
  %3835 = vmatprep.subr.mxu0 0.0
  %3836 = vmatpush1.msra.mxu0 %v3802
  %3837 = vmatprep.subr.mxu0 0.0
  %3838 = vmatpush1.msra.mxu0 %v3803
  %3839 = vmatprep.subr.mxu0 0.0
  %3840 = vmatpush1.msra.mxu0 %v3804
  %3841 = vmatprep.subr.mxu0 0.0
  %3842 = vmatpush1.msra.mxu0 %v3805
  %3843 = vmatprep.subr.mxu0 0.0
  %3844 = vmatpush1.msra.mxu0 %v3806
  %3845 = vmatprep.subr.mxu0 0.0
  %3846 = vmatpush1.msra.mxu0 %v3807
  %3847 = vmatprep.subr.mxu0 0.0
  %3848 = vmatpush1.msra.mxu0 0.0
  %3849 = vmatprep.subr.mxu0 0.0
  %3850 = vmatpush1.msra.mxu0 0.0
  %3851 = vmatprep.subr.mxu0 0.0
  %3852 = vmatpush1.msra.mxu0 0.0
  %3853 = vmatprep.subr.mxu0 0.0
  %3854 = vmatpush1.msra.mxu0 0.0
  %3855 = vmatprep.subr.mxu0 0.0
  %3856 = vmatpush1.msra.mxu0 0.0
  %3857 = vmatprep.subr.mxu0 0.0
  %3858 = vmatpush1.msra.mxu0 0.0
  %3859 = vmatprep.subr.mxu0 0.0
  %3860 = vmatpush1.msra.mxu0 0.0
  %3861 = vmatprep.subr.mxu0 0.0
  %3862 = vmatpush1.msra.mxu0 0.0
  %3863 = vmatprep.subr.mxu0 0.0
  %3864 = vmatpush1.msra.mxu0 0.0
  %3865 = vmatprep.subr.mxu0 0.0
  %3866 = vmatpush1.msra.mxu0 0.0
  %3867 = vmatprep.subr.mxu0 0.0
  %3868 = vmatpush1.msra.mxu0 0.0
  %3869 = vmatprep.subr.mxu0 0.0
  %3870 = vmatpush1.msra.mxu0 0.0
  %3871 = vmatprep.subr.mxu0 0.0
  %3872 = vmatpush1.msra.mxu0 0.0
  %3873 = vmatprep.subr.mxu0 0.0
  %3874 = vmatpush1.msra.mxu0 0.0
  %3875 = vmatprep.subr.mxu0 0.0
  %3876 = vmatpush1.msra.mxu0 0.0
  %3877 = vmatprep.subr.mxu0 0.0
  %3878 = vmatpush1.msra.mxu0 0.0
  %3879 = vmatprep.mubr.f32.mxu0 0.0
  %3880 = vmatmul.mubr.f32.gmra.mrb[0].mxu0 %v3791
  %v3881 = vpop.f32.mrb[0].mxu0
  %v3882 = vadd.f32 %v3813, %v3881
  %v3883 = vpop.f32.mrb[0].mxu0
  %3884 = vdwg.mxu0
  %v3885 = vtanh.pop %v3882
  %v3886 = vld [vmem:[%s26] sm:$0xff]
  %v3887 = vld [vmem:[%s26 + $0x8] sm:$0xff]
  %v3888 = vld [vmem:[%s26 + $0x10] sm:$0xff]
  %v3889 = vld [vmem:[%s26 + $0x18] sm:$0xff]
  %v3890 = vld [vmem:[%s26 + $0x20] sm:$0xff]
  %v3891 = vld [vmem:[%s26 + $0x28] sm:$0xff]
  %v3892 = vld [vmem:[%s26 + $0x30] sm:$0xff]
  %v3893 = vld [vmem:[%s26 + $0x38] sm:$0xff]
  %v3894 = vld [vmem:[#allocation4] sm:$0x1]
  %v3896 = vlaneseq
  %v3897 = vshrl.u32 %v3896, 7
  %v3898 = vsub.s32 0, %v3897
  %v3899 = vrot.slane %v3894, %v3898
  %v3902 = vsel %vm3307, %v3885, 0
  %3904 = vmatprep.subr.mxu0 0.0
  %3905 = vmatpush1.msra.mxu0 %v3886
  %3906 = vmatprep.subr.mxu0 0.0
  %3907 = vmatpush1.msra.mxu0 %v3887
  %3908 = vmatprep.subr.mxu0 0.0
  %3909 = vmatpush1.msra.mxu0 %v3888
  %3910 = vmatprep.subr.mxu0 0.0
  %3911 = vmatpush1.msra.mxu0 %v3889
  %3912 = vmatprep.subr.mxu0 0.0
  %3913 = vmatpush1.msra.mxu0 %v3890
  %3914 = vmatprep.subr.mxu0 0.0
  %3915 = vmatpush1.msra.mxu0 %v3891
  %3916 = vmatprep.subr.mxu0 0.0
  %3917 = vmatpush1.msra.mxu0 %v3892
  %3918 = vmatprep.subr.mxu0 0.0
  %3919 = vmatpush1.msra.mxu0 %v3893
  %3920 = vmatprep.subr.mxu0 0.0
  %3921 = vmatpush1.msra.mxu0 0.0
  %3922 = vmatprep.subr.mxu0 0.0
  %3923 = vmatpush1.msra.mxu0 0.0
  %3924 = vmatprep.subr.mxu0 0.0
  %3925 = vmatpush1.msra.mxu0 0.0
  %3926 = vmatprep.subr.mxu0 0.0
  %3927 = vmatpush1.msra.mxu0 0.0
  %3928 = vmatprep.subr.mxu0 0.0
  %3929 = vmatpush1.msra.mxu0 0.0
  %3930 = vmatprep.subr.mxu0 0.0
  %3931 = vmatpush1.msra.mxu0 0.0
  %3932 = vmatprep.subr.mxu0 0.0
  %3933 = vmatpush1.msra.mxu0 0.0
  %3934 = vmatprep.subr.mxu0 0.0
  %3935 = vmatpush1.msra.mxu0 0.0
  %3936 = vmatprep.subr.mxu0 0.0
  %3937 = vmatpush1.msra.mxu0 0.0
  %3938 = vmatprep.subr.mxu0 0.0
  %3939 = vmatpush1.msra.mxu0 0.0
  %3940 = vmatprep.subr.mxu0 0.0
  %3941 = vmatpush1.msra.mxu0 0.0
  %3942 = vmatprep.subr.mxu0 0.0
  %3943 = vmatpush1.msra.mxu0 0.0
  %3944 = vmatprep.subr.mxu0 0.0
  %3945 = vmatpush1.msra.mxu0 0.0
  %3946 = vmatprep.subr.mxu0 0.0
  %3947 = vmatpush1.msra.mxu0 0.0
  %3948 = vmatprep.subr.mxu0 0.0
  %3949 = vmatpush1.msra.mxu0 0.0
  %3950 = vmatprep.subr.mxu0 0.0
  %3951 = vmatpush1.msra.mxu0 0.0
  %3952 = vmatprep.subr.mxu0 0.0
  %3953 = vmatpush1.msra.mxu0 0.0
  %3954 = vmatprep.subr.mxu0 0.0
  %3955 = vmatpush1.msra.mxu0 0.0
  %3956 = vmatprep.subr.mxu0 0.0
  %3957 = vmatpush1.msra.mxu0 0.0
  %3958 = vmatprep.subr.mxu0 0.0
  %3959 = vmatpush1.msra.mxu0 0.0
  %3960 = vmatprep.subr.mxu0 0.0
  %3961 = vmatpush1.msra.mxu0 0.0
  %3962 = vmatprep.subr.mxu0 0.0
  %3963 = vmatpush1.msra.mxu0 0.0
  %3964 = vmatprep.subr.mxu0 0.0
  %3965 = vmatpush1.msra.mxu0 0.0
  %3966 = vmatprep.subr.mxu0 0.0
  %3967 = vmatpush1.msra.mxu0 0.0
  %3968 = vmatprep.mubr.f32.mxu0 0.0
  %3969 = vmatmul.mubr.f32.gmra.mrb[0].mxu0 %v3902
  %v3970 = vpop.f32.mrb[0].mxu0
  %v3971 = vadd.f32 %v3899, %v3970
  %v3972 = vpop.f32.mrb[0].mxu0
  %3973 = vdwg.mxu0
  %vm3974 = vcmask 1024
  %3975 = vst.msk [vmem:[%s28] sm:$0x3] %vm3974, %v3971
  // Predicated region
  $region114: #{mini_rrwavenet_forward.1} parent=0 // pred_check
    _
  $region115: #{mini_rrwavenet_forward.1} parent=0 // pred_check_branch
    %3977 = sbr.rel (0) target = $region117
  $region116: #{mini_rrwavenet_forward.1} parent=0 // pred_region
    _
  $region117: #{mini_rrwavenet_forward.1} parent=0 // pred_fallthru
    _
  // Predicated region
  $region118: #{mini_rrwavenet_forward.1} parent=0 // pred_check
    _
  $region119: #{mini_rrwavenet_forward.1} parent=0 // pred_check_branch
    %3979 = sbr.rel (0) target = $region121
  $region120: #{mini_rrwavenet_forward.1} parent=0 // pred_region
    _
  $region121: #{mini_rrwavenet_forward.1} parent=0 // pred_fallthru
    _

</llo_original>
